<compile_context>
chip_gen: v7x
topology: tpu7x:2x2x1
jax: 0.10.0
libtpu: 0.0.40
codegen_flags: <defaults>
</compile_context>

<pallas_src>
import math

import jax
import jax.numpy as jnp
from jax.experimental import pallas as pl
from jax.experimental.pallas import tpu as pltpu

# ----------------------------- config ---------------------------------------
B = 2                               # image batch
IMG_C, IMG_H, IMG_W = 3, 16, 16
PATCH = 8
GH, GW = IMG_H // PATCH, IMG_W // PATCH
N_PATCH = GH * GW                   # 4
S_VIS = N_PATCH + 1                 # 5 (cls token + patches)
VIS_WIDTH = 32
VIS_HEADS = 2
VIS_LAYERS = 1

N_CLS = 4
SEQ = 8                             # text context length
N_CTX = 4
TXT_WIDTH = 32                      # ctx_dim
TXT_HEADS = 2
TXT_LAYERS = 1

EMBED_DIM = 32                      # joint embedding dim
WIDTH = 32                          # shared transformer width
N_HEADS = 2
HEAD_DIM = WIDTH // N_HEADS         # 16

WP = 128                            # lane-dense padded model width
KP = 256                            # padded patch vector (3*8*8=192 -> 256)
NEG_INF = -1e9
ATTN_SCALE = 1.0 / math.sqrt(HEAD_DIM)

MV = B * S_VIS                      # 10 fused vision rows
MT = N_CLS * SEQ                    # 32 fused text rows

assert VIS_WIDTH == TXT_WIDTH == WIDTH and VIS_HEADS == TXT_HEADS == N_HEADS


def _ceil8(n):
    return ((n + 7) // 8) * 8


# ---- f32 constant-slab row layout (everything that is not a weight matrix) --
R_VIS_LN_PRE_G = 0
R_VIS_LN_PRE_B = 1
R_VIS_BLK = 2                                   # 8 rows per vision block
R_VIS_LN_POST_G = R_VIS_BLK + 8 * VIS_LAYERS
R_VIS_LN_POST_B = R_VIS_LN_POST_G + 1
R_TXT_BLK = R_VIS_LN_POST_B + 1                 # 8 rows per text block
R_TXT_LN_FINAL_G = R_TXT_BLK + 8 * TXT_LAYERS
R_TXT_LN_FINAL_B = R_TXT_LN_FINAL_G + 1
R_LOGIT_SCALE = R_TXT_LN_FINAL_B + 1
_N_VEC = R_LOGIT_SCALE + 1
R_VIS_ADDEND = _ceil8(_N_VEC)                   # cls + pos embed, MV rows
R_VIS_MASK = R_VIS_ADDEND + _ceil8(MV)          # block-diag mask, MV rows
R_TXT_MASK = R_VIS_MASK + _ceil8(MV)            # block-diag causal mask, MT rows
R_EOT_SEL = R_TXT_MASK + _ceil8(MT)             # EOT one-hot selector, N_CLS rows
N_CONST_ROWS = R_EOT_SEL + _ceil8(N_CLS)

# ---- bf16 weight-slab row layout --------------------------------------------
W_CONV1 = 0                                     # KP rows (patch embedding)
W_VIS_BLK = KP                                  # 4*WP rows per vision block
W_VIS_PROJ = W_VIS_BLK + 4 * WP * VIS_LAYERS
W_TXT_BLK = W_VIS_PROJ + WP
W_TEXT_PROJ = W_TXT_BLK + 4 * WP * TXT_LAYERS
N_W_ROWS = W_TEXT_PROJ + WP


# --------------------------- packing helpers --------------------------------
def _pad2(x, rows, cols):
    x = jnp.asarray(x, jnp.float32)
    r, c = x.shape
    return jnp.pad(x, ((0, rows - r), (0, cols - c)))


def _pad_vec(x, cols=WP):
    x = jnp.asarray(x, jnp.float32).reshape(1, -1)
    return jnp.pad(x, ((0, 0), (0, cols - x.shape[1])))


def _pad_rows(x, rows):
    return jnp.pad(x, ((0, rows - x.shape[0]), (0, 0)))


def _pad_cols(x, cols=WP):
    return jnp.pad(x, ((0, 0), (0, cols - x.shape[1])))


def _pack_block(bp, width):
    """One ResidualAttentionBlock -> (4*WP, WP) matrices + (8, WP) vectors."""
    in_w = _pad2(bp["in_proj_w"], WP, WP)        # (w,3w) -> (128,128), cols = q|k|v
    # out_proj rows shifted to the v-band [2w:3w): in-kernel each head's
    # attention output is written straight into its v-band columns, so a
    # single matmul with this weight is the full multi-head output projection.
    out_w = jnp.zeros((WP, WP), jnp.float32)
    out_w = out_w.at[2 * width:3 * width, :width].set(
        jnp.asarray(bp["out_proj_w"], jnp.float32))
    fc_w = _pad2(bp["fc_w"], WP, WP)             # (w, 4w)
    proj_w = _pad2(bp["proj_w"], WP, WP)         # (4w, w)
    mats = jnp.concatenate([in_w, out_w, fc_w, proj_w], axis=0)      # (4*WP, WP)
    vecs = jnp.concatenate([
        _pad_vec(bp["ln1_g"]), _pad_vec(bp["ln1_b"]),
        _pad_vec(bp["in_proj_b"]), _pad_vec(bp["out_proj_b"]),
        _pad_vec(bp["ln2_g"]), _pad_vec(bp["ln2_b"]),
        _pad_vec(bp["fc_b"]), _pad_vec(bp["proj_b"]),
    ], axis=0)                                                       # (8, WP)
    return mats, vecs


def prepare_params(params):
    """One-time repack of the model into two kernel-ready slabs."""
    v, t = params["visual"], params["text"]

    vis_mats, vis_vecs = zip(*[_pack_block(b, VIS_WIDTH) for b in v["blocks"]])
    txt_mats, txt_vecs = zip(*[_pack_block(b, TXT_WIDTH) for b in t["blocks"]])

    wmat = jnp.concatenate(
        [_pad2(v["conv1_w"], KP, WP)] + list(vis_mats)
        + [_pad2(v["proj"], WP, WP)] + list(txt_mats)
        + [_pad2(t["text_projection"], WP, WP)], axis=0).astype(jnp.bfloat16)
    assert wmat.shape == (N_W_ROWS, WP)

    # cls token + positional embedding folded into one additive tensor.
    pos = _pad2(v["pos_embed"], S_VIS, WP)
    addend = pos.at[0, :].add(_pad_vec(v["class_embedding"])[0])
    vis_addend = jnp.tile(addend, (B, 1))                            # (MV, WP)

    # Block-diagonal attention masks: one softmax over all fused rows per head.
    rv = jnp.arange(MV)
    vis_mask = jnp.where((rv[:, None] // S_VIS) == (rv[None, :] // S_VIS),
                         0.0, NEG_INF).astype(jnp.float32)           # (MV, MV)
    rt = jnp.arange(MT)
    same = (rt[:, None] // SEQ) == (rt[None, :] // SEQ)
    causal = (rt[None, :] % SEQ) <= (rt[:, None] % SEQ)
    txt_mask = jnp.where(same & causal, 0.0, NEG_INF).astype(jnp.float32)

    # EOT gather as a tiny selection matmul (EOT token has the largest id).
    eot = jnp.argmax(params["tokenized_prompts"], axis=-1)
    eot_sel = jax.nn.one_hot(jnp.arange(N_CLS) * SEQ + eot, MT, dtype=jnp.float32)

    logit_row = jnp.zeros((1, WP), jnp.float32).at[0, 0].set(
        jnp.asarray(params["logit_scale"], jnp.float32))

    vec_region = jnp.concatenate(
        [_pad_vec(v["ln_pre_g"]), _pad_vec(v["ln_pre_b"])] + list(vis_vecs)
        + [_pad_vec(v["ln_post_g"]), _pad_vec(v["ln_post_b"])] + list(txt_vecs)
        + [_pad_vec(t["ln_final_g"]), _pad_vec(t["ln_final_b"]), logit_row],
        axis=0)
    assert vec_region.shape[0] == _N_VEC

    consts = jnp.concatenate([
        _pad_rows(vec_region, R_VIS_ADDEND),
        _pad_rows(vis_addend, R_VIS_MASK - R_VIS_ADDEND),
        _pad_rows(_pad_cols(vis_mask), R_TXT_MASK - R_VIS_MASK),
        _pad_rows(_pad_cols(txt_mask), R_EOT_SEL - R_TXT_MASK),
        _pad_rows(_pad_cols(eot_sel), N_CONST_ROWS - R_EOT_SEL),
    ], axis=0)
    assert consts.shape == (N_CONST_ROWS, WP)

    txt_pos = jnp.tile(_pad2(t["pos_embed"], SEQ, WP), (N_CLS, 1))   # (MT, WP)

    return dict(wmat=wmat, consts=consts, txt_pos=txt_pos,
                ctx=params["ctx"],
                token_prefix=params["token_prefix"],
                token_suffix=params["token_suffix"])


# --------------------- in-kernel building blocks -----------------------------
def _layernorm(x, g, b, width, eps=1e-5):
    # Lanes >= width are exactly zero in x, g and b, so plain lane sums give the
    # true mean / E[x^2]; the (x-mu) garbage in pad lanes is zeroed by g/b pads.
    mu = jnp.sum(x, axis=-1, keepdims=True) * (1.0 / width)
    ex2 = jnp.sum(x * x, axis=-1, keepdims=True) * (1.0 / width)
    var = ex2 - mu * mu
    return (x - mu) * jax.lax.rsqrt(var + eps) * g + b


def _mxdot(a, w):
    # bf16 MXU operands, f32 accumulate.
    return jnp.dot(a.astype(jnp.bfloat16), w.astype(jnp.bfloat16),
                   preferred_element_type=jnp.float32)


def _clip_kernel(wmat_ref, consts_ref, patches_ref, prompts_ref,
                 logits_ref, txtf_ref):
    def vrow(i):                                     # (1, WP) f32 constant row
        return consts_ref[pl.ds(i, 1), :]

    def mat(off, rows=WP):                           # bf16 weight tile
        return wmat_ref[pl.ds(off, rows), :]

    # Per-head v-band masks (same layout for both towers), built once.
    lane = jax.lax.broadcasted_iota(jnp.int32, (1, WP), 1)
    vband = [jnp.where((lane >= 2 * WIDTH + h * HEAD_DIM)
                       & (lane < 2 * WIDTH + (h + 1) * HEAD_DIM),
                       1.0, 0.0).astype(jnp.float32) for h in range(N_HEADS)]

    def block(x, woff, voff, mask):
        """Pre-LN ResidualAttentionBlock, fused QKV + fused (banded) out-proj."""
        h = _layernorm(x, vrow(voff + 0), vrow(voff + 1), WIDTH)
        qkv = _mxdot(h, mat(woff)) + vrow(voff + 2)          # (M, WP): q|k|v bands
        o = None
        for hi in range(N_HEADS):                            # static unroll (2)
            q = qkv[:, hi * HEAD_DIM:(hi + 1) * HEAD_DIM]
            k = qkv[:, WIDTH + hi * HEAD_DIM:WIDTH + (hi + 1) * HEAD_DIM]
            s = jnp.einsum("qd,kd->qk",
                           q.astype(jnp.bfloat16), k.astype(jnp.bfloat16),
                           preferred_element_type=jnp.float32) * ATTN_SCALE + mask
            s = s - jnp.max(s, axis=-1, keepdims=True)
            p = jnp.exp(s)
            p = p * pl.reciprocal(jnp.sum(p, axis=-1, keepdims=True), approx=True)
            oh = _mxdot(p, qkv * vband[hi])                  # head output in its v-band
            o = oh if o is None else o + oh
        x = x + _mxdot(o, mat(woff + WP)) + vrow(voff + 3)   # single out-proj
        h2 = _layernorm(x, vrow(voff + 4), vrow(voff + 5), WIDTH)
        m = _mxdot(h2, mat(woff + 2 * WP)) + vrow(voff + 6)
        m = m * jax.nn.sigmoid(1.702 * m)                    # QuickGELU (f32 VPU/EUP)
        return x + _mxdot(m, mat(woff + 3 * WP)) + vrow(voff + 7)

    # ---------------- vision encoder (fully fused, VMEM resident) ----------------
    xv = _mxdot(patches_ref[...], mat(W_CONV1, KP))          # patch embedding
    xv = xv + consts_ref[pl.ds(R_VIS_ADDEND, MV), :]         # cls + positional embed
    xv = _layernorm(xv, vrow(R_VIS_LN_PRE_G), vrow(R_VIS_LN_PRE_B), WIDTH)
    vis_mask = consts_ref[pl.ds(R_VIS_MASK, MV), :][:, :MV]
    for l in range(VIS_LAYERS):
        xv = block(xv, W_VIS_BLK + l * 4 * WP, R_VIS_BLK + l * 8, vis_mask)
    cls_tok = jnp.concatenate(
        [xv[g * S_VIS:g * S_VIS + 1, :] for g in range(B)], axis=0)   # x[:, 0, :]
    cls_tok = _layernorm(cls_tok, vrow(R_VIS_LN_POST_G), vrow(R_VIS_LN_POST_B), WIDTH)
    img_feat = _mxdot(cls_tok, mat(W_VIS_PROJ))              # (B, WP)

    # ---------------- text encoder (fully fused) ----------------
    xt = prompts_ref[...]                                    # pos-embed pre-added
    txt_mask = consts_ref[pl.ds(R_TXT_MASK, MT), :][:, :MT]
    for l in range(TXT_LAYERS):
        xt = block(xt, W_TXT_BLK + l * 4 * WP, R_TXT_BLK + l * 8, txt_mask)
    xt = _layernorm(xt, vrow(R_TXT_LN_FINAL_G), vrow(R_TXT_LN_FINAL_B), WIDTH)
    eot_sel = consts_ref[pl.ds(R_EOT_SEL, N_CLS), :][:, :MT]
    x_eot = _mxdot(eot_sel, xt)                              # EOT gather
    txt_feat = _mxdot(x_eot, mat(W_TEXT_PROJ))               # (N_CLS, WP)

    # ---------------- normalize + scaled logits ----------------
    # get_text_features(): mean over a stack of one normalized tensor == normalize.
    inorm = img_feat * jax.lax.rsqrt(
        jnp.sum(img_feat * img_feat, axis=-1, keepdims=True) + 1e-24)
    tnorm = txt_feat * jax.lax.rsqrt(
        jnp.sum(txt_feat * txt_feat, axis=-1, keepdims=True) + 1e-24)
    scale = jnp.exp(vrow(R_LOGIT_SCALE)[0:1, 0:1])           # (1,1)
    logits_ref[...] = scale * jnp.einsum("be,ce->bc", inorm, tnorm,
                                         preferred_element_type=jnp.float32)
    txtf_ref[...] = tnorm[:, :EMBED_DIM]


# ------------------------------- forward ------------------------------------
def clip_ttt_forward(prep, image):
    """ClipTestTimeTuning.forward -> (logits, text_features). One pallas_call."""
    # glue: patchify (stride==kernel conv -> matmul operand) + cls slot + lane pad.
    patches = image.astype(jnp.float32).reshape(B, IMG_C, GH, PATCH, GW, PATCH)
    patches = patches.transpose(0, 2, 4, 1, 3, 5).reshape(B, N_PATCH,
                                                          IMG_C * PATCH * PATCH)
    patches = jnp.concatenate(
        [jnp.zeros((B, 1, IMG_C * PATCH * PATCH), jnp.float32), patches], axis=1)
    patches = jnp.pad(patches, ((0, 0), (0, 0), (0, KP - IMG_C * PATCH * PATCH)))
    patches = patches.reshape(MV, KP).astype(jnp.bfloat16)

    # glue: PromptLearner.forward  cat([prefix, ctx, suffix]) + pos embed + pad.
    ctx = jnp.broadcast_to(prep["ctx"][None], (N_CLS, N_CTX, TXT_WIDTH))
    prompts = jnp.concatenate([prep["token_prefix"], ctx, prep["token_suffix"]],
                              axis=1).astype(jnp.float32)            # (N_CLS, SEQ, W)
    prompts = jnp.pad(prompts, ((0, 0), (0, 0), (0, WP - TXT_WIDTH)))
    prompts = prompts.reshape(MT, WP) + prep["txt_pos"]

    args = (prep["wmat"], prep["consts"], patches, prompts)

    def full(a):
        return pl.BlockSpec(a.shape, lambda i, nd=a.ndim: (0,) * nd)

    logits, text_features = pl.pallas_call(
        _clip_kernel,
        grid=(1,),
        in_specs=[full(a) for a in args],
        out_specs=(pl.BlockSpec((B, N_CLS), lambda i: (0, 0)),
                   pl.BlockSpec((N_CLS, EMBED_DIM), lambda i: (0, 0))),
        out_shape=(jax.ShapeDtypeStruct((B, N_CLS), jnp.float32),
                   jax.ShapeDtypeStruct((N_CLS, EMBED_DIM), jnp.float32)),
        compiler_params=pltpu.CompilerParams(
            dimension_semantics=("arbitrary",),
            vmem_limit_bytes=8 * 1024 * 1024),
    )(*args)
    return logits, text_features


# ------------------------------ init ----------------------------------------
def init_params(key):
    keys = iter(jax.random.split(key, 128))

    def nrm(shape, std=0.02):
        return jax.random.normal(next(keys), shape, jnp.float32) * std

    def block_params(width):
        return dict(
            ln1_g=jnp.ones((width,), jnp.float32),
            ln1_b=jnp.zeros((width,), jnp.float32),
            in_proj_w=nrm((width, 3 * width)),       # columns: q | k | v, heads contiguous
            in_proj_b=jnp.zeros((3 * width,), jnp.float32),
            out_proj_w=nrm((width, width)),
            out_proj_b=jnp.zeros((width,), jnp.float32),
            ln2_g=jnp.ones((width,), jnp.float32),
            ln2_b=jnp.zeros((width,), jnp.float32),
            fc_w=nrm((width, 4 * width)),
            fc_b=jnp.zeros((4 * width,), jnp.float32),
            proj_w=nrm((4 * width, width)),
            proj_b=jnp.zeros((width,), jnp.float32),
        )

    visual = dict(
        conv1_w=nrm((IMG_C * PATCH * PATCH, VIS_WIDTH)),
        class_embedding=nrm((VIS_WIDTH,)),
        pos_embed=nrm((S_VIS, VIS_WIDTH)),
        ln_pre_g=jnp.ones((VIS_WIDTH,), jnp.float32),
        ln_pre_b=jnp.zeros((VIS_WIDTH,), jnp.float32),
        ln_post_g=jnp.ones((VIS_WIDTH,), jnp.float32),
        ln_post_b=jnp.zeros((VIS_WIDTH,), jnp.float32),
        proj=nrm((VIS_WIDTH, EMBED_DIM)),
        blocks=[block_params(VIS_WIDTH) for _ in range(VIS_LAYERS)],
    )

    text = dict(
        pos_embed=nrm((SEQ, TXT_WIDTH)),
        ln_final_g=jnp.ones((TXT_WIDTH,), jnp.float32),
        ln_final_b=jnp.zeros((TXT_WIDTH,), jnp.float32),
        text_projection=nrm((TXT_WIDTH, EMBED_DIM)),
        blocks=[block_params(TXT_WIDTH) for _ in range(TXT_LAYERS)],
    )

    # Synthetic tokenized prompts: SOT, n_ctx placeholders, class token, EOT, pad.
    # EOT has the largest id so argmax picks the EOT position (as in CLIP).
    suffix_len = SEQ - 1 - N_CTX
    rows = []
    for i in range(N_CLS):
        row = [49406] + [343] * N_CTX + [1000 + i, 49407]
        row = row + [0] * (SEQ - len(row))
        rows.append(row)
    tokenized_prompts = jnp.array(rows, jnp.int32)

    return dict(
        visual=visual,
        text=text,
        ctx=nrm((N_CTX, TXT_WIDTH)),                       # learnable context vectors
        token_prefix=nrm((N_CLS, 1, TXT_WIDTH)),           # SOT embedding slice
        token_suffix=nrm((N_CLS, suffix_len, TXT_WIDTH)),  # class/EOT/pad slice
        tokenized_prompts=tokenized_prompts,
        logit_scale=jnp.asarray(math.log(1.0 / 0.07), jnp.float32),
    )


# ------------------------------ main -----------------------------------------
if __name__ == "__main__":
    key = jax.random.PRNGKey(0)
    pkey, ikey = jax.random.split(key)
    params = init_params(pkey)
    prep = prepare_params(params)                 # one-time slab repack (bf16 weights)
    # layout: NCHW image input, same as the PyTorch module.
    image = jax.random.normal(ikey, (B, IMG_C, IMG_H, IMG_W), jnp.float32)

    fwd = jax.jit(clip_ttt_forward)
    logits, text_features = fwd(prep, image)
    jax.block_until_ready((logits, text_features))

    assert logits.shape == (B, N_CLS)
    assert text_features.shape == (N_CLS, EMBED_DIM)
    assert bool(jnp.all(jnp.isfinite(logits))) and bool(jnp.all(jnp.isfinite(text_features)))
    print("KERNEL_OK")
</pallas_src>

<mosaic_0001>
module attributes {stable_mosaic.version = 11 : i64} {
  func.func @_clip_kernel(%arg0: i32, %arg1: memref<1536x128xbf16, #tpu.memory_space<vmem>>, %arg2: memref<96x128xf32, #tpu.memory_space<vmem>>, %arg3: memref<10x256xbf16, #tpu.memory_space<vmem>>, %arg4: memref<32x128xf32, #tpu.memory_space<vmem>>, %arg5: memref<2x4xf32, #tpu.memory_space<vmem>>, %arg6: memref<4x32xf32, #tpu.memory_space<vmem>>) attributes {dimension_semantics = [#tpu.dimension_semantics<arbitrary>], iteration_bounds = array<i64: 1>, scalar_prefetch = 0 : i64, scratch_operands = 0 : i64, tpu.core_type = #tpu.core_type<tc>, window_params = [{pipeline_mode = #tpu.pipeline_mode<synchronous>, transform_indices = @transform_0, window_bounds = array<i64: 1536, 128>}, {pipeline_mode = #tpu.pipeline_mode<synchronous>, transform_indices = @transform_1, window_bounds = array<i64: 96, 128>}, {pipeline_mode = #tpu.pipeline_mode<synchronous>, transform_indices = @transform_2, window_bounds = array<i64: 10, 256>}, {pipeline_mode = #tpu.pipeline_mode<synchronous>, transform_indices = @transform_3, window_bounds = array<i64: 32, 128>}, {pipeline_mode = #tpu.pipeline_mode<synchronous>, transform_indices = @transform_4, window_bounds = array<i64: 2, 4>}, {pipeline_mode = #tpu.pipeline_mode<synchronous>, transform_indices = @transform_5, window_bounds = array<i64: 4, 32>}]} {
    %0 = tpu.iota {dimensions = array<i32: 1>} : vector<1x128xi32>
    %c64_i32 = arith.constant 64 : i32
    %1 = vector.broadcast %c64_i32 : i32 to vector<1x128xi32>
    %2 = arith.cmpi sge, %0, %1 : vector<1x128xi32>
    %c80_i32 = arith.constant 80 : i32
    %3 = vector.broadcast %c80_i32 : i32 to vector<1x128xi32>
    %4 = arith.cmpi slt, %0, %3 : vector<1x128xi32>
    %5 = arith.andi %2, %4 : vector<1x128xi1>
    %cst = arith.constant 1.000000e+00 : f32
    %cst_0 = arith.constant 0.000000e+00 : f32
    %6 = vector.broadcast %cst : f32 to vector<1x128xf32>
    %7 = vector.broadcast %cst_0 : f32 to vector<1x128xf32>
    %8 = arith.select %5, %6, %7 : vector<1x128xi1>, vector<1x128xf32>
    %c80_i32_1 = arith.constant 80 : i32
    %9 = vector.broadcast %c80_i32_1 : i32 to vector<1x128xi32>
    %10 = arith.cmpi sge, %0, %9 : vector<1x128xi32>
    %c96_i32 = arith.constant 96 : i32
    %11 = vector.broadcast %c96_i32 : i32 to vector<1x128xi32>
    %12 = arith.cmpi slt, %0, %11 : vector<1x128xi32>
    %13 = arith.andi %10, %12 : vector<1x128xi1>
    %cst_2 = arith.constant 1.000000e+00 : f32
    %cst_3 = arith.constant 0.000000e+00 : f32
    %14 = vector.broadcast %cst_2 : f32 to vector<1x128xf32>
    %15 = vector.broadcast %cst_3 : f32 to vector<1x128xf32>
    %16 = arith.select %13, %14, %15 : vector<1x128xi1>, vector<1x128xf32>
    %c0 = arith.constant 0 : index
    %c0_4 = arith.constant 0 : index
    %17 = vector.load %arg3[%c0, %c0_4] : memref<10x256xbf16, #tpu.memory_space<vmem>>, vector<10x256xbf16>
    %c0_5 = arith.constant 0 : index
    %c0_6 = arith.constant 0 : index
    %18 = vector.load %arg1[%c0_5, %c0_6] : memref<1536x128xbf16, #tpu.memory_space<vmem>>, vector<256x128xbf16>
    %cst_7 = arith.constant dense<0.000000e+00> : vector<10x128xf32>
    %19 = tpu.matmul %17, %18, %cst_7 {dimension_numbers = #tpu.dot_dimension_numbers<[1], [0], [0], [1], [0, 0, 1, 1], [], []>} : vector<10x256xbf16>, vector<256x128xbf16>, vector<10x128xf32> -> vector<10x128xf32>
    %c24 = arith.constant 24 : index
    %c0_8 = arith.constant 0 : index
    %20 = vector.load %arg2[%c24, %c0_8] : memref<96x128xf32, #tpu.memory_space<vmem>>, vector<10x128xf32>
    %21 = arith.addf %19, %20 : vector<10x128xf32>
    %c0_9 = arith.constant 0 : index
    %c0_10 = arith.constant 0 : index
    %22 = vector.load %arg2[%c0_9, %c0_10] : memref<96x128xf32, #tpu.memory_space<vmem>>, vector<1x128xf32>
    %c1 = arith.constant 1 : index
    %c0_11 = arith.constant 0 : index
    %23 = vector.load %arg2[%c1, %c0_11] : memref<96x128xf32, #tpu.memory_space<vmem>>, vector<1x128xf32>
    %cst_12 = arith.constant dense<0.000000e+00> : vector<10xf32>
    %24 = vector.multi_reduction <add>, %21, %cst_12 [1] : vector<10x128xf32> to vector<10xf32>
    %25 = vector.shape_cast %24 : vector<10xf32> to vector<10x1xf32>
    %cst_13 = arith.constant 3.125000e-02 : f32
    %26 = vector.broadcast %cst_13 : f32 to vector<10x1xf32>
    %27 = arith.mulf %25, %26 : vector<10x1xf32>
    %28 = arith.mulf %21, %21 : vector<10x128xf32>
    %cst_14 = arith.constant dense<0.000000e+00> : vector<10xf32>
    %29 = vector.multi_reduction <add>, %28, %cst_14 [1] : vector<10x128xf32> to vector<10xf32>
    %30 = vector.shape_cast %29 : vector<10xf32> to vector<10x1xf32>
    %cst_15 = arith.constant 3.125000e-02 : f32
    %31 = vector.broadcast %cst_15 : f32 to vector<10x1xf32>
    %32 = arith.mulf %30, %31 : vector<10x1xf32>
    %33 = arith.mulf %27, %27 : vector<10x1xf32>
    %34 = arith.subf %32, %33 : vector<10x1xf32>
    %35 = vector.broadcast %27 : vector<10x1xf32> to vector<10x128xf32>
    %36 = arith.subf %21, %35 : vector<10x128xf32>
    %cst_16 = arith.constant 9.99999974E-6 : f32
    %37 = vector.broadcast %cst_16 : f32 to vector<10x1xf32>
    %38 = arith.addf %34, %37 : vector<10x1xf32>
    %39 = math.rsqrt %38 : vector<10x1xf32>
    %40 = vector.broadcast %39 : vector<10x1xf32> to vector<10x128xf32>
    %41 = arith.mulf %36, %40 : vector<10x128xf32>
    %42 = vector.broadcast %22 : vector<1x128xf32> to vector<10x128xf32>
    %43 = arith.mulf %41, %42 : vector<10x128xf32>
    %44 = vector.broadcast %23 : vector<1x128xf32> to vector<10x128xf32>
    %45 = arith.addf %43, %44 : vector<10x128xf32>
    %c40 = arith.constant 40 : index
    %c0_17 = arith.constant 0 : index
    %46 = vector.load %arg2[%c40, %c0_17] : memref<96x128xf32, #tpu.memory_space<vmem>>, vector<10x128xf32>
    %47 = vector.extract_strided_slice %46 {offsets = [0, 0], sizes = [10, 10], strides = [1, 1]} : vector<10x128xf32> to vector<10x10xf32>
    %c2 = arith.constant 2 : index
    %c0_18 = arith.constant 0 : index
    %48 = vector.load %arg2[%c2, %c0_18] : memref<96x128xf32, #tpu.memory_space<vmem>>, vector<1x128xf32>
    %c3 = arith.constant 3 : index
    %c0_19 = arith.constant 0 : index
    %49 = vector.load %arg2[%c3, %c0_19] : memref<96x128xf32, #tpu.memory_space<vmem>>, vector<1x128xf32>
    %cst_20 = arith.constant dense<0.000000e+00> : vector<10xf32>
    %50 = vector.multi_reduction <add>, %45, %cst_20 [1] : vector<10x128xf32> to vector<10xf32>
    %51 = vector.shape_cast %50 : vector<10xf32> to vector<10x1xf32>
    %cst_21 = arith.constant 3.125000e-02 : f32
    %52 = vector.broadcast %cst_21 : f32 to vector<10x1xf32>
    %53 = arith.mulf %51, %52 : vector<10x1xf32>
    %54 = arith.mulf %45, %45 : vector<10x128xf32>
    %cst_22 = arith.constant dense<0.000000e+00> : vector<10xf32>
    %55 = vector.multi_reduction <add>, %54, %cst_22 [1] : vector<10x128xf32> to vector<10xf32>
    %56 = vector.shape_cast %55 : vector<10xf32> to vector<10x1xf32>
    %cst_23 = arith.constant 3.125000e-02 : f32
    %57 = vector.broadcast %cst_23 : f32 to vector<10x1xf32>
    %58 = arith.mulf %56, %57 : vector<10x1xf32>
    %59 = arith.mulf %53, %53 : vector<10x1xf32>
    %60 = arith.subf %58, %59 : vector<10x1xf32>
    %61 = vector.broadcast %53 : vector<10x1xf32> to vector<10x128xf32>
    %62 = arith.subf %45, %61 : vector<10x128xf32>
    %cst_24 = arith.constant 9.99999974E-6 : f32
    %63 = vector.broadcast %cst_24 : f32 to vector<10x1xf32>
    %64 = arith.addf %60, %63 : vector<10x1xf32>
    %65 = math.rsqrt %64 : vector<10x1xf32>
    %66 = vector.broadcast %65 : vector<10x1xf32> to vector<10x128xf32>
    %67 = arith.mulf %62, %66 : vector<10x128xf32>
    %68 = vector.broadcast %48 : vector<1x128xf32> to vector<10x128xf32>
    %69 = arith.mulf %67, %68 : vector<10x128xf32>
    %70 = vector.broadcast %49 : vector<1x128xf32> to vector<10x128xf32>
    %71 = arith.addf %69, %70 : vector<10x128xf32>
    %c256 = arith.constant 256 : index
    %c0_25 = arith.constant 0 : index
    %72 = vector.load %arg1[%c256, %c0_25] : memref<1536x128xbf16, #tpu.memory_space<vmem>>, vector<128x128xbf16>
    %73 = arith.truncf %71 : vector<10x128xf32> to vector<10x128xbf16>
    %cst_26 = arith.constant dense<0.000000e+00> : vector<10x128xf32>
    %74 = tpu.matmul %73, %72, %cst_26 {dimension_numbers = #tpu.dot_dimension_numbers<[1], [0], [0], [1], [0, 0, 1, 1], [], []>} : vector<10x128xbf16>, vector<128x128xbf16>, vector<10x128xf32> -> vector<10x128xf32>
    %c4 = arith.constant 4 : index
    %c0_27 = arith.constant 0 : index
    %75 = vector.load %arg2[%c4, %c0_27] : memref<96x128xf32, #tpu.memory_space<vmem>>, vector<1x128xf32>
    %76 = vector.broadcast %75 : vector<1x128xf32> to vector<10x128xf32>
    %77 = arith.addf %74, %76 : vector<10x128xf32>
    %78 = vector.extract_strided_slice %77 {offsets = [0, 0], sizes = [10, 16], strides = [1, 1]} : vector<10x128xf32> to vector<10x16xf32>
    %79 = vector.extract_strided_slice %77 {offsets = [0, 32], sizes = [10, 16], strides = [1, 1]} : vector<10x128xf32> to vector<10x16xf32>
    %80 = arith.truncf %78 : vector<10x16xf32> to vector<10x16xbf16>
    %81 = arith.truncf %79 : vector<10x16xf32> to vector<10x16xbf16>
    "tpu.trace_start"() <{level = 10 : i32, message = "qd,kd->qk"}> : () -> ()
    %cst_28 = arith.constant dense<0.000000e+00> : vector<10x10xf32>
    %82 = tpu.matmul %80, %81, %cst_28 {dimension_numbers = #tpu.dot_dimension_numbers<[1], [1], [0], [0], [0, 0, 1, 0], [], []>} : vector<10x16xbf16>, vector<10x16xbf16>, vector<10x10xf32> -> vector<10x10xf32>
    "tpu.trace_stop"() : () -> ()
    %cst_29 = arith.constant 2.500000e-01 : f32
    %83 = vector.broadcast %cst_29 : f32 to vector<10x10xf32>
    %84 = arith.mulf %82, %83 : vector<10x10xf32>
    %85 = arith.addf %84, %47 : vector<10x10xf32>
    %cst_30 = arith.constant dense<0xFF800000> : vector<10xf32>
    %86 = vector.multi_reduction <maximumf>, %85, %cst_30 [1] : vector<10x10xf32> to vector<10xf32>
    %87 = vector.shape_cast %86 : vector<10xf32> to vector<10x1xf32>
    %88 = vector.broadcast %87 : vector<10x1xf32> to vector<10x10xf32>
    %89 = arith.subf %85, %88 : vector<10x10xf32>
    %90 = math.exp %89 : vector<10x10xf32>
    %cst_31 = arith.constant dense<0.000000e+00> : vector<10xf32>
    %91 = vector.multi_reduction <add>, %90, %cst_31 [1] : vector<10x10xf32> to vector<10xf32>
    %92 = vector.shape_cast %91 : vector<10xf32> to vector<10x1xf32>
    %93 = tpu.reciprocal %92 {approx = true} : vector<10x1xf32> -> vector<10x1xf32>
    %94 = vector.broadcast %93 : vector<10x1xf32> to vector<10x10xf32>
    %95 = arith.mulf %90, %94 : vector<10x10xf32>
    %96 = vector.broadcast %8 : vector<1x128xf32> to vector<10x128xf32>
    %97 = arith.mulf %77, %96 : vector<10x128xf32>
    %98 = arith.truncf %95 : vector<10x10xf32> to vector<10x10xbf16>
    %99 = arith.truncf %97 : vector<10x128xf32> to vector<10x128xbf16>
    %cst_32 = arith.constant dense<0.000000e+00> : vector<10x128xf32>
    %100 = tpu.matmul %98, %99, %cst_32 {dimension_numbers = #tpu.dot_dimension_numbers<[1], [0], [0], [1], [0, 0, 1, 1], [], []>} : vector<10x10xbf16>, vector<10x128xbf16>, vector<10x128xf32> -> vector<10x128xf32>
    %101 = vector.extract_strided_slice %77 {offsets = [0, 16], sizes = [10, 16], strides = [1, 1]} : vector<10x128xf32> to vector<10x16xf32>
    %102 = vector.extract_strided_slice %77 {offsets = [0, 48], sizes = [10, 16], strides = [1, 1]} : vector<10x128xf32> to vector<10x16xf32>
    %103 = arith.truncf %101 : vector<10x16xf32> to vector<10x16xbf16>
    %104 = arith.truncf %102 : vector<10x16xf32> to vector<10x16xbf16>
    "tpu.trace_start"() <{level = 10 : i32, message = "qd,kd->qk"}> : () -> ()
    %cst_33 = arith.constant dense<0.000000e+00> : vector<10x10xf32>
    %105 = tpu.matmul %103, %104, %cst_33 {dimension_numbers = #tpu.dot_dimension_numbers<[1], [1], [0], [0], [0, 0, 1, 0], [], []>} : vector<10x16xbf16>, vector<10x16xbf16>, vector<10x10xf32> -> vector<10x10xf32>
    "tpu.trace_stop"() : () -> ()
    %cst_34 = arith.constant 2.500000e-01 : f32
    %106 = vector.broadcast %cst_34 : f32 to vector<10x10xf32>
    %107 = arith.mulf %105, %106 : vector<10x10xf32>
    %108 = arith.addf %107, %47 : vector<10x10xf32>
    %cst_35 = arith.constant dense<0xFF800000> : vector<10xf32>
    %109 = vector.multi_reduction <maximumf>, %108, %cst_35 [1] : vector<10x10xf32> to vector<10xf32>
    %110 = vector.shape_cast %109 : vector<10xf32> to vector<10x1xf32>
    %111 = vector.broadcast %110 : vector<10x1xf32> to vector<10x10xf32>
    %112 = arith.subf %108, %111 : vector<10x10xf32>
    %113 = math.exp %112 : vector<10x10xf32>
    %cst_36 = arith.constant dense<0.000000e+00> : vector<10xf32>
    %114 = vector.multi_reduction <add>, %113, %cst_36 [1] : vector<10x10xf32> to vector<10xf32>
    %115 = vector.shape_cast %114 : vector<10xf32> to vector<10x1xf32>
    %116 = tpu.reciprocal %115 {approx = true} : vector<10x1xf32> -> vector<10x1xf32>
    %117 = vector.broadcast %116 : vector<10x1xf32> to vector<10x10xf32>
    %118 = arith.mulf %113, %117 : vector<10x10xf32>
    %119 = vector.broadcast %16 : vector<1x128xf32> to vector<10x128xf32>
    %120 = arith.mulf %77, %119 : vector<10x128xf32>
    %121 = arith.truncf %118 : vector<10x10xf32> to vector<10x10xbf16>
    %122 = arith.truncf %120 : vector<10x128xf32> to vector<10x128xbf16>
    %cst_37 = arith.constant dense<0.000000e+00> : vector<10x128xf32>
    %123 = tpu.matmul %121, %122, %cst_37 {dimension_numbers = #tpu.dot_dimension_numbers<[1], [0], [0], [1], [0, 0, 1, 1], [], []>} : vector<10x10xbf16>, vector<10x128xbf16>, vector<10x128xf32> -> vector<10x128xf32>
    %124 = arith.addf %100, %123 : vector<10x128xf32>
    %c384 = arith.constant 384 : index
    %c0_38 = arith.constant 0 : index
    %125 = vector.load %arg1[%c384, %c0_38] : memref<1536x128xbf16, #tpu.memory_space<vmem>>, vector<128x128xbf16>
    %126 = arith.truncf %124 : vector<10x128xf32> to vector<10x128xbf16>
    %cst_39 = arith.constant dense<0.000000e+00> : vector<10x128xf32>
    %127 = tpu.matmul %126, %125, %cst_39 {dimension_numbers = #tpu.dot_dimension_numbers<[1], [0], [0], [1], [0, 0, 1, 1], [], []>} : vector<10x128xbf16>, vector<128x128xbf16>, vector<10x128xf32> -> vector<10x128xf32>
    %128 = arith.addf %45, %127 : vector<10x128xf32>
    %c5 = arith.constant 5 : index
    %c0_40 = arith.constant 0 : index
    %129 = vector.load %arg2[%c5, %c0_40] : memref<96x128xf32, #tpu.memory_space<vmem>>, vector<1x128xf32>
    %130 = vector.broadcast %129 : vector<1x128xf32> to vector<10x128xf32>
    %131 = arith.addf %128, %130 : vector<10x128xf32>
    %c6 = arith.constant 6 : index
    %c0_41 = arith.constant 0 : index
    %132 = vector.load %arg2[%c6, %c0_41] : memref<96x128xf32, #tpu.memory_space<vmem>>, vector<1x128xf32>
    %c7 = arith.constant 7 : index
    %c0_42 = arith.constant 0 : index
    %133 = vector.load %arg2[%c7, %c0_42] : memref<96x128xf32, #tpu.memory_space<vmem>>, vector<1x128xf32>
    %cst_43 = arith.constant dense<0.000000e+00> : vector<10xf32>
    %134 = vector.multi_reduction <add>, %131, %cst_43 [1] : vector<10x128xf32> to vector<10xf32>
    %135 = vector.shape_cast %134 : vector<10xf32> to vector<10x1xf32>
    %cst_44 = arith.constant 3.125000e-02 : f32
    %136 = vector.broadcast %cst_44 : f32 to vector<10x1xf32>
    %137 = arith.mulf %135, %136 : vector<10x1xf32>
    %138 = arith.mulf %131, %131 : vector<10x128xf32>
    %cst_45 = arith.constant dense<0.000000e+00> : vector<10xf32>
    %139 = vector.multi_reduction <add>, %138, %cst_45 [1] : vector<10x128xf32> to vector<10xf32>
    %140 = vector.shape_cast %139 : vector<10xf32> to vector<10x1xf32>
    %cst_46 = arith.constant 3.125000e-02 : f32
    %141 = vector.broadcast %cst_46 : f32 to vector<10x1xf32>
    %142 = arith.mulf %140, %141 : vector<10x1xf32>
    %143 = arith.mulf %137, %137 : vector<10x1xf32>
    %144 = arith.subf %142, %143 : vector<10x1xf32>
    %145 = vector.broadcast %137 : vector<10x1xf32> to vector<10x128xf32>
    %146 = arith.subf %131, %145 : vector<10x128xf32>
    %cst_47 = arith.constant 9.99999974E-6 : f32
    %147 = vector.broadcast %cst_47 : f32 to vector<10x1xf32>
    %148 = arith.addf %144, %147 : vector<10x1xf32>
    %149 = math.rsqrt %148 : vector<10x1xf32>
    %150 = vector.broadcast %149 : vector<10x1xf32> to vector<10x128xf32>
    %151 = arith.mulf %146, %150 : vector<10x128xf32>
    %152 = vector.broadcast %132 : vector<1x128xf32> to vector<10x128xf32>
    %153 = arith.mulf %151, %152 : vector<10x128xf32>
    %154 = vector.broadcast %133 : vector<1x128xf32> to vector<10x128xf32>
    %155 = arith.addf %153, %154 : vector<10x128xf32>
    %c512 = arith.constant 512 : index
    %c0_48 = arith.constant 0 : index
    %156 = vector.load %arg1[%c512, %c0_48] : memref<1536x128xbf16, #tpu.memory_space<vmem>>, vector<128x128xbf16>
    %157 = arith.truncf %155 : vector<10x128xf32> to vector<10x128xbf16>
    %cst_49 = arith.constant dense<0.000000e+00> : vector<10x128xf32>
    %158 = tpu.matmul %157, %156, %cst_49 {dimension_numbers = #tpu.dot_dimension_numbers<[1], [0], [0], [1], [0, 0, 1, 1], [], []>} : vector<10x128xbf16>, vector<128x128xbf16>, vector<10x128xf32> -> vector<10x128xf32>
    %c8 = arith.constant 8 : index
    %c0_50 = arith.constant 0 : index
    %159 = vector.load %arg2[%c8, %c0_50] : memref<96x128xf32, #tpu.memory_space<vmem>>, vector<1x128xf32>
    %160 = vector.broadcast %159 : vector<1x128xf32> to vector<10x128xf32>
    %161 = arith.addf %158, %160 : vector<10x128xf32>
    %cst_51 = arith.constant 1.702000e+00 : f32
    %162 = vector.broadcast %cst_51 : f32 to vector<10x128xf32>
    %163 = arith.mulf %162, %161 : vector<10x128xf32>
    %164 = arith.negf %163 : vector<10x128xf32>
    %165 = math.exp %164 : vector<10x128xf32>
    %cst_52 = arith.constant 1.000000e+00 : f32
    %166 = vector.broadcast %cst_52 : f32 to vector<10x128xf32>
    %167 = arith.addf %166, %165 : vector<10x128xf32>
    %168 = arith.divf %166, %167 : vector<10x128xf32>
    %169 = arith.mulf %161, %168 : vector<10x128xf32>
    %c640 = arith.constant 640 : index
    %c0_53 = arith.constant 0 : index
    %170 = vector.load %arg1[%c640, %c0_53] : memref<1536x128xbf16, #tpu.memory_space<vmem>>, vector<128x128xbf16>
    %171 = arith.truncf %169 : vector<10x128xf32> to vector<10x128xbf16>
    %cst_54 = arith.constant dense<0.000000e+00> : vector<10x128xf32>
    %172 = tpu.matmul %171, %170, %cst_54 {dimension_numbers = #tpu.dot_dimension_numbers<[1], [0], [0], [1], [0, 0, 1, 1], [], []>} : vector<10x128xbf16>, vector<128x128xbf16>, vector<10x128xf32> -> vector<10x128xf32>
    %173 = arith.addf %131, %172 : vector<10x128xf32>
    %c9 = arith.constant 9 : index
    %c0_55 = arith.constant 0 : index
    %174 = vector.load %arg2[%c9, %c0_55] : memref<96x128xf32, #tpu.memory_space<vmem>>, vector<1x128xf32>
    %175 = vector.broadcast %174 : vector<1x128xf32> to vector<10x128xf32>
    %176 = arith.addf %173, %175 : vector<10x128xf32>
    %177 = vector.extract_strided_slice %176 {offsets = [0, 0], sizes = [1, 128], strides = [1, 1]} : vector<10x128xf32> to vector<1x128xf32>
    %178 = vector.extract_strided_slice %176 {offsets = [5, 0], sizes = [1, 128], strides = [1, 1]} : vector<10x128xf32> to vector<1x128xf32>
    %179 = tpu.concatenate %177, %178 in 0 : vector<1x128xf32>, vector<1x128xf32> -> vector<2x128xf32>
    %c10 = arith.constant 10 : index
    %c0_56 = arith.constant 0 : index
    %180 = vector.load %arg2[%c10, %c0_56] : memref<96x128xf32, #tpu.memory_space<vmem>>, vector<1x128xf32>
    %c11 = arith.constant 11 : index
    %c0_57 = arith.constant 0 : index
    %181 = vector.load %arg2[%c11, %c0_57] : memref<96x128xf32, #tpu.memory_space<vmem>>, vector<1x128xf32>
    %cst_58 = arith.constant dense<0.000000e+00> : vector<2xf32>
    %182 = vector.multi_reduction <add>, %179, %cst_58 [1] : vector<2x128xf32> to vector<2xf32>
    %183 = vector.shape_cast %182 : vector<2xf32> to vector<2x1xf32>
    %cst_59 = arith.constant 3.125000e-02 : f32
    %184 = vector.broadcast %cst_59 : f32 to vector<2x1xf32>
    %185 = arith.mulf %183, %184 : vector<2x1xf32>
    %186 = arith.mulf %179, %179 : vector<2x128xf32>
    %cst_60 = arith.constant dense<0.000000e+00> : vector<2xf32>
    %187 = vector.multi_reduction <add>, %186, %cst_60 [1] : vector<2x128xf32> to vector<2xf32>
    %188 = vector.shape_cast %187 : vector<2xf32> to vector<2x1xf32>
    %cst_61 = arith.constant 3.125000e-02 : f32
    %189 = vector.broadcast %cst_61 : f32 to vector<2x1xf32>
    %190 = arith.mulf %188, %189 : vector<2x1xf32>
    %191 = arith.mulf %185, %185 : vector<2x1xf32>
    %192 = arith.subf %190, %191 : vector<2x1xf32>
    %193 = vector.broadcast %185 : vector<2x1xf32> to vector<2x128xf32>
    %194 = arith.subf %179, %193 : vector<2x128xf32>
    %cst_62 = arith.constant 9.99999974E-6 : f32
    %195 = vector.broadcast %cst_62 : f32 to vector<2x1xf32>
    %196 = arith.addf %192, %195 : vector<2x1xf32>
    %197 = math.rsqrt %196 : vector<2x1xf32>
    %198 = vector.broadcast %197 : vector<2x1xf32> to vector<2x128xf32>
    %199 = arith.mulf %194, %198 : vector<2x128xf32>
    %200 = vector.broadcast %180 : vector<1x128xf32> to vector<2x128xf32>
    %201 = arith.mulf %199, %200 : vector<2x128xf32>
    %202 = vector.broadcast %181 : vector<1x128xf32> to vector<2x128xf32>
    %203 = arith.addf %201, %202 : vector<2x128xf32>
    %c768 = arith.constant 768 : index
    %c0_63 = arith.constant 0 : index
    %204 = vector.load %arg1[%c768, %c0_63] : memref<1536x128xbf16, #tpu.memory_space<vmem>>, vector<128x128xbf16>
    %205 = arith.truncf %203 : vector<2x128xf32> to vector<2x128xbf16>
    %cst_64 = arith.constant dense<0.000000e+00> : vector<2x128xf32>
    %206 = tpu.matmul %205, %204, %cst_64 {dimension_numbers = #tpu.dot_dimension_numbers<[1], [0], [0], [1], [0, 0, 1, 1], [], []>} : vector<2x128xbf16>, vector<128x128xbf16>, vector<2x128xf32> -> vector<2x128xf32>
    %c0_65 = arith.constant 0 : index
    %c0_66 = arith.constant 0 : index
    %207 = vector.load %arg4[%c0_65, %c0_66] : memref<32x128xf32, #tpu.memory_space<vmem>>, vector<32x128xf32>
    %c56 = arith.constant 56 : index
    %c0_67 = arith.constant 0 : index
    %208 = vector.load %arg2[%c56, %c0_67] : memref<96x128xf32, #tpu.memory_space<vmem>>, vector<32x128xf32>
    %209 = vector.extract_strided_slice %208 {offsets = [0, 0], sizes = [32, 32], strides = [1, 1]} : vector<32x128xf32> to vector<32x32xf32>
    %c12 = arith.constant 12 : index
    %c0_68 = arith.constant 0 : index
    %210 = vector.load %arg2[%c12, %c0_68] : memref<96x128xf32, #tpu.memory_space<vmem>>, vector<1x128xf32>
    %c13 = arith.constant 13 : index
    %c0_69 = arith.constant 0 : index
    %211 = vector.load %arg2[%c13, %c0_69] : memref<96x128xf32, #tpu.memory_space<vmem>>, vector<1x128xf32>
    %cst_70 = arith.constant dense<0.000000e+00> : vector<32xf32>
    %212 = vector.multi_reduction <add>, %207, %cst_70 [1] : vector<32x128xf32> to vector<32xf32>
    %213 = vector.shape_cast %212 : vector<32xf32> to vector<32x1xf32>
    %cst_71 = arith.constant 3.125000e-02 : f32
    %214 = vector.broadcast %cst_71 : f32 to vector<32x1xf32>
    %215 = arith.mulf %213, %214 : vector<32x1xf32>
    %216 = arith.mulf %207, %207 : vector<32x128xf32>
    %cst_72 = arith.constant dense<0.000000e+00> : vector<32xf32>
    %217 = vector.multi_reduction <add>, %216, %cst_72 [1] : vector<32x128xf32> to vector<32xf32>
    %218 = vector.shape_cast %217 : vector<32xf32> to vector<32x1xf32>
    %cst_73 = arith.constant 3.125000e-02 : f32
    %219 = vector.broadcast %cst_73 : f32 to vector<32x1xf32>
    %220 = arith.mulf %218, %219 : vector<32x1xf32>
    %221 = arith.mulf %215, %215 : vector<32x1xf32>
    %222 = arith.subf %220, %221 : vector<32x1xf32>
    %223 = vector.broadcast %215 : vector<32x1xf32> to vector<32x128xf32>
    %224 = arith.subf %207, %223 : vector<32x128xf32>
    %cst_74 = arith.constant 9.99999974E-6 : f32
    %225 = vector.broadcast %cst_74 : f32 to vector<32x1xf32>
    %226 = arith.addf %222, %225 : vector<32x1xf32>
    %227 = math.rsqrt %226 : vector<32x1xf32>
    %228 = vector.broadcast %227 : vector<32x1xf32> to vector<32x128xf32>
    %229 = arith.mulf %224, %228 : vector<32x128xf32>
    %230 = vector.broadcast %210 : vector<1x128xf32> to vector<32x128xf32>
    %231 = arith.mulf %229, %230 : vector<32x128xf32>
    %232 = vector.broadcast %211 : vector<1x128xf32> to vector<32x128xf32>
    %233 = arith.addf %231, %232 : vector<32x128xf32>
    %c896 = arith.constant 896 : index
    %c0_75 = arith.constant 0 : index
    %234 = vector.load %arg1[%c896, %c0_75] : memref<1536x128xbf16, #tpu.memory_space<vmem>>, vector<128x128xbf16>
    %235 = arith.truncf %233 : vector<32x128xf32> to vector<32x128xbf16>
    %cst_76 = arith.constant dense<0.000000e+00> : vector<32x128xf32>
    %236 = tpu.matmul %235, %234, %cst_76 {dimension_numbers = #tpu.dot_dimension_numbers<[1], [0], [0], [1], [0, 0, 1, 1], [], []>} : vector<32x128xbf16>, vector<128x128xbf16>, vector<32x128xf32> -> vector<32x128xf32>
    %c14 = arith.constant 14 : index
    %c0_77 = arith.constant 0 : index
    %237 = vector.load %arg2[%c14, %c0_77] : memref<96x128xf32, #tpu.memory_space<vmem>>, vector<1x128xf32>
    %238 = vector.broadcast %237 : vector<1x128xf32> to vector<32x128xf32>
    %239 = arith.addf %236, %238 : vector<32x128xf32>
    %240 = vector.extract_strided_slice %239 {offsets = [0, 0], sizes = [32, 16], strides = [1, 1]} : vector<32x128xf32> to vector<32x16xf32>
    %241 = vector.extract_strided_slice %239 {offsets = [0, 32], sizes = [32, 16], strides = [1, 1]} : vector<32x128xf32> to vector<32x16xf32>
    %242 = arith.truncf %240 : vector<32x16xf32> to vector<32x16xbf16>
    %243 = arith.truncf %241 : vector<32x16xf32> to vector<32x16xbf16>
    "tpu.trace_start"() <{level = 10 : i32, message = "qd,kd->qk"}> : () -> ()
    %cst_78 = arith.constant dense<0.000000e+00> : vector<32x32xf32>
    %244 = tpu.matmul %242, %243, %cst_78 {dimension_numbers = #tpu.dot_dimension_numbers<[1], [1], [0], [0], [0, 0, 1, 0], [], []>} : vector<32x16xbf16>, vector<32x16xbf16>, vector<32x32xf32> -> vector<32x32xf32>
    "tpu.trace_stop"() : () -> ()
    %cst_79 = arith.constant 2.500000e-01 : f32
    %245 = vector.broadcast %cst_79 : f32 to vector<32x32xf32>
    %246 = arith.mulf %244, %245 : vector<32x32xf32>
    %247 = arith.addf %246, %209 : vector<32x32xf32>
    %cst_80 = arith.constant dense<0xFF800000> : vector<32xf32>
    %248 = vector.multi_reduction <maximumf>, %247, %cst_80 [1] : vector<32x32xf32> to vector<32xf32>
    %249 = vector.shape_cast %248 : vector<32xf32> to vector<32x1xf32>
    %250 = vector.broadcast %249 : vector<32x1xf32> to vector<32x32xf32>
    %251 = arith.subf %247, %250 : vector<32x32xf32>
    %252 = math.exp %251 : vector<32x32xf32>
    %cst_81 = arith.constant dense<0.000000e+00> : vector<32xf32>
    %253 = vector.multi_reduction <add>, %252, %cst_81 [1] : vector<32x32xf32> to vector<32xf32>
    %254 = vector.shape_cast %253 : vector<32xf32> to vector<32x1xf32>
    %255 = tpu.reciprocal %254 {approx = true} : vector<32x1xf32> -> vector<32x1xf32>
    %256 = vector.broadcast %255 : vector<32x1xf32> to vector<32x32xf32>
    %257 = arith.mulf %252, %256 : vector<32x32xf32>
    %258 = vector.broadcast %8 : vector<1x128xf32> to vector<32x128xf32>
    %259 = arith.mulf %239, %258 : vector<32x128xf32>
    %260 = arith.truncf %257 : vector<32x32xf32> to vector<32x32xbf16>
    %261 = arith.truncf %259 : vector<32x128xf32> to vector<32x128xbf16>
    %cst_82 = arith.constant dense<0.000000e+00> : vector<32x128xf32>
    %262 = tpu.matmul %260, %261, %cst_82 {dimension_numbers = #tpu.dot_dimension_numbers<[1], [0], [0], [1], [0, 0, 1, 1], [], []>} : vector<32x32xbf16>, vector<32x128xbf16>, vector<32x128xf32> -> vector<32x128xf32>
    %263 = vector.extract_strided_slice %239 {offsets = [0, 16], sizes = [32, 16], strides = [1, 1]} : vector<32x128xf32> to vector<32x16xf32>
    %264 = vector.extract_strided_slice %239 {offsets = [0, 48], sizes = [32, 16], strides = [1, 1]} : vector<32x128xf32> to vector<32x16xf32>
    %265 = arith.truncf %263 : vector<32x16xf32> to vector<32x16xbf16>
    %266 = arith.truncf %264 : vector<32x16xf32> to vector<32x16xbf16>
    "tpu.trace_start"() <{level = 10 : i32, message = "qd,kd->qk"}> : () -> ()
    %cst_83 = arith.constant dense<0.000000e+00> : vector<32x32xf32>
    %267 = tpu.matmul %265, %266, %cst_83 {dimension_numbers = #tpu.dot_dimension_numbers<[1], [1], [0], [0], [0, 0, 1, 0], [], []>} : vector<32x16xbf16>, vector<32x16xbf16>, vector<32x32xf32> -> vector<32x32xf32>
    "tpu.trace_stop"() : () -> ()
    %cst_84 = arith.constant 2.500000e-01 : f32
    %268 = vector.broadcast %cst_84 : f32 to vector<32x32xf32>
    %269 = arith.mulf %267, %268 : vector<32x32xf32>
    %270 = arith.addf %269, %209 : vector<32x32xf32>
    %cst_85 = arith.constant dense<0xFF800000> : vector<32xf32>
    %271 = vector.multi_reduction <maximumf>, %270, %cst_85 [1] : vector<32x32xf32> to vector<32xf32>
    %272 = vector.shape_cast %271 : vector<32xf32> to vector<32x1xf32>
    %273 = vector.broadcast %272 : vector<32x1xf32> to vector<32x32xf32>
    %274 = arith.subf %270, %273 : vector<32x32xf32>
    %275 = math.exp %274 : vector<32x32xf32>
    %cst_86 = arith.constant dense<0.000000e+00> : vector<32xf32>
    %276 = vector.multi_reduction <add>, %275, %cst_86 [1] : vector<32x32xf32> to vector<32xf32>
    %277 = vector.shape_cast %276 : vector<32xf32> to vector<32x1xf32>
    %278 = tpu.reciprocal %277 {approx = true} : vector<32x1xf32> -> vector<32x1xf32>
    %279 = vector.broadcast %278 : vector<32x1xf32> to vector<32x32xf32>
    %280 = arith.mulf %275, %279 : vector<32x32xf32>
    %281 = vector.broadcast %16 : vector<1x128xf32> to vector<32x128xf32>
    %282 = arith.mulf %239, %281 : vector<32x128xf32>
    %283 = arith.truncf %280 : vector<32x32xf32> to vector<32x32xbf16>
    %284 = arith.truncf %282 : vector<32x128xf32> to vector<32x128xbf16>
    %cst_87 = arith.constant dense<0.000000e+00> : vector<32x128xf32>
    %285 = tpu.matmul %283, %284, %cst_87 {dimension_numbers = #tpu.dot_dimension_numbers<[1], [0], [0], [1], [0, 0, 1, 1], [], []>} : vector<32x32xbf16>, vector<32x128xbf16>, vector<32x128xf32> -> vector<32x128xf32>
    %286 = arith.addf %262, %285 : vector<32x128xf32>
    %c1024 = arith.constant 1024 : index
    %c0_88 = arith.constant 0 : index
    %287 = vector.load %arg1[%c1024, %c0_88] : memref<1536x128xbf16, #tpu.memory_space<vmem>>, vector<128x128xbf16>
    %288 = arith.truncf %286 : vector<32x128xf32> to vector<32x128xbf16>
    %cst_89 = arith.constant dense<0.000000e+00> : vector<32x128xf32>
    %289 = tpu.matmul %288, %287, %cst_89 {dimension_numbers = #tpu.dot_dimension_numbers<[1], [0], [0], [1], [0, 0, 1, 1], [], []>} : vector<32x128xbf16>, vector<128x128xbf16>, vector<32x128xf32> -> vector<32x128xf32>
    %290 = arith.addf %207, %289 : vector<32x128xf32>
    %c15 = arith.constant 15 : index
    %c0_90 = arith.constant 0 : index
    %291 = vector.load %arg2[%c15, %c0_90] : memref<96x128xf32, #tpu.memory_space<vmem>>, vector<1x128xf32>
    %292 = vector.broadcast %291 : vector<1x128xf32> to vector<32x128xf32>
    %293 = arith.addf %290, %292 : vector<32x128xf32>
    %c16 = arith.constant 16 : index
    %c0_91 = arith.constant 0 : index
    %294 = vector.load %arg2[%c16, %c0_91] : memref<96x128xf32, #tpu.memory_space<vmem>>, vector<1x128xf32>
    %c17 = arith.constant 17 : index
    %c0_92 = arith.constant 0 : index
    %295 = vector.load %arg2[%c17, %c0_92] : memref<96x128xf32, #tpu.memory_space<vmem>>, vector<1x128xf32>
    %cst_93 = arith.constant dense<0.000000e+00> : vector<32xf32>
    %296 = vector.multi_reduction <add>, %293, %cst_93 [1] : vector<32x128xf32> to vector<32xf32>
    %297 = vector.shape_cast %296 : vector<32xf32> to vector<32x1xf32>
    %cst_94 = arith.constant 3.125000e-02 : f32
    %298 = vector.broadcast %cst_94 : f32 to vector<32x1xf32>
    %299 = arith.mulf %297, %298 : vector<32x1xf32>
    %300 = arith.mulf %293, %293 : vector<32x128xf32>
    %cst_95 = arith.constant dense<0.000000e+00> : vector<32xf32>
    %301 = vector.multi_reduction <add>, %300, %cst_95 [1] : vector<32x128xf32> to vector<32xf32>
    %302 = vector.shape_cast %301 : vector<32xf32> to vector<32x1xf32>
    %cst_96 = arith.constant 3.125000e-02 : f32
    %303 = vector.broadcast %cst_96 : f32 to vector<32x1xf32>
    %304 = arith.mulf %302, %303 : vector<32x1xf32>
    %305 = arith.mulf %299, %299 : vector<32x1xf32>
    %306 = arith.subf %304, %305 : vector<32x1xf32>
    %307 = vector.broadcast %299 : vector<32x1xf32> to vector<32x128xf32>
    %308 = arith.subf %293, %307 : vector<32x128xf32>
    %cst_97 = arith.constant 9.99999974E-6 : f32
    %309 = vector.broadcast %cst_97 : f32 to vector<32x1xf32>
    %310 = arith.addf %306, %309 : vector<32x1xf32>
    %311 = math.rsqrt %310 : vector<32x1xf32>
    %312 = vector.broadcast %311 : vector<32x1xf32> to vector<32x128xf32>
    %313 = arith.mulf %308, %312 : vector<32x128xf32>
    %314 = vector.broadcast %294 : vector<1x128xf32> to vector<32x128xf32>
    %315 = arith.mulf %313, %314 : vector<32x128xf32>
    %316 = vector.broadcast %295 : vector<1x128xf32> to vector<32x128xf32>
    %317 = arith.addf %315, %316 : vector<32x128xf32>
    %c1152 = arith.constant 1152 : index
    %c0_98 = arith.constant 0 : index
    %318 = vector.load %arg1[%c1152, %c0_98] : memref<1536x128xbf16, #tpu.memory_space<vmem>>, vector<128x128xbf16>
    %319 = arith.truncf %317 : vector<32x128xf32> to vector<32x128xbf16>
    %cst_99 = arith.constant dense<0.000000e+00> : vector<32x128xf32>
    %320 = tpu.matmul %319, %318, %cst_99 {dimension_numbers = #tpu.dot_dimension_numbers<[1], [0], [0], [1], [0, 0, 1, 1], [], []>} : vector<32x128xbf16>, vector<128x128xbf16>, vector<32x128xf32> -> vector<32x128xf32>
    %c18 = arith.constant 18 : index
    %c0_100 = arith.constant 0 : index
    %321 = vector.load %arg2[%c18, %c0_100] : memref<96x128xf32, #tpu.memory_space<vmem>>, vector<1x128xf32>
    %322 = vector.broadcast %321 : vector<1x128xf32> to vector<32x128xf32>
    %323 = arith.addf %320, %322 : vector<32x128xf32>
    %cst_101 = arith.constant 1.702000e+00 : f32
    %324 = vector.broadcast %cst_101 : f32 to vector<32x128xf32>
    %325 = arith.mulf %324, %323 : vector<32x128xf32>
    %326 = arith.negf %325 : vector<32x128xf32>
    %327 = math.exp %326 : vector<32x128xf32>
    %cst_102 = arith.constant 1.000000e+00 : f32
    %328 = vector.broadcast %cst_102 : f32 to vector<32x128xf32>
    %329 = arith.addf %328, %327 : vector<32x128xf32>
    %330 = arith.divf %328, %329 : vector<32x128xf32>
    %331 = arith.mulf %323, %330 : vector<32x128xf32>
    %c1280 = arith.constant 1280 : index
    %c0_103 = arith.constant 0 : index
    %332 = vector.load %arg1[%c1280, %c0_103] : memref<1536x128xbf16, #tpu.memory_space<vmem>>, vector<128x128xbf16>
    %333 = arith.truncf %331 : vector<32x128xf32> to vector<32x128xbf16>
    %cst_104 = arith.constant dense<0.000000e+00> : vector<32x128xf32>
    %334 = tpu.matmul %333, %332, %cst_104 {dimension_numbers = #tpu.dot_dimension_numbers<[1], [0], [0], [1], [0, 0, 1, 1], [], []>} : vector<32x128xbf16>, vector<128x128xbf16>, vector<32x128xf32> -> vector<32x128xf32>
    %335 = arith.addf %293, %334 : vector<32x128xf32>
    %c19 = arith.constant 19 : index
    %c0_105 = arith.constant 0 : index
    %336 = vector.load %arg2[%c19, %c0_105] : memref<96x128xf32, #tpu.memory_space<vmem>>, vector<1x128xf32>
    %337 = vector.broadcast %336 : vector<1x128xf32> to vector<32x128xf32>
    %338 = arith.addf %335, %337 : vector<32x128xf32>
    %c20 = arith.constant 20 : index
    %c0_106 = arith.constant 0 : index
    %339 = vector.load %arg2[%c20, %c0_106] : memref<96x128xf32, #tpu.memory_space<vmem>>, vector<1x128xf32>
    %c21 = arith.constant 21 : index
    %c0_107 = arith.constant 0 : index
    %340 = vector.load %arg2[%c21, %c0_107] : memref<96x128xf32, #tpu.memory_space<vmem>>, vector<1x128xf32>
    %cst_108 = arith.constant dense<0.000000e+00> : vector<32xf32>
    %341 = vector.multi_reduction <add>, %338, %cst_108 [1] : vector<32x128xf32> to vector<32xf32>
    %342 = vector.shape_cast %341 : vector<32xf32> to vector<32x1xf32>
    %cst_109 = arith.constant 3.125000e-02 : f32
    %343 = vector.broadcast %cst_109 : f32 to vector<32x1xf32>
    %344 = arith.mulf %342, %343 : vector<32x1xf32>
    %345 = arith.mulf %338, %338 : vector<32x128xf32>
    %cst_110 = arith.constant dense<0.000000e+00> : vector<32xf32>
    %346 = vector.multi_reduction <add>, %345, %cst_110 [1] : vector<32x128xf32> to vector<32xf32>
    %347 = vector.shape_cast %346 : vector<32xf32> to vector<32x1xf32>
    %cst_111 = arith.constant 3.125000e-02 : f32
    %348 = vector.broadcast %cst_111 : f32 to vector<32x1xf32>
    %349 = arith.mulf %347, %348 : vector<32x1xf32>
    %350 = arith.mulf %344, %344 : vector<32x1xf32>
    %351 = arith.subf %349, %350 : vector<32x1xf32>
    %352 = vector.broadcast %344 : vector<32x1xf32> to vector<32x128xf32>
    %353 = arith.subf %338, %352 : vector<32x128xf32>
    %cst_112 = arith.constant 9.99999974E-6 : f32
    %354 = vector.broadcast %cst_112 : f32 to vector<32x1xf32>
    %355 = arith.addf %351, %354 : vector<32x1xf32>
    %356 = math.rsqrt %355 : vector<32x1xf32>
    %357 = vector.broadcast %356 : vector<32x1xf32> to vector<32x128xf32>
    %358 = arith.mulf %353, %357 : vector<32x128xf32>
    %359 = vector.broadcast %339 : vector<1x128xf32> to vector<32x128xf32>
    %360 = arith.mulf %358, %359 : vector<32x128xf32>
    %361 = vector.broadcast %340 : vector<1x128xf32> to vector<32x128xf32>
    %362 = arith.addf %360, %361 : vector<32x128xf32>
    %c88 = arith.constant 88 : index
    %c0_113 = arith.constant 0 : index
    %363 = vector.load %arg2[%c88, %c0_113] : memref<96x128xf32, #tpu.memory_space<vmem>>, vector<4x128xf32>
    %364 = vector.extract_strided_slice %363 {offsets = [0, 0], sizes = [4, 32], strides = [1, 1]} : vector<4x128xf32> to vector<4x32xf32>
    %365 = arith.truncf %364 : vector<4x32xf32> to vector<4x32xbf16>
    %366 = arith.truncf %362 : vector<32x128xf32> to vector<32x128xbf16>
    %cst_114 = arith.constant dense<0.000000e+00> : vector<4x128xf32>
    %367 = tpu.matmul %365, %366, %cst_114 {dimension_numbers = #tpu.dot_dimension_numbers<[1], [0], [0], [1], [0, 0, 1, 1], [], []>} : vector<4x32xbf16>, vector<32x128xbf16>, vector<4x128xf32> -> vector<4x128xf32>
    %c1408 = arith.constant 1408 : index
    %c0_115 = arith.constant 0 : index
    %368 = vector.load %arg1[%c1408, %c0_115] : memref<1536x128xbf16, #tpu.memory_space<vmem>>, vector<128x128xbf16>
    %369 = arith.truncf %367 : vector<4x128xf32> to vector<4x128xbf16>
    %cst_116 = arith.constant dense<0.000000e+00> : vector<4x128xf32>
    %370 = tpu.matmul %369, %368, %cst_116 {dimension_numbers = #tpu.dot_dimension_numbers<[1], [0], [0], [1], [0, 0, 1, 1], [], []>} : vector<4x128xbf16>, vector<128x128xbf16>, vector<4x128xf32> -> vector<4x128xf32>
    %371 = arith.mulf %206, %206 : vector<2x128xf32>
    %cst_117 = arith.constant dense<0.000000e+00> : vector<2xf32>
    %372 = vector.multi_reduction <add>, %371, %cst_117 [1] : vector<2x128xf32> to vector<2xf32>
    %373 = vector.shape_cast %372 : vector<2xf32> to vector<2x1xf32>
    %cst_118 = arith.constant 1.000000e-24 : f32
    %374 = vector.broadcast %cst_118 : f32 to vector<2x1xf32>
    %375 = arith.addf %373, %374 : vector<2x1xf32>
    %376 = math.rsqrt %375 : vector<2x1xf32>
    %377 = vector.broadcast %376 : vector<2x1xf32> to vector<2x128xf32>
    %378 = arith.mulf %206, %377 : vector<2x128xf32>
    %379 = arith.mulf %370, %370 : vector<4x128xf32>
    %cst_119 = arith.constant dense<0.000000e+00> : vector<4xf32>
    %380 = vector.multi_reduction <add>, %379, %cst_119 [1] : vector<4x128xf32> to vector<4xf32>
    %381 = vector.shape_cast %380 : vector<4xf32> to vector<4x1xf32>
    %cst_120 = arith.constant 1.000000e-24 : f32
    %382 = vector.broadcast %cst_120 : f32 to vector<4x1xf32>
    %383 = arith.addf %381, %382 : vector<4x1xf32>
    %384 = math.rsqrt %383 : vector<4x1xf32>
    %385 = vector.broadcast %384 : vector<4x1xf32> to vector<4x128xf32>
    %386 = arith.mulf %370, %385 : vector<4x128xf32>
    %c22 = arith.constant 22 : index
    %c0_121 = arith.constant 0 : index
    %387 = vector.load %arg2[%c22, %c0_121] : memref<96x128xf32, #tpu.memory_space<vmem>>, vector<1x128xf32>
    %388 = vector.extract_strided_slice %387 {offsets = [0, 0], sizes = [1, 1], strides = [1, 1]} : vector<1x128xf32> to vector<1x1xf32>
    %389 = math.exp %388 : vector<1x1xf32>
    "tpu.trace_start"() <{level = 10 : i32, message = "be,ce->bc"}> : () -> ()
    %cst_122 = arith.constant dense<0.000000e+00> : vector<2x4xf32>
    %390 = tpu.matmul %378, %386, %cst_122 {dimension_numbers = #tpu.dot_dimension_numbers<[1], [1], [0], [0], [0, 0, 1, 0], [], []>} : vector<2x128xf32>, vector<4x128xf32>, vector<2x4xf32> -> vector<2x4xf32>
    "tpu.trace_stop"() : () -> ()
    %391 = vector.broadcast %389 : vector<1x1xf32> to vector<2x4xf32>
    %392 = arith.mulf %391, %390 : vector<2x4xf32>
    %c0_123 = arith.constant 0 : index
    %c0_124 = arith.constant 0 : index
    %393 = vector.load %arg5[%c0_123, %c0_124] : memref<2x4xf32, #tpu.memory_space<vmem>>, vector<2x4xf32>
    tpu.vector_store %arg5[%c0_123, %c0_124], %392 {strides = array<i32>} : memref<2x4xf32, #tpu.memory_space<vmem>>, vector<2x4xf32>,
    %394 = vector.extract_strided_slice %386 {offsets = [0, 0], sizes = [4, 32], strides = [1, 1]} : vector<4x128xf32> to vector<4x32xf32>
    %c0_125 = arith.constant 0 : index
    %c0_126 = arith.constant 0 : index
    %395 = vector.load %arg6[%c0_125, %c0_126] : memref<4x32xf32, #tpu.memory_space<vmem>>, vector<4x32xf32>
    tpu.vector_store %arg6[%c0_125, %c0_126], %394 {strides = array<i32>} : memref<4x32xf32, #tpu.memory_space<vmem>>, vector<4x32xf32>,
    return
  }
  func.func @transform_0(%arg0: i32) -> (i32, i32) {
    %c0_i32 = arith.constant 0 : i32
    %c0_i32_0 = arith.constant 0 : i32
    %c0_i32_1 = arith.constant 0 : i32
    return %c0_i32, %c0_i32_0 : i32, i32
  }
  func.func @transform_1(%arg0: i32) -> (i32, i32) {
    %c0_i32 = arith.constant 0 : i32
    %c0_i32_0 = arith.constant 0 : i32
    %c0_i32_1 = arith.constant 0 : i32
    return %c0_i32, %c0_i32_0 : i32, i32
  }
  func.func @transform_2(%arg0: i32) -> (i32, i32) {
    %c0_i32 = arith.constant 0 : i32
    %c0_i32_0 = arith.constant 0 : i32
    %c0_i32_1 = arith.constant 0 : i32
    return %c0_i32, %c0_i32_0 : i32, i32
  }
  func.func @transform_3(%arg0: i32) -> (i32, i32) {
    %c0_i32 = arith.constant 0 : i32
    %c0_i32_0 = arith.constant 0 : i32
    %c0_i32_1 = arith.constant 0 : i32
    return %c0_i32, %c0_i32_0 : i32, i32
  }
  func.func @transform_4(%arg0: i32) -> (i32, i32) {
    %c0_i32 = arith.constant 0 : i32
    %c0_i32_0 = arith.constant 0 : i32
    %c0_i32_1 = arith.constant 0 : i32
    return %c0_i32, %c0_i32_0 : i32, i32
  }
  func.func @transform_5(%arg0: i32) -> (i32, i32) {
    %c0_i32 = arith.constant 0 : i32
    %c0_i32_0 = arith.constant 0 : i32
    %c0_i32_1 = arith.constant 0 : i32
    return %c0_i32, %c0_i32_0 : i32, i32
  }
}

</mosaic_0001>

<llo_original>
// kernel: clip_ttt_forward.1
$region0: #{clip_ttt_forward.1}
  #allocation0 [shape = 'u32[]', space=smem, size = 0x4, offset = 0x4, fixed_abs, tag = 'smem constant byte address 0x4 - core index']
  #allocation1 [shape = 'u32[144,128]{1,0:T(1,128)}', space=vmem, size = 0x12000, scoped, tag = 'internal scratch']
  %s0 = inlined_call_operand.vmem [shape: bf16[1536,128], index: 0, kind: input, shape index: {}]
  %s1 = inlined_call_operand.hbm [shape: f32[96,128], index: 1, kind: input, shape index: {}]
  %s2 = inlined_call_operand.vmem [shape: bf16[10,256], index: 2, kind: input, shape index: {}]
  %s3 = inlined_call_operand.vmem [shape: f32[32,128], index: 3, kind: input, shape index: {}]
  %s4 = inlined_call_operand.hbm [shape: f32[2,4], index: 4, kind: output, shape index: {0}]
  %s5 = inlined_call_operand.hbm [shape: f32[4,32], index: 5, kind: output, shape index: {1}]
  %6 = xla_tuple %s4, %s5
  %s7 = sld [smem:[#allocation0]]
  $region38: #{clip_ttt_forward.1} parent=0
    _
  %s9 = ssub.s32 1, %s7
  %s10 = scalar_select 0, %s9, %s7
  $region1: #{clip_ttt_forward.1} parent=0
    #allocation2 [shape = 'u8[49152]{0}', space=vmem, size = 0xc000, scoped, tag = 'input window, operand 1, single buffered']
    #allocation3 [shape = 's32[1]{0}', space=sflag, size = 0x4, scoped, tag = 'scoped memory for clip_ttt_forward.1']
    #allocation4 [shape = 's32[1]{0}', space=sflag, size = 0x4, scoped, tag = 'scoped memory for clip_ttt_forward.1']
    #allocation5 [shape = 'u8[1024]{0}', space=vmem, size = 0x400, scoped, tag = 'output window, operand 0, single buffered']
    #allocation6 [shape = 'u8[2048]{0}', space=vmem, size = 0x800, scoped, tag = 'output window, operand 1, single buffered']
    #allocation7 [shape = 's32[1]{0}', space=sflag, size = 0x4, scoped, tag = 'scoped memory for clip_ttt_forward.1']
    %11 = vsyncpa [#allocation3], 0
    %12 = vsyncpa [#allocation4], 0
    %13 = vsyncpa [#allocation7], 0
    // Predicated region
    $region2: #{clip_ttt_forward.1} parent=1 // pred_check
      _
    $region3: #{clip_ttt_forward.1} parent=1 // pred_check_branch
      %15 = sbr.rel (0) target = $region5
    $region4: #{clip_ttt_forward.1} parent=1 // pred_region
      _
    $region5: #{clip_ttt_forward.1} parent=1 // pred_fallthru
      _
    // Predicated region
    $region6: #{clip_ttt_forward.1} parent=1 // pred_check
      _
    $region7: #{clip_ttt_forward.1} parent=1 // pred_check_branch
      %17 = sbr.rel (0) target = $region9
    $region8: #{clip_ttt_forward.1} parent=1 // pred_region
      %s19 = ssub.s32 1536, 1536
      %20 = vsyncadd [#allocation3], %s19
      %s21 = sshll.u32 [#allocation2], 4
      %s22 = int_to_ptr.vmem [resolvable:$true] %s21
      %27 = dma.hbm_to_vmem [thread:$0]  %s1, 1536, %s22, [#allocation3], 128, 128, 8
    $region9: #{clip_ttt_forward.1} parent=1 // pred_fallthru
      _
    // Predicated region
    $region10: #{clip_ttt_forward.1} parent=1 // pred_check
      _
    $region11: #{clip_ttt_forward.1} parent=1 // pred_check_branch
      %29 = sbr.rel (0) target = $region13
    $region12: #{clip_ttt_forward.1} parent=1 // pred_region
      _
    $region13: #{clip_ttt_forward.1} parent=1 // pred_fallthru
      _
    // Predicated region
    $region14: #{clip_ttt_forward.1} parent=1 // pred_check
      _
    $region15: #{clip_ttt_forward.1} parent=1 // pred_check_branch
      %31 = sbr.rel (0) target = $region17
    $region16: #{clip_ttt_forward.1} parent=1 // pred_region
      _
    $region17: #{clip_ttt_forward.1} parent=1 // pred_fallthru
      _
    // Predicated region
    $region18: #{clip_ttt_forward.1} parent=1 // pred_check
      _
    $region19: #{clip_ttt_forward.1} parent=1 // pred_check_branch
      %33 = sbr.rel (0) target = $region21
    $region20: #{clip_ttt_forward.1} parent=1 // pred_region
      %34 = dma.done [#allocation3], 1536
    $region21: #{clip_ttt_forward.1} parent=1 // pred_fallthru
      _
    %v36 = vlaneseq
    %v37 = vand.u32 %v36, 127
    %vm38 = vcmp.ge.s32.totalorder %v37, 64
    %vm39 = vcmp.lt.s32.totalorder %v37, 80
    %vm40 = vmand %vm38, %vm39
    %v41 = vsel %vm40, 1.0, 0.0
    %vm42 = vcmp.ge.s32.totalorder %v37, 80
    %vm43 = vcmp.lt.s32.totalorder %v37, 96
    %vm44 = vmand %vm42, %vm43
    %v45 = vsel %vm44, 1.0, 0.0
    %v46 = vld [vmem:[%s2] sm:$0xff]
    %v47 = vld [vmem:[%s2 + $0x8] sm:$0x11]
    %v48 = vld [vmem:[%s0] sm:$0xf]
    %v49 = vld [vmem:[%s0 + $0x4] sm:$0xf]
    %v50 = vld [vmem:[%s0 + $0x8] sm:$0xf]
    %v51 = vld [vmem:[%s0 + $0xc] sm:$0xf]
    %v52 = vld [vmem:[%s0 + $0x10] sm:$0xf]
    %v53 = vld [vmem:[%s0 + $0x14] sm:$0xf]
    %v54 = vld [vmem:[%s0 + $0x18] sm:$0xf]
    %v55 = vld [vmem:[%s0 + $0x1c] sm:$0xf]
    %v56 = vld [vmem:[%s0 + $0x20] sm:$0xf]
    %v57 = vld [vmem:[%s0 + $0x24] sm:$0xf]
    %v58 = vld [vmem:[%s0 + $0x28] sm:$0xf]
    %v59 = vld [vmem:[%s0 + $0x2c] sm:$0xf]
    %v60 = vld [vmem:[%s0 + $0x30] sm:$0xf]
    %v61 = vld [vmem:[%s0 + $0x34] sm:$0xf]
    %v62 = vld [vmem:[%s0 + $0x38] sm:$0xf]
    %v63 = vld [vmem:[%s0 + $0x3c] sm:$0xf]
    %v64 = vld [vmem:[%s0 + $0x40] sm:$0xf]
    %v65 = vld [vmem:[%s0 + $0x44] sm:$0xf]
    %v66 = vld [vmem:[%s0 + $0x48] sm:$0xf]
    %v67 = vld [vmem:[%s0 + $0x4c] sm:$0xf]
    %v68 = vld [vmem:[%s0 + $0x50] sm:$0xf]
    %v69 = vld [vmem:[%s0 + $0x54] sm:$0xf]
    %v70 = vld [vmem:[%s0 + $0x58] sm:$0xf]
    %v71 = vld [vmem:[%s0 + $0x5c] sm:$0xf]
    %v72 = vld [vmem:[%s0 + $0x60] sm:$0xf]
    %v73 = vld [vmem:[%s0 + $0x64] sm:$0xf]
    %v74 = vld [vmem:[%s0 + $0x68] sm:$0xf]
    %v75 = vld [vmem:[%s0 + $0x6c] sm:$0xf]
    %v76 = vld [vmem:[%s0 + $0x70] sm:$0xf]
    %v77 = vld [vmem:[%s0 + $0x74] sm:$0xf]
    %v78 = vld [vmem:[%s0 + $0x78] sm:$0xf]
    %v79 = vld [vmem:[%s0 + $0x7c] sm:$0xf]
    %v80 = vld [vmem:[#allocation2 + $0x18] sm:$0xff]
    %v81 = vld [vmem:[#allocation2 + $0x20] sm:$0x3]
    %v84 = vunpack.c.l.b16 %v46
    %v85 = vunpack.c.h.b16 %v46
    %v86 = vunpack.c.l.b16 %v47
    %v87 = vunpack.c.h.b16 %v47
    %v88 = vpack.c.b16 %v86, %v84
    %v89 = vpack.c.b16 %v87, %v85
    %v124 = vunpack.c.l.b16 %v48
    %v125 = vunpack.c.l.b16 %v49
    %v126 = vunpack.c.l.b16 %v50
    %v127 = vunpack.c.l.b16 %v51
    %v128 = vunpack.c.l.b16 %v52
    %v129 = vunpack.c.l.b16 %v53
    %v130 = vunpack.c.l.b16 %v54
    %v131 = vunpack.c.l.b16 %v55
    %v132 = vunpack.c.l.b16 %v56
    %v133 = vunpack.c.l.b16 %v57
    %v134 = vunpack.c.l.b16 %v58
    %v135 = vunpack.c.l.b16 %v59
    %v136 = vunpack.c.l.b16 %v60
    %v137 = vunpack.c.l.b16 %v61
    %v138 = vunpack.c.l.b16 %v62
    %v139 = vunpack.c.l.b16 %v63
    %v140 = vunpack.c.l.b16 %v64
    %v141 = vunpack.c.l.b16 %v65
    %v142 = vunpack.c.l.b16 %v66
    %v143 = vunpack.c.l.b16 %v67
    %v144 = vunpack.c.l.b16 %v68
    %v145 = vunpack.c.l.b16 %v69
    %v146 = vunpack.c.l.b16 %v70
    %v147 = vunpack.c.l.b16 %v71
    %v148 = vunpack.c.l.b16 %v72
    %v149 = vunpack.c.l.b16 %v73
    %v150 = vunpack.c.l.b16 %v74
    %v151 = vunpack.c.l.b16 %v75
    %v152 = vunpack.c.l.b16 %v76
    %v153 = vunpack.c.l.b16 %v77
    %v154 = vunpack.c.l.b16 %v78
    %v155 = vunpack.c.l.b16 %v79
    %v156 = vpack.c.b16 %v125, %v124
    %v157 = vpack.c.b16 %v127, %v126
    %v158 = vpack.c.b16 %v129, %v128
    %v159 = vpack.c.b16 %v131, %v130
    %v160 = vpack.c.b16 %v133, %v132
    %v161 = vpack.c.b16 %v135, %v134
    %v162 = vpack.c.b16 %v137, %v136
    %v163 = vpack.c.b16 %v139, %v138
    %v164 = vpack.c.b16 %v141, %v140
    %v165 = vpack.c.b16 %v143, %v142
    %v166 = vpack.c.b16 %v145, %v144
    %v167 = vpack.c.b16 %v147, %v146
    %v168 = vpack.c.b16 %v149, %v148
    %v169 = vpack.c.b16 %v151, %v150
    %v170 = vpack.c.b16 %v153, %v152
    %v171 = vpack.c.b16 %v155, %v154
    %188 = vmatprep.subr.bf16.mxu0 0
    %189 = vmatpush1.bf16.msra.mxu0 %v156
    %190 = vmatprep.subr.bf16.mxu0 0
    %191 = vmatpush1.bf16.msra.mxu0 %v157
    %192 = vmatprep.subr.bf16.mxu0 0
    %193 = vmatpush1.bf16.msra.mxu0 %v158
    %194 = vmatprep.subr.bf16.mxu0 0
    %195 = vmatpush1.bf16.msra.mxu0 %v159
    %196 = vmatprep.subr.bf16.mxu0 0
    %197 = vmatpush1.bf16.msra.mxu0 %v160
    %198 = vmatprep.subr.bf16.mxu0 0
    %199 = vmatpush1.bf16.msra.mxu0 %v161
    %200 = vmatprep.subr.bf16.mxu0 0
    %201 = vmatpush1.bf16.msra.mxu0 %v162
    %202 = vmatprep.subr.bf16.mxu0 0
    %203 = vmatpush1.bf16.msra.mxu0 %v163
    %204 = vmatprep.subr.bf16.mxu0 0
    %205 = vmatpush1.bf16.msra.mxu0 %v164
    %206 = vmatprep.subr.bf16.mxu0 0
    %207 = vmatpush1.bf16.msra.mxu0 %v165
    %208 = vmatprep.subr.bf16.mxu0 0
    %209 = vmatpush1.bf16.msra.mxu0 %v166
    %210 = vmatprep.subr.bf16.mxu0 0
    %211 = vmatpush1.bf16.msra.mxu0 %v167
    %212 = vmatprep.subr.bf16.mxu0 0
    %213 = vmatpush1.bf16.msra.mxu0 %v168
    %214 = vmatprep.subr.bf16.mxu0 0
    %215 = vmatpush1.bf16.msra.mxu0 %v169
    %216 = vmatprep.subr.bf16.mxu0 0
    %217 = vmatpush1.bf16.msra.mxu0 %v170
    %218 = vmatprep.subr.bf16.mxu0 0
    %219 = vmatpush1.bf16.msra.mxu0 %v171
    %220 = vmatprep.mubr.bf16.mxu0 %v89
    %221 = vmatmul.mubr.bf16.gmra.mrb[0].mxu0 %v88
    %v222 = vpop.f32.mrb[0].mxu0
    %v223 = vadd.f32 %v80, %v222
    %v224 = vpop.f32.mrb[0].mxu0
    %v225 = vpop.f32.mrb[0].mxu0
    %v226 = vadd.f32 %v81, %v225
    %v227 = vpop.f32.mrb[0].mxu0
    %228 = vdwg.mxu0
    %v229 = vld [vmem:[#allocation2] sm:$0x1]
    %v230 = vld [vmem:[#allocation2 + $0x1] sm:$0x1]
    %231 = vadd.xlane.f32.xlu0 %v223
    %v232 = vpop.xlane.xlu0 %231
    %vm233 = vcmask 1041408
    %v234 = vsel %vm233, %v226, 0.0
    %235 = vadd.xlane.f32.xlu0 %v234
    %v236 = vpop.xlane.xlu0 %235
    %v237 = vmul.f32 %v232, 0.03125
    %v238 = vmul.f32 %v236, 0.03125
    %v239 = vmul.f32 %v223, %v223
    %v240 = vmul.f32 %v226, %v226
    %241 = vadd.xlane.f32.xlu0 %v239
    %v242 = vpop.xlane.xlu0 %241
    %v243 = vsel %vm233, %v240, 0.0
    %244 = vadd.xlane.f32.xlu0 %v243
    %v245 = vpop.xlane.xlu0 %244
    %v246 = vmul.f32 %v242, 0.03125
    %v247 = vmul.f32 %v245, 0.03125
    %v248 = vmul.f32 %v237, %v237
    %v249 = vmul.f32 %v238, %v238
    %v250 = vsub.f32 %v246, %v248
    %v251 = vsub.f32 %v247, %v249
    %v252 = vsub.f32 %v223, %v237
    %v253 = vsub.f32 %v226, %v238
    %v254 = vadd.f32 %v250, 1e-05
    %v255 = vadd.f32 %v251, 1e-05
    %v256 = vrsqrt.pop %v254
    %v257 = vrsqrt.pop %v255
    %v258 = vmul.f32 %v252, %v256
    %v259 = vmul.f32 %v253, %v257
    %v260 = vlaneseq
    %v261 = vshrl.u32 %v260, 7
    %v262 = vsub.s32 0, %v261
    %v263 = vrot.slane %v229, %v262
    %v264 = vmul.f32 %v258, %v263
    %v265 = vmul.f32 %v259, %v263
    %v266 = vlaneseq
    %v267 = vshrl.u32 %v266, 7
    %v268 = vsub.s32 0, %v267
    %v269 = vrot.slane %v230, %v268
    %v270 = vadd.f32 %v264, %v269
    %v271 = vadd.f32 %v265, %v269
    %v272 = vld [vmem:[#allocation2 + $0x28] sm:$0xff]
    %v273 = vld [vmem:[#allocation2 + $0x30] sm:$0x3]
    %v274 = vld [vmem:[#allocation2 + $0x2] sm:$0x1]
    %v275 = vld [vmem:[#allocation2 + $0x3] sm:$0x1]
    %276 = vadd.xlane.f32.xlu0 %v270
    %v277 = vpop.xlane.xlu0 %276
    %v278 = vsel %vm233, %v271, 0.0
    %279 = vadd.xlane.f32.xlu0 %v278
    %v280 = vpop.xlane.xlu0 %279
    %v281 = vmul.f32 %v277, 0.03125
    %v282 = vmul.f32 %v280, 0.03125
    %v283 = vmul.f32 %v270, %v270
    %v284 = vmul.f32 %v271, %v271
    %285 = vadd.xlane.f32.xlu0 %v283
    %v286 = vpop.xlane.xlu0 %285
    %v287 = vsel %vm233, %v284, 0.0
    %288 = vadd.xlane.f32.xlu0 %v287
    %v289 = vpop.xlane.xlu0 %288
    %v290 = vmul.f32 %v286, 0.03125
    %v291 = vmul.f32 %v289, 0.03125
    %v292 = vmul.f32 %v281, %v281
    %v293 = vmul.f32 %v282, %v282
    %v294 = vsub.f32 %v290, %v292
    %v295 = vsub.f32 %v291, %v293
    %v296 = vsub.f32 %v270, %v281
    %v297 = vsub.f32 %v271, %v282
    %v298 = vadd.f32 %v294, 1e-05
    %v299 = vadd.f32 %v295, 1e-05
    %v300 = vrsqrt.pop %v298
    %v301 = vrsqrt.pop %v299
    %v302 = vmul.f32 %v296, %v300
    %v303 = vmul.f32 %v297, %v301
    %v304 = vlaneseq
    %v305 = vshrl.u32 %v304, 7
    %v306 = vsub.s32 0, %v305
    %v307 = vrot.slane %v274, %v306
    %v308 = vmul.f32 %v302, %v307
    %v309 = vmul.f32 %v303, %v307
    %v310 = vlaneseq
    %v311 = vshrl.u32 %v310, 7
    %v312 = vsub.s32 0, %v311
    %v313 = vrot.slane %v275, %v312
    %v314 = vadd.f32 %v308, %v313
    %v315 = vadd.f32 %v309, %v313
    %v316 = vld [vmem:[%s0 + $0x80] sm:$0xf]
    %v317 = vld [vmem:[%s0 + $0x84] sm:$0xf]
    %v318 = vld [vmem:[%s0 + $0x88] sm:$0xf]
    %v319 = vld [vmem:[%s0 + $0x8c] sm:$0xf]
    %v320 = vld [vmem:[%s0 + $0x90] sm:$0xf]
    %v321 = vld [vmem:[%s0 + $0x94] sm:$0xf]
    %v322 = vld [vmem:[%s0 + $0x98] sm:$0xf]
    %v323 = vld [vmem:[%s0 + $0x9c] sm:$0xf]
    %v324 = vld [vmem:[%s0 + $0xa0] sm:$0xf]
    %v325 = vld [vmem:[%s0 + $0xa4] sm:$0xf]
    %v326 = vld [vmem:[%s0 + $0xa8] sm:$0xf]
    %v327 = vld [vmem:[%s0 + $0xac] sm:$0xf]
    %v328 = vld [vmem:[%s0 + $0xb0] sm:$0xf]
    %v329 = vld [vmem:[%s0 + $0xb4] sm:$0xf]
    %v330 = vld [vmem:[%s0 + $0xb8] sm:$0xf]
    %v331 = vld [vmem:[%s0 + $0xbc] sm:$0xf]
    %v332 = vpack.c.bf16 %v315, %v314
    %v333 = vld [vmem:[#allocation2 + $0x4] sm:$0x1]
    %v334 = vlaneseq
    %v335 = vshrl.u32 %v334, 7
    %v336 = vsub.s32 0, %v335
    %v337 = vrot.slane %v333, %v336
    %v354 = vunpack.c.l.b16 %v316
    %v355 = vunpack.c.l.b16 %v317
    %v356 = vunpack.c.l.b16 %v318
    %v357 = vunpack.c.l.b16 %v319
    %v358 = vunpack.c.l.b16 %v320
    %v359 = vunpack.c.l.b16 %v321
    %v360 = vunpack.c.l.b16 %v322
    %v361 = vunpack.c.l.b16 %v323
    %v362 = vunpack.c.l.b16 %v324
    %v363 = vunpack.c.l.b16 %v325
    %v364 = vunpack.c.l.b16 %v326
    %v365 = vunpack.c.l.b16 %v327
    %v366 = vunpack.c.l.b16 %v328
    %v367 = vunpack.c.l.b16 %v329
    %v368 = vunpack.c.l.b16 %v330
    %v369 = vunpack.c.l.b16 %v331
    %v370 = vpack.c.b16 %v355, %v354
    %v371 = vpack.c.b16 %v357, %v356
    %v372 = vpack.c.b16 %v359, %v358
    %v373 = vpack.c.b16 %v361, %v360
    %v374 = vpack.c.b16 %v363, %v362
    %v375 = vpack.c.b16 %v365, %v364
    %v376 = vpack.c.b16 %v367, %v366
    %v377 = vpack.c.b16 %v369, %v368
    %386 = vmatprep.subr.bf16.mxu0 0
    %387 = vmatpush1.bf16.msra.mxu0 %v370
    %388 = vmatprep.subr.bf16.mxu0 0
    %389 = vmatpush1.bf16.msra.mxu0 %v371
    %390 = vmatprep.subr.bf16.mxu0 0
    %391 = vmatpush1.bf16.msra.mxu0 %v372
    %392 = vmatprep.subr.bf16.mxu0 0
    %393 = vmatpush1.bf16.msra.mxu0 %v373
    %394 = vmatprep.subr.bf16.mxu0 0
    %395 = vmatpush1.bf16.msra.mxu0 %v374
    %396 = vmatprep.subr.bf16.mxu0 0
    %397 = vmatpush1.bf16.msra.mxu0 %v375
    %398 = vmatprep.subr.bf16.mxu0 0
    %399 = vmatpush1.bf16.msra.mxu0 %v376
    %400 = vmatprep.subr.bf16.mxu0 0
    %401 = vmatpush1.bf16.msra.mxu0 %v377
    %402 = vmatprep.subr.bf16.mxu0 0
    %403 = vmatpush1.bf16.msra.mxu0 0
    %404 = vmatprep.subr.bf16.mxu0 0
    %405 = vmatpush1.bf16.msra.mxu0 0
    %406 = vmatprep.subr.bf16.mxu0 0
    %407 = vmatpush1.bf16.msra.mxu0 0
    %408 = vmatprep.subr.bf16.mxu0 0
    %409 = vmatpush1.bf16.msra.mxu0 0
    %410 = vmatprep.subr.bf16.mxu0 0
    %411 = vmatpush1.bf16.msra.mxu0 0
    %412 = vmatprep.subr.bf16.mxu0 0
    %413 = vmatpush1.bf16.msra.mxu0 0
    %414 = vmatprep.subr.bf16.mxu0 0
    %415 = vmatpush1.bf16.msra.mxu0 0
    %416 = vmatprep.subr.bf16.mxu0 0
    %417 = vmatpush1.bf16.msra.mxu0 0
    %418 = vmatprep.mubr.bf16.mxu0 0
    %419 = vmatmul.mubr.bf16.gmra.mrb[0].mxu0 %v332
    %v420 = vpop.f32.mrb[0].mxu0
    %v421 = vadd.f32 %v337, %v420
    %v422 = vpop.f32.mrb[0].mxu0
    %v423 = vpop.f32.mrb[0].mxu0
    %v424 = vadd.f32 %v337, %v423
    %v425 = vpop.f32.mrb[0].mxu0
    %426 = vdwg.mxu0
    %v427 = vpack.c.bf16 %v424, %v421
    %429 = vrot.lane.b32.xlu0 %v427, 96
    %v430 = vpop.permute.xlu0 %429
    %vm431 = vcmask 130048
    %v433 = vsel %vm431, %v427, 0
    %v436 = vsel %vm431, %v430, 0
    %438 = vmatprep.subr.bf16.mxu0 0
    %439 = vmatpush1.bf16.xpose.msra.mxu0 %v436
    %440 = vmatprep.subr.bf16.mxu0 0
    %441 = vmatpush1.bf16.xpose.msra.mxu0 0
    %442 = vmatprep.subr.bf16.mxu0 0
    %443 = vmatpush1.bf16.xpose.msra.mxu0 0
    %444 = vmatprep.subr.bf16.mxu0 0
    %445 = vmatpush1.bf16.xpose.msra.mxu0 0
    %446 = vmatprep.subr.bf16.mxu0 0
    %447 = vmatpush1.bf16.xpose.msra.mxu0 0
    %448 = vmatprep.subr.bf16.mxu0 0
    %449 = vmatpush1.bf16.xpose.msra.mxu0 0
    %450 = vmatprep.subr.bf16.mxu0 0
    %451 = vmatpush1.bf16.xpose.msra.mxu0 0
    %452 = vmatprep.subr.bf16.mxu0 0
    %453 = vmatpush1.bf16.xpose.msra.mxu0 0
    %454 = vmatprep.subr.bf16.mxu0 0
    %455 = vmatpush1.bf16.xpose.msra.mxu0 0
    %456 = vmatprep.subr.bf16.mxu0 0
    %457 = vmatpush1.bf16.xpose.msra.mxu0 0
    %458 = vmatprep.subr.bf16.mxu0 0
    %459 = vmatpush1.bf16.xpose.msra.mxu0 0
    %460 = vmatprep.subr.bf16.mxu0 0
    %461 = vmatpush1.bf16.xpose.msra.mxu0 0
    %462 = vmatprep.subr.bf16.mxu0 0
    %463 = vmatpush1.bf16.xpose.msra.mxu0 0
    %464 = vmatprep.subr.bf16.mxu0 0
    %465 = vmatpush1.bf16.xpose.msra.mxu0 0
    %466 = vmatprep.subr.bf16.mxu0 0
    %467 = vmatpush1.bf16.xpose.msra.mxu0 0
    %468 = vmatprep.subr.bf16.mxu0 0
    %469 = vmatpush1.bf16.xpose.msra.mxu0 0
    %470 = vmatprep.mubr.bf16.mxu0 0
    %471 = vmatmul.mubr.bf16.gmra.mrb[0].mxu0 %v433
    %v472 = vpop.f32.mrb[0].mxu0
    %v473 = vadd.f32 0.0, %v472
    %v474 = vpop.f32.mrb[0].mxu0
    %v475 = vpop.f32.mrb[0].mxu0
    %v476 = vadd.f32 0.0, %v475
    %v477 = vpop.f32.mrb[0].mxu0
    %478 = vdwg.mxu0
    %v479 = vmul.f32 %v473, 0.25
    %v480 = vmul.f32 %v476, 0.25
    %v481 = vadd.f32 %v479, %v272
    %v482 = vadd.f32 %v480, %v273
    %vm483 = vcmask 80896
    %v484 = vsel %vm483, %v481, -inf
    %485 = vmax.xlane.f32.xlu0 %v484
    %v486 = vpop.xlane.xlu0 %485
    %vm487 = vcmask 74752
    %v488 = vsel %vm487, %v482, -inf
    %489 = vmax.xlane.f32.xlu0 %v488
    %v490 = vpop.xlane.xlu0 %489
    %v491 = vsub.f32 %v481, %v486
    %v492 = vsub.f32 %v482, %v490
    %v493 = vmul.f32 %v491, 1.442695
    %v494 = vpow.pop %v493
    %v495 = vmul.f32 %v492, 1.442695
    %v496 = vpow.pop %v495
    %v497 = vsel %vm483, %v494, 0.0
    %498 = vadd.xlane.f32.xlu0 %v497
    %v499 = vpop.xlane.xlu0 %498
    %v500 = vsel %vm487, %v496, 0.0
    %501 = vadd.xlane.f32.xlu0 %v500
    %v502 = vpop.xlane.xlu0 %501
    %v503 = vrcp.pop %v499
    %v504 = vrcp.pop %v502
    %v505 = vmul.f32 %v494, %v503
    %v506 = vmul.f32 %v496, %v504
    %v507 = vmul.f32 %v421, %v41
    %v508 = vmul.f32 %v424, %v41
    %v509 = vpack.c.bf16 %v506, %v505
    %v510 = vpack.c.bf16 %v508, %v507
    %511 = vrot.lane.b32.xlu0 %v427, 112
    %v512 = vpop.permute.xlu0 %511
    %513 = vrot.lane.b32.xlu0 %v427, 80
    %v514 = vpop.permute.xlu0 %513
    %v516 = vsel %vm431, %v512, 0
    %v519 = vsel %vm431, %v514, 0
    %521 = vmatprep.subr.bf16.mxu0 0
    %522 = vmatpush1.bf16.xpose.msra.mxu0 %v519
    %523 = vmatprep.subr.bf16.mxu0 0
    %524 = vmatpush1.bf16.xpose.msra.mxu0 0
    %525 = vmatprep.subr.bf16.mxu0 0
    %526 = vmatpush1.bf16.xpose.msra.mxu0 0
    %527 = vmatprep.subr.bf16.mxu0 0
    %528 = vmatpush1.bf16.xpose.msra.mxu0 0
    %529 = vmatprep.subr.bf16.mxu0 0
    %530 = vmatpush1.bf16.xpose.msra.mxu0 0
    %531 = vmatprep.subr.bf16.mxu0 0
    %532 = vmatpush1.bf16.xpose.msra.mxu0 0
    %533 = vmatprep.subr.bf16.mxu0 0
    %534 = vmatpush1.bf16.xpose.msra.mxu0 0
    %535 = vmatprep.subr.bf16.mxu0 0
    %536 = vmatpush1.bf16.xpose.msra.mxu0 0
    %537 = vmatprep.subr.bf16.mxu0 0
    %538 = vmatpush1.bf16.xpose.msra.mxu0 0
    %539 = vmatprep.subr.bf16.mxu0 0
    %540 = vmatpush1.bf16.xpose.msra.mxu0 0
    %541 = vmatprep.subr.bf16.mxu0 0
    %542 = vmatpush1.bf16.xpose.msra.mxu0 0
    %543 = vmatprep.subr.bf16.mxu0 0
    %544 = vmatpush1.bf16.xpose.msra.mxu0 0
    %545 = vmatprep.subr.bf16.mxu0 0
    %546 = vmatpush1.bf16.xpose.msra.mxu0 0
    %547 = vmatprep.subr.bf16.mxu0 0
    %548 = vmatpush1.bf16.xpose.msra.mxu0 0
    %549 = vmatprep.subr.bf16.mxu0 0
    %550 = vmatpush1.bf16.xpose.msra.mxu0 0
    %551 = vmatprep.subr.bf16.mxu0 0
    %552 = vmatpush1.bf16.xpose.msra.mxu0 0
    %553 = vmatprep.mubr.bf16.mxu0 0
    %554 = vmatmul.mubr.bf16.gmra.mrb[0].mxu0 %v516
    %v555 = vpop.f32.mrb[0].mxu0
    %v556 = vadd.f32 0.0, %v555
    %v557 = vpop.f32.mrb[0].mxu0
    %v558 = vpop.f32.mrb[0].mxu0
    %v559 = vadd.f32 0.0, %v558
    %v560 = vpop.f32.mrb[0].mxu0
    %561 = vdwg.mxu0
    %v562 = vmul.f32 %v556, 0.25
    %v563 = vmul.f32 %v559, 0.25
    %v564 = vadd.f32 %v562, %v272
    %v565 = vadd.f32 %v563, %v273
    %v566 = vsel %vm483, %v564, -inf
    %567 = vmax.xlane.f32.xlu0 %v566
    %v568 = vpop.xlane.xlu0 %567
    %v569 = vsel %vm487, %v565, -inf
    %570 = vmax.xlane.f32.xlu0 %v569
    %v571 = vpop.xlane.xlu0 %570
    %v572 = vsub.f32 %v564, %v568
    %v573 = vsub.f32 %v565, %v571
    %v574 = vmul.f32 %v572, 1.442695
    %v575 = vpow.pop %v574
    %v576 = vmul.f32 %v573, 1.442695
    %v577 = vpow.pop %v576
    %v578 = vsel %vm483, %v575, 0.0
    %579 = vadd.xlane.f32.xlu0 %v578
    %v580 = vpop.xlane.xlu0 %579
    %v581 = vsel %vm487, %v577, 0.0
    %582 = vadd.xlane.f32.xlu0 %v581
    %v583 = vpop.xlane.xlu0 %582
    %v584 = vrcp.pop %v580
    %v585 = vrcp.pop %v583
    %v586 = vmul.f32 %v575, %v584
    %v587 = vmul.f32 %v577, %v585
    %v588 = vmul.f32 %v421, %v45
    %v589 = vmul.f32 %v424, %v45
    %v590 = vpack.c.bf16 %v587, %v586
    %v591 = vpack.c.bf16 %v589, %v588
    %v593 = vsel %vm483, %v590, 0
    %vm595 = vcmask 1044480
    %v597 = vsel %vm595, %v591, 0
    %599 = vmatprep.subr.bf16.mxu0 0
    %600 = vmatpush1.bf16.msra.mxu0 %v597
    %601 = vmatprep.subr.bf16.mxu0 0
    %602 = vmatpush1.bf16.msra.mxu0 0
    %603 = vmatprep.subr.bf16.mxu0 0
    %604 = vmatpush1.bf16.msra.mxu0 0
    %605 = vmatprep.subr.bf16.mxu0 0
    %606 = vmatpush1.bf16.msra.mxu0 0
    %607 = vmatprep.subr.bf16.mxu0 0
    %608 = vmatpush1.bf16.msra.mxu0 0
    %609 = vmatprep.subr.bf16.mxu0 0
    %610 = vmatpush1.bf16.msra.mxu0 0
    %611 = vmatprep.subr.bf16.mxu0 0
    %612 = vmatpush1.bf16.msra.mxu0 0
    %613 = vmatprep.subr.bf16.mxu0 0
    %614 = vmatpush1.bf16.msra.mxu0 0
    %615 = vmatprep.subr.bf16.mxu0 0
    %616 = vmatpush1.bf16.msra.mxu0 0
    %617 = vmatprep.subr.bf16.mxu0 0
    %618 = vmatpush1.bf16.msra.mxu0 0
    %619 = vmatprep.subr.bf16.mxu0 0
    %620 = vmatpush1.bf16.msra.mxu0 0
    %621 = vmatprep.subr.bf16.mxu0 0
    %622 = vmatpush1.bf16.msra.mxu0 0
    %623 = vmatprep.subr.bf16.mxu0 0
    %624 = vmatpush1.bf16.msra.mxu0 0
    %625 = vmatprep.subr.bf16.mxu0 0
    %626 = vmatpush1.bf16.msra.mxu0 0
    %627 = vmatprep.subr.bf16.mxu0 0
    %628 = vmatpush1.bf16.msra.mxu0 0
    %629 = vmatprep.subr.bf16.mxu0 0
    %630 = vmatpush1.bf16.msra.mxu0 0
    %631 = vmatprep.mubr.bf16.mxu0 0
    %632 = vmatmul.mubr.bf16.gmra.mrb[0].mxu0 %v593
    %v633 = vpop.f32.mrb[0].mxu0
    %v634 = vadd.f32 0.0, %v633
    %v635 = vpop.f32.mrb[0].mxu0
    %v636 = vpop.f32.mrb[0].mxu0
    %v637 = vadd.f32 0.0, %v636
    %v638 = vpop.f32.mrb[0].mxu0
    %639 = vdwg.mxu0
    %v641 = vsel %vm483, %v509, 0
    %v644 = vsel %vm595, %v510, 0
    %646 = vmatprep.subr.bf16.mxu0 0
    %647 = vmatpush1.bf16.msra.mxu0 %v644
    %648 = vmatprep.subr.bf16.mxu0 0
    %649 = vmatpush1.bf16.msra.mxu0 0
    %650 = vmatprep.subr.bf16.mxu0 0
    %651 = vmatpush1.bf16.msra.mxu0 0
    %652 = vmatprep.subr.bf16.mxu0 0
    %653 = vmatpush1.bf16.msra.mxu0 0
    %654 = vmatprep.subr.bf16.mxu0 0
    %655 = vmatpush1.bf16.msra.mxu0 0
    %656 = vmatprep.subr.bf16.mxu0 0
    %657 = vmatpush1.bf16.msra.mxu0 0
    %658 = vmatprep.subr.bf16.mxu0 0
    %659 = vmatpush1.bf16.msra.mxu0 0
    %660 = vmatprep.subr.bf16.mxu0 0
    %661 = vmatpush1.bf16.msra.mxu0 0
    %662 = vmatprep.subr.bf16.mxu0 0
    %663 = vmatpush1.bf16.msra.mxu0 0
    %664 = vmatprep.subr.bf16.mxu0 0
    %665 = vmatpush1.bf16.msra.mxu0 0
    %666 = vmatprep.subr.bf16.mxu0 0
    %667 = vmatpush1.bf16.msra.mxu0 0
    %668 = vmatprep.subr.bf16.mxu0 0
    %669 = vmatpush1.bf16.msra.mxu0 0
    %670 = vmatprep.subr.bf16.mxu0 0
    %671 = vmatpush1.bf16.msra.mxu0 0
    %672 = vmatprep.subr.bf16.mxu0 0
    %673 = vmatpush1.bf16.msra.mxu0 0
    %674 = vmatprep.subr.bf16.mxu0 0
    %675 = vmatpush1.bf16.msra.mxu0 0
    %676 = vmatprep.subr.bf16.mxu0 0
    %677 = vmatpush1.bf16.msra.mxu0 0
    %678 = vmatprep.mubr.bf16.mxu0 0
    %679 = vmatmul.mubr.bf16.gmra.mrb[0].mxu0 %v641
    %v680 = vpop.f32.mrb[0].mxu0
    %v681 = vadd.f32 %v634, %v680
    %v682 = vpop.f32.mrb[0].mxu0
    %v683 = vpop.f32.mrb[0].mxu0
    %v684 = vadd.f32 %v637, %v683
    %v685 = vpop.f32.mrb[0].mxu0
    %686 = vdwg.mxu0
    %v687 = vld [vmem:[%s0 + $0xc0] sm:$0xf]
    %v688 = vld [vmem:[%s0 + $0xc4] sm:$0xf]
    %v689 = vld [vmem:[%s0 + $0xc8] sm:$0xf]
    %v690 = vld [vmem:[%s0 + $0xcc] sm:$0xf]
    %v691 = vld [vmem:[%s0 + $0xd0] sm:$0xf]
    %v692 = vld [vmem:[%s0 + $0xd4] sm:$0xf]
    %v693 = vld [vmem:[%s0 + $0xd8] sm:$0xf]
    %v694 = vld [vmem:[%s0 + $0xdc] sm:$0xf]
    %v695 = vld [vmem:[%s0 + $0xe0] sm:$0xf]
    %v696 = vld [vmem:[%s0 + $0xe4] sm:$0xf]
    %v697 = vld [vmem:[%s0 + $0xe8] sm:$0xf]
    %v698 = vld [vmem:[%s0 + $0xec] sm:$0xf]
    %v699 = vld [vmem:[%s0 + $0xf0] sm:$0xf]
    %v700 = vld [vmem:[%s0 + $0xf4] sm:$0xf]
    %v701 = vld [vmem:[%s0 + $0xf8] sm:$0xf]
    %v702 = vld [vmem:[%s0 + $0xfc] sm:$0xf]
    %v703 = vpack.c.bf16 %v684, %v681
    %v720 = vunpack.c.l.b16 %v687
    %v721 = vunpack.c.l.b16 %v688
    %v722 = vunpack.c.l.b16 %v689
    %v723 = vunpack.c.l.b16 %v690
    %v724 = vunpack.c.l.b16 %v691
    %v725 = vunpack.c.l.b16 %v692
    %v726 = vunpack.c.l.b16 %v693
    %v727 = vunpack.c.l.b16 %v694
    %v728 = vunpack.c.l.b16 %v695
    %v729 = vunpack.c.l.b16 %v696
    %v730 = vunpack.c.l.b16 %v697
    %v731 = vunpack.c.l.b16 %v698
    %v732 = vunpack.c.l.b16 %v699
    %v733 = vunpack.c.l.b16 %v700
    %v734 = vunpack.c.l.b16 %v701
    %v735 = vunpack.c.l.b16 %v702
    %v736 = vpack.c.b16 %v721, %v720
    %v737 = vpack.c.b16 %v723, %v722
    %v738 = vpack.c.b16 %v725, %v724
    %v739 = vpack.c.b16 %v727, %v726
    %v740 = vpack.c.b16 %v729, %v728
    %v741 = vpack.c.b16 %v731, %v730
    %v742 = vpack.c.b16 %v733, %v732
    %v743 = vpack.c.b16 %v735, %v734
    %752 = vmatprep.subr.bf16.mxu0 0
    %753 = vmatpush1.bf16.msra.mxu0 %v736
    %754 = vmatprep.subr.bf16.mxu0 0
    %755 = vmatpush1.bf16.msra.mxu0 %v737
    %756 = vmatprep.subr.bf16.mxu0 0
    %757 = vmatpush1.bf16.msra.mxu0 %v738
    %758 = vmatprep.subr.bf16.mxu0 0
    %759 = vmatpush1.bf16.msra.mxu0 %v739
    %760 = vmatprep.subr.bf16.mxu0 0
    %761 = vmatpush1.bf16.msra.mxu0 %v740
    %762 = vmatprep.subr.bf16.mxu0 0
    %763 = vmatpush1.bf16.msra.mxu0 %v741
    %764 = vmatprep.subr.bf16.mxu0 0
    %765 = vmatpush1.bf16.msra.mxu0 %v742
    %766 = vmatprep.subr.bf16.mxu0 0
    %767 = vmatpush1.bf16.msra.mxu0 %v743
    %768 = vmatprep.subr.bf16.mxu0 0
    %769 = vmatpush1.bf16.msra.mxu0 0
    %770 = vmatprep.subr.bf16.mxu0 0
    %771 = vmatpush1.bf16.msra.mxu0 0
    %772 = vmatprep.subr.bf16.mxu0 0
    %773 = vmatpush1.bf16.msra.mxu0 0
    %774 = vmatprep.subr.bf16.mxu0 0
    %775 = vmatpush1.bf16.msra.mxu0 0
    %776 = vmatprep.subr.bf16.mxu0 0
    %777 = vmatpush1.bf16.msra.mxu0 0
    %778 = vmatprep.subr.bf16.mxu0 0
    %779 = vmatpush1.bf16.msra.mxu0 0
    %780 = vmatprep.subr.bf16.mxu0 0
    %781 = vmatpush1.bf16.msra.mxu0 0
    %782 = vmatprep.subr.bf16.mxu0 0
    %783 = vmatpush1.bf16.msra.mxu0 0
    %784 = vmatprep.mubr.bf16.mxu0 0
    %785 = vmatmul.mubr.bf16.gmra.mrb[0].mxu0 %v703
    %v786 = vpop.f32.mrb[0].mxu0
    %v787 = vadd.f32 0.0, %v786
    %v788 = vpop.f32.mrb[0].mxu0
    %v789 = vpop.f32.mrb[0].mxu0
    %v790 = vadd.f32 0.0, %v789
    %v791 = vpop.f32.mrb[0].mxu0
    %792 = vdwg.mxu0
    %v793 = vadd.f32 %v270, %v787
    %v794 = vadd.f32 %v271, %v790
    %v795 = vld [vmem:[#allocation2 + $0x5] sm:$0x1]
    %v796 = vlaneseq
    %v797 = vshrl.u32 %v796, 7
    %v798 = vsub.s32 0, %v797
    %v799 = vrot.slane %v795, %v798
    %v800 = vadd.f32 %v793, %v799
    %v801 = vadd.f32 %v794, %v799
    %v802 = vld [vmem:[#allocation2 + $0x6] sm:$0x1]
    %v803 = vld [vmem:[#allocation2 + $0x7] sm:$0x1]
    %804 = vadd.xlane.f32.xlu0 %v800
    %v805 = vpop.xlane.xlu0 %804
    %v806 = vsel %vm233, %v801, 0.0
    %807 = vadd.xlane.f32.xlu0 %v806
    %v808 = vpop.xlane.xlu0 %807
    %v809 = vmul.f32 %v805, 0.03125
    %v810 = vmul.f32 %v808, 0.03125
    %v811 = vmul.f32 %v800, %v800
    %v812 = vmul.f32 %v801, %v801
    %813 = vadd.xlane.f32.xlu0 %v811
    %v814 = vpop.xlane.xlu0 %813
    %v815 = vsel %vm233, %v812, 0.0
    %816 = vadd.xlane.f32.xlu0 %v815
    %v817 = vpop.xlane.xlu0 %816
    %v818 = vmul.f32 %v814, 0.03125
    %v819 = vmul.f32 %v817, 0.03125
    %v820 = vmul.f32 %v809, %v809
    %v821 = vmul.f32 %v810, %v810
    %v822 = vsub.f32 %v818, %v820
    %v823 = vsub.f32 %v819, %v821
    %v824 = vsub.f32 %v800, %v809
    %v825 = vsub.f32 %v801, %v810
    %v826 = vadd.f32 %v822, 1e-05
    %v827 = vadd.f32 %v823, 1e-05
    %v828 = vrsqrt.pop %v826
    %v829 = vrsqrt.pop %v827
    %v830 = vmul.f32 %v824, %v828
    %v831 = vmul.f32 %v825, %v829
    %v832 = vlaneseq
    %v833 = vshrl.u32 %v832, 7
    %v834 = vsub.s32 0, %v833
    %v835 = vrot.slane %v802, %v834
    %v836 = vmul.f32 %v830, %v835
    %v837 = vmul.f32 %v831, %v835
    %v838 = vlaneseq
    %v839 = vshrl.u32 %v838, 7
    %v840 = vsub.s32 0, %v839
    %v841 = vrot.slane %v803, %v840
    %v842 = vadd.f32 %v836, %v841
    %v843 = vadd.f32 %v837, %v841
    %v844 = vld [vmem:[%s0 + $0x100] sm:$0xf]
    %v845 = vld [vmem:[%s0 + $0x104] sm:$0xf]
    %v846 = vld [vmem:[%s0 + $0x108] sm:$0xf]
    %v847 = vld [vmem:[%s0 + $0x10c] sm:$0xf]
    %v848 = vld [vmem:[%s0 + $0x110] sm:$0xf]
    %v849 = vld [vmem:[%s0 + $0x114] sm:$0xf]
    %v850 = vld [vmem:[%s0 + $0x118] sm:$0xf]
    %v851 = vld [vmem:[%s0 + $0x11c] sm:$0xf]
    %v852 = vld [vmem:[%s0 + $0x120] sm:$0xf]
    %v853 = vld [vmem:[%s0 + $0x124] sm:$0xf]
    %v854 = vld [vmem:[%s0 + $0x128] sm:$0xf]
    %v855 = vld [vmem:[%s0 + $0x12c] sm:$0xf]
    %v856 = vld [vmem:[%s0 + $0x130] sm:$0xf]
    %v857 = vld [vmem:[%s0 + $0x134] sm:$0xf]
    %v858 = vld [vmem:[%s0 + $0x138] sm:$0xf]
    %v859 = vld [vmem:[%s0 + $0x13c] sm:$0xf]
    %v860 = vpack.c.bf16 %v843, %v842
    %v861 = vld [vmem:[#allocation2 + $0x8] sm:$0x1]
    %v862 = vlaneseq
    %v863 = vshrl.u32 %v862, 7
    %v864 = vsub.s32 0, %v863
    %v865 = vrot.slane %v861, %v864
    %v882 = vunpack.c.l.b16 %v844
    %v883 = vunpack.c.l.b16 %v845
    %v884 = vunpack.c.l.b16 %v846
    %v885 = vunpack.c.l.b16 %v847
    %v886 = vunpack.c.l.b16 %v848
    %v887 = vunpack.c.l.b16 %v849
    %v888 = vunpack.c.l.b16 %v850
    %v889 = vunpack.c.l.b16 %v851
    %v890 = vunpack.c.l.b16 %v852
    %v891 = vunpack.c.l.b16 %v853
    %v892 = vunpack.c.l.b16 %v854
    %v893 = vunpack.c.l.b16 %v855
    %v894 = vunpack.c.l.b16 %v856
    %v895 = vunpack.c.l.b16 %v857
    %v896 = vunpack.c.l.b16 %v858
    %v897 = vunpack.c.l.b16 %v859
    %v898 = vpack.c.b16 %v883, %v882
    %v899 = vpack.c.b16 %v885, %v884
    %v900 = vpack.c.b16 %v887, %v886
    %v901 = vpack.c.b16 %v889, %v888
    %v902 = vpack.c.b16 %v891, %v890
    %v903 = vpack.c.b16 %v893, %v892
    %v904 = vpack.c.b16 %v895, %v894
    %v905 = vpack.c.b16 %v897, %v896
    %914 = vmatprep.subr.bf16.mxu0 0
    %915 = vmatpush1.bf16.msra.mxu0 %v898
    %916 = vmatprep.subr.bf16.mxu0 0
    %917 = vmatpush1.bf16.msra.mxu0 %v899
    %918 = vmatprep.subr.bf16.mxu0 0
    %919 = vmatpush1.bf16.msra.mxu0 %v900
    %920 = vmatprep.subr.bf16.mxu0 0
    %921 = vmatpush1.bf16.msra.mxu0 %v901
    %922 = vmatprep.subr.bf16.mxu0 0
    %923 = vmatpush1.bf16.msra.mxu0 %v902
    %924 = vmatprep.subr.bf16.mxu0 0
    %925 = vmatpush1.bf16.msra.mxu0 %v903
    %926 = vmatprep.subr.bf16.mxu0 0
    %927 = vmatpush1.bf16.msra.mxu0 %v904
    %928 = vmatprep.subr.bf16.mxu0 0
    %929 = vmatpush1.bf16.msra.mxu0 %v905
    %930 = vmatprep.subr.bf16.mxu0 0
    %931 = vmatpush1.bf16.msra.mxu0 0
    %932 = vmatprep.subr.bf16.mxu0 0
    %933 = vmatpush1.bf16.msra.mxu0 0
    %934 = vmatprep.subr.bf16.mxu0 0
    %935 = vmatpush1.bf16.msra.mxu0 0
    %936 = vmatprep.subr.bf16.mxu0 0
    %937 = vmatpush1.bf16.msra.mxu0 0
    %938 = vmatprep.subr.bf16.mxu0 0
    %939 = vmatpush1.bf16.msra.mxu0 0
    %940 = vmatprep.subr.bf16.mxu0 0
    %941 = vmatpush1.bf16.msra.mxu0 0
    %942 = vmatprep.subr.bf16.mxu0 0
    %943 = vmatpush1.bf16.msra.mxu0 0
    %944 = vmatprep.subr.bf16.mxu0 0
    %945 = vmatpush1.bf16.msra.mxu0 0
    %946 = vmatprep.mubr.bf16.mxu0 0
    %947 = vmatmul.mubr.bf16.gmra.mrb[0].mxu0 %v860
    %v948 = vpop.f32.mrb[0].mxu0
    %v949 = vadd.f32 %v865, %v948
    %v950 = vpop.f32.mrb[0].mxu0
    %v951 = vpop.f32.mrb[0].mxu0
    %v952 = vadd.f32 %v865, %v951
    %v953 = vpop.f32.mrb[0].mxu0
    %954 = vdwg.mxu0
    %v955 = vmul.f32 %v949, 1.702
    %v956 = vmul.f32 %v952, 1.702
    %v957 = vxor.u32 %v955, 2147483648
    %v958 = vxor.u32 %v956, 2147483648
    %v959 = vmul.f32 %v957, 1.442695
    %v960 = vpow.pop %v959
    %v961 = vmul.f32 %v958, 1.442695
    %v962 = vpow.pop %v961
    %v963 = vadd.f32 %v960, 1.0
    %v964 = vadd.f32 %v962, 1.0
    %v965 = vrcp.pop %v963
    %v966 = vmul.f32 1.0, %v965
    %v967 = vrcp.pop %v964
    %v968 = vmul.f32 1.0, %v967
    %v969 = vmul.f32 %v949, %v966
    %v970 = vmul.f32 %v952, %v968
    %v971 = vld [vmem:[%s0 + $0x140] sm:$0xf]
    %v972 = vld [vmem:[%s0 + $0x144] sm:$0xf]
    %v973 = vld [vmem:[%s0 + $0x148] sm:$0xf]
    %v974 = vld [vmem:[%s0 + $0x14c] sm:$0xf]
    %v975 = vld [vmem:[%s0 + $0x150] sm:$0xf]
    %v976 = vld [vmem:[%s0 + $0x154] sm:$0xf]
    %v977 = vld [vmem:[%s0 + $0x158] sm:$0xf]
    %v978 = vld [vmem:[%s0 + $0x15c] sm:$0xf]
    %v979 = vld [vmem:[%s0 + $0x160] sm:$0xf]
    %v980 = vld [vmem:[%s0 + $0x164] sm:$0xf]
    %v981 = vld [vmem:[%s0 + $0x168] sm:$0xf]
    %v982 = vld [vmem:[%s0 + $0x16c] sm:$0xf]
    %v983 = vld [vmem:[%s0 + $0x170] sm:$0xf]
    %v984 = vld [vmem:[%s0 + $0x174] sm:$0xf]
    %v985 = vld [vmem:[%s0 + $0x178] sm:$0xf]
    %v986 = vld [vmem:[%s0 + $0x17c] sm:$0xf]
    %v987 = vpack.c.bf16 %v970, %v969
    %v1004 = vunpack.c.l.b16 %v971
    %v1005 = vunpack.c.l.b16 %v972
    %v1006 = vunpack.c.l.b16 %v973
    %v1007 = vunpack.c.l.b16 %v974
    %v1008 = vunpack.c.l.b16 %v975
    %v1009 = vunpack.c.l.b16 %v976
    %v1010 = vunpack.c.l.b16 %v977
    %v1011 = vunpack.c.l.b16 %v978
    %v1012 = vunpack.c.l.b16 %v979
    %v1013 = vunpack.c.l.b16 %v980
    %v1014 = vunpack.c.l.b16 %v981
    %v1015 = vunpack.c.l.b16 %v982
    %v1016 = vunpack.c.l.b16 %v983
    %v1017 = vunpack.c.l.b16 %v984
    %v1018 = vunpack.c.l.b16 %v985
    %v1019 = vunpack.c.l.b16 %v986
    %v1020 = vpack.c.b16 %v1005, %v1004
    %v1021 = vpack.c.b16 %v1007, %v1006
    %v1022 = vpack.c.b16 %v1009, %v1008
    %v1023 = vpack.c.b16 %v1011, %v1010
    %v1024 = vpack.c.b16 %v1013, %v1012
    %v1025 = vpack.c.b16 %v1015, %v1014
    %v1026 = vpack.c.b16 %v1017, %v1016
    %v1027 = vpack.c.b16 %v1019, %v1018
    %1036 = vmatprep.subr.bf16.mxu0 0
    %1037 = vmatpush1.bf16.msra.mxu0 %v1020
    %1038 = vmatprep.subr.bf16.mxu0 0
    %1039 = vmatpush1.bf16.msra.mxu0 %v1021
    %1040 = vmatprep.subr.bf16.mxu0 0
    %1041 = vmatpush1.bf16.msra.mxu0 %v1022
    %1042 = vmatprep.subr.bf16.mxu0 0
    %1043 = vmatpush1.bf16.msra.mxu0 %v1023
    %1044 = vmatprep.subr.bf16.mxu0 0
    %1045 = vmatpush1.bf16.msra.mxu0 %v1024
    %1046 = vmatprep.subr.bf16.mxu0 0
    %1047 = vmatpush1.bf16.msra.mxu0 %v1025
    %1048 = vmatprep.subr.bf16.mxu0 0
    %1049 = vmatpush1.bf16.msra.mxu0 %v1026
    %1050 = vmatprep.subr.bf16.mxu0 0
    %1051 = vmatpush1.bf16.msra.mxu0 %v1027
    %1052 = vmatprep.subr.bf16.mxu0 0
    %1053 = vmatpush1.bf16.msra.mxu0 0
    %1054 = vmatprep.subr.bf16.mxu0 0
    %1055 = vmatpush1.bf16.msra.mxu0 0
    %1056 = vmatprep.subr.bf16.mxu0 0
    %1057 = vmatpush1.bf16.msra.mxu0 0
    %1058 = vmatprep.subr.bf16.mxu0 0
    %1059 = vmatpush1.bf16.msra.mxu0 0
    %1060 = vmatprep.subr.bf16.mxu0 0
    %1061 = vmatpush1.bf16.msra.mxu0 0
    %1062 = vmatprep.subr.bf16.mxu0 0
    %1063 = vmatpush1.bf16.msra.mxu0 0
    %1064 = vmatprep.subr.bf16.mxu0 0
    %1065 = vmatpush1.bf16.msra.mxu0 0
    %1066 = vmatprep.subr.bf16.mxu0 0
    %1067 = vmatpush1.bf16.msra.mxu0 0
    %1068 = vmatprep.mubr.bf16.mxu0 0
    %1069 = vmatmul.mubr.bf16.gmra.mrb[0].mxu0 %v987
    %v1070 = vpop.f32.mrb[0].mxu0
    %v1071 = vadd.f32 0.0, %v1070
    %v1072 = vpop.f32.mrb[0].mxu0
    %v1073 = vpop.f32.mrb[0].mxu0
    %v1074 = vpop.f32.mrb[0].mxu0
    %1075 = vdwg.mxu0
    %v1076 = vadd.f32 %v800, %v1071
    %v1077 = vld [vmem:[#allocation2 + $0x9] sm:$0x1]
    %v1078 = vlaneseq
    %v1079 = vshrl.u32 %v1078, 7
    %v1080 = vsub.s32 0, %v1079
    %v1081 = vrot.slane %v1077, %v1080
    %v1082 = vadd.f32 %v1076, %v1081
    %v1084 = vrot.slane %v1082, 4
    %vm1086 = vcmask 1040384
    %v1087 = vsel %vm1086, %v1082, %v1084
    %v1088 = vld [vmem:[#allocation2 + $0xa] sm:$0x1]
    %v1089 = vld [vmem:[#allocation2 + $0xb] sm:$0x1]
    %v1090 = vsel %vm233, %v1087, 0.0
    %1091 = vadd.xlane.f32.xlu0 %v1090
    %v1092 = vpop.xlane.xlu0 %1091
    %v1093 = vmul.f32 %v1092, 0.03125
    %v1094 = vmul.f32 %v1087, %v1087
    %v1095 = vsel %vm233, %v1094, 0.0
    %1096 = vadd.xlane.f32.xlu0 %v1095
    %v1097 = vpop.xlane.xlu0 %1096
    %v1098 = vmul.f32 %v1097, 0.03125
    %v1099 = vmul.f32 %v1093, %v1093
    %v1100 = vsub.f32 %v1098, %v1099
    %v1101 = vsub.f32 %v1087, %v1093
    %v1102 = vadd.f32 %v1100, 1e-05
    %v1103 = vrsqrt.pop %v1102
    %v1104 = vmul.f32 %v1101, %v1103
    %v1105 = vlaneseq
    %v1106 = vshrl.u32 %v1105, 7
    %v1107 = vsub.s32 0, %v1106
    %v1108 = vrot.slane %v1088, %v1107
    %v1109 = vmul.f32 %v1104, %v1108
    %v1110 = vlaneseq
    %v1111 = vshrl.u32 %v1110, 7
    %v1112 = vsub.s32 0, %v1111
    %v1113 = vrot.slane %v1089, %v1112
    %v1114 = vadd.f32 %v1109, %v1113
    %v1115 = vld [vmem:[%s0 + $0x180] sm:$0xf]
    %v1116 = vld [vmem:[%s0 + $0x184] sm:$0xf]
    %v1117 = vld [vmem:[%s0 + $0x188] sm:$0xf]
    %v1118 = vld [vmem:[%s0 + $0x18c] sm:$0xf]
    %v1119 = vld [vmem:[%s0 + $0x190] sm:$0xf]
    %v1120 = vld [vmem:[%s0 + $0x194] sm:$0xf]
    %v1121 = vld [vmem:[%s0 + $0x198] sm:$0xf]
    %v1122 = vld [vmem:[%s0 + $0x19c] sm:$0xf]
    %v1123 = vld [vmem:[%s0 + $0x1a0] sm:$0xf]
    %v1124 = vld [vmem:[%s0 + $0x1a4] sm:$0xf]
    %v1125 = vld [vmem:[%s0 + $0x1a8] sm:$0xf]
    %v1126 = vld [vmem:[%s0 + $0x1ac] sm:$0xf]
    %v1127 = vld [vmem:[%s0 + $0x1b0] sm:$0xf]
    %v1128 = vld [vmem:[%s0 + $0x1b4] sm:$0xf]
    %v1129 = vld [vmem:[%s0 + $0x1b8] sm:$0xf]
    %v1130 = vld [vmem:[%s0 + $0x1bc] sm:$0xf]
    %v1131 = vpack.c.bf16 %v1114, %v1114
    %v1148 = vunpack.c.l.b16 %v1115
    %v1149 = vunpack.c.l.b16 %v1116
    %v1150 = vunpack.c.l.b16 %v1117
    %v1151 = vunpack.c.l.b16 %v1118
    %v1152 = vunpack.c.l.b16 %v1119
    %v1153 = vunpack.c.l.b16 %v1120
    %v1154 = vunpack.c.l.b16 %v1121
    %v1155 = vunpack.c.l.b16 %v1122
    %v1156 = vunpack.c.l.b16 %v1123
    %v1157 = vunpack.c.l.b16 %v1124
    %v1158 = vunpack.c.l.b16 %v1125
    %v1159 = vunpack.c.l.b16 %v1126
    %v1160 = vunpack.c.l.b16 %v1127
    %v1161 = vunpack.c.l.b16 %v1128
    %v1162 = vunpack.c.l.b16 %v1129
    %v1163 = vunpack.c.l.b16 %v1130
    %v1164 = vpack.c.b16 %v1149, %v1148
    %v1165 = vpack.c.b16 %v1151, %v1150
    %v1166 = vpack.c.b16 %v1153, %v1152
    %v1167 = vpack.c.b16 %v1155, %v1154
    %v1168 = vpack.c.b16 %v1157, %v1156
    %v1169 = vpack.c.b16 %v1159, %v1158
    %v1170 = vpack.c.b16 %v1161, %v1160
    %v1171 = vpack.c.b16 %v1163, %v1162
    %1180 = vmatprep.subr.bf16.mxu0 0
    %1181 = vmatpush1.bf16.msra.mxu0 %v1164
    %1182 = vmatprep.subr.bf16.mxu0 0
    %1183 = vmatpush1.bf16.msra.mxu0 %v1165
    %1184 = vmatprep.subr.bf16.mxu0 0
    %1185 = vmatpush1.bf16.msra.mxu0 %v1166
    %1186 = vmatprep.subr.bf16.mxu0 0
    %1187 = vmatpush1.bf16.msra.mxu0 %v1167
    %1188 = vmatprep.subr.bf16.mxu0 0
    %1189 = vmatpush1.bf16.msra.mxu0 %v1168
    %1190 = vmatprep.subr.bf16.mxu0 0
    %1191 = vmatpush1.bf16.msra.mxu0 %v1169
    %1192 = vmatprep.subr.bf16.mxu0 0
    %1193 = vmatpush1.bf16.msra.mxu0 %v1170
    %1194 = vmatprep.subr.bf16.mxu0 0
    %1195 = vmatpush1.bf16.msra.mxu0 %v1171
    %1196 = vmatprep.subr.bf16.mxu0 0
    %1197 = vmatpush1.bf16.msra.mxu0 0
    %1198 = vmatprep.subr.bf16.mxu0 0
    %1199 = vmatpush1.bf16.msra.mxu0 0
    %1200 = vmatprep.subr.bf16.mxu0 0
    %1201 = vmatpush1.bf16.msra.mxu0 0
    %1202 = vmatprep.subr.bf16.mxu0 0
    %1203 = vmatpush1.bf16.msra.mxu0 0
    %1204 = vmatprep.subr.bf16.mxu0 0
    %1205 = vmatpush1.bf16.msra.mxu0 0
    %1206 = vmatprep.subr.bf16.mxu0 0
    %1207 = vmatpush1.bf16.msra.mxu0 0
    %1208 = vmatprep.subr.bf16.mxu0 0
    %1209 = vmatpush1.bf16.msra.mxu0 0
    %1210 = vmatprep.subr.bf16.mxu0 0
    %1211 = vmatpush1.bf16.msra.mxu0 0
    %1212 = vmatprep.mubr.bf16.mxu0 0
    %1213 = vmatmul.mubr.bf16.gmra.mrb[0].mxu0 %v1131
    %v1214 = vpop.f32.mrb[0].mxu0
    %v1215 = vadd.f32 0.0, %v1214
    %v1216 = vpop.f32.mrb[0].mxu0
    %v1217 = vpop.f32.mrb[0].mxu0
    %v1218 = vpop.f32.mrb[0].mxu0
    %1219 = vdwg.mxu0
    %v1220 = vld [vmem:[%s3] sm:$0xff]
    %v1221 = vld [vmem:[%s3 + $0x8] sm:$0xff]
    %v1222 = vld [vmem:[%s3 + $0x10] sm:$0xff]
    %v1223 = vld [vmem:[%s3 + $0x18] sm:$0xff]
    %v1224 = vld [vmem:[#allocation2 + $0x38] sm:$0xff]
    %v1225 = vld [vmem:[#allocation2 + $0x40] sm:$0xff]
    %v1226 = vld [vmem:[#allocation2 + $0x48] sm:$0xff]
    %v1227 = vld [vmem:[#allocation2 + $0x50] sm:$0xff]
    %v1228 = vld [vmem:[#allocation2 + $0xc] sm:$0x1]
    %v1229 = vld [vmem:[#allocation2 + $0xd] sm:$0x1]
    %1230 = vadd.xlane.f32.xlu0 %v1220
    %v1231 = vpop.xlane.xlu0 %1230
    %1232 = vadd.xlane.f32.xlu0 %v1221
    %v1233 = vpop.xlane.xlu0 %1232
    %1234 = vadd.xlane.f32.xlu0 %v1222
    %v1235 = vpop.xlane.xlu0 %1234
    %1236 = vadd.xlane.f32.xlu0 %v1223
    %v1237 = vpop.xlane.xlu0 %1236
    %v1238 = vmul.f32 %v1231, 0.03125
    %v1239 = vmul.f32 %v1233, 0.03125
    %v1240 = vmul.f32 %v1235, 0.03125
    %v1241 = vmul.f32 %v1237, 0.03125
    %v1242 = vmul.f32 %v1220, %v1220
    %v1243 = vmul.f32 %v1221, %v1221
    %v1244 = vmul.f32 %v1222, %v1222
    %v1245 = vmul.f32 %v1223, %v1223
    %1246 = vadd.xlane.f32.xlu0 %v1242
    %v1247 = vpop.xlane.xlu0 %1246
    %1248 = vadd.xlane.f32.xlu0 %v1243
    %v1249 = vpop.xlane.xlu0 %1248
    %1250 = vadd.xlane.f32.xlu0 %v1244
    %v1251 = vpop.xlane.xlu0 %1250
    %1252 = vadd.xlane.f32.xlu0 %v1245
    %v1253 = vpop.xlane.xlu0 %1252
    %v1254 = vmul.f32 %v1247, 0.03125
    %v1255 = vmul.f32 %v1249, 0.03125
    %v1256 = vmul.f32 %v1251, 0.03125
    %v1257 = vmul.f32 %v1253, 0.03125
    %v1258 = vmul.f32 %v1238, %v1238
    %v1259 = vmul.f32 %v1239, %v1239
    %v1260 = vmul.f32 %v1240, %v1240
    %v1261 = vmul.f32 %v1241, %v1241
    %v1262 = vsub.f32 %v1254, %v1258
    %v1263 = vsub.f32 %v1255, %v1259
    %v1264 = vsub.f32 %v1256, %v1260
    %v1265 = vsub.f32 %v1257, %v1261
    %v1266 = vsub.f32 %v1220, %v1238
    %v1267 = vsub.f32 %v1221, %v1239
    %v1268 = vsub.f32 %v1222, %v1240
    %v1269 = vsub.f32 %v1223, %v1241
    %v1270 = vadd.f32 %v1262, 1e-05
    %v1271 = vadd.f32 %v1263, 1e-05
    %v1272 = vadd.f32 %v1264, 1e-05
    %v1273 = vadd.f32 %v1265, 1e-05
    %v1274 = vrsqrt.pop %v1270
    %v1275 = vrsqrt.pop %v1271
    %v1276 = vrsqrt.pop %v1272
    %v1277 = vrsqrt.pop %v1273
    %v1278 = vmul.f32 %v1266, %v1274
    %v1279 = vmul.f32 %v1267, %v1275
    %v1280 = vmul.f32 %v1268, %v1276
    %v1281 = vmul.f32 %v1269, %v1277
    %v1282 = vlaneseq
    %v1283 = vshrl.u32 %v1282, 7
    %v1284 = vsub.s32 0, %v1283
    %v1285 = vrot.slane %v1228, %v1284
    %v1286 = vmul.f32 %v1278, %v1285
    %v1287 = vmul.f32 %v1279, %v1285
    %v1288 = vmul.f32 %v1280, %v1285
    %v1289 = vmul.f32 %v1281, %v1285
    %v1290 = vlaneseq
    %v1291 = vshrl.u32 %v1290, 7
    %v1292 = vsub.s32 0, %v1291
    %v1293 = vrot.slane %v1229, %v1292
    %v1294 = vadd.f32 %v1286, %v1293
    %v1295 = vadd.f32 %v1287, %v1293
    %v1296 = vadd.f32 %v1288, %v1293
    %v1297 = vadd.f32 %v1289, %v1293
    %v1298 = vld [vmem:[%s0 + $0x1c0] sm:$0xf]
    %v1299 = vld [vmem:[%s0 + $0x1c4] sm:$0xf]
    %v1300 = vld [vmem:[%s0 + $0x1c8] sm:$0xf]
    %v1301 = vld [vmem:[%s0 + $0x1cc] sm:$0xf]
    %v1302 = vld [vmem:[%s0 + $0x1d0] sm:$0xf]
    %v1303 = vld [vmem:[%s0 + $0x1d4] sm:$0xf]
    %v1304 = vld [vmem:[%s0 + $0x1d8] sm:$0xf]
    %v1305 = vld [vmem:[%s0 + $0x1dc] sm:$0xf]
    %v1306 = vld [vmem:[%s0 + $0x1e0] sm:$0xf]
    %v1307 = vld [vmem:[%s0 + $0x1e4] sm:$0xf]
    %v1308 = vld [vmem:[%s0 + $0x1e8] sm:$0xf]
    %v1309 = vld [vmem:[%s0 + $0x1ec] sm:$0xf]
    %v1310 = vld [vmem:[%s0 + $0x1f0] sm:$0xf]
    %v1311 = vld [vmem:[%s0 + $0x1f4] sm:$0xf]
    %v1312 = vld [vmem:[%s0 + $0x1f8] sm:$0xf]
    %v1313 = vld [vmem:[%s0 + $0x1fc] sm:$0xf]
    %v1314 = vpack.c.bf16 %v1295, %v1294
    %v1315 = vpack.c.bf16 %v1297, %v1296
    %v1316 = vld [vmem:[#allocation2 + $0xe] sm:$0x1]
    %v1317 = vlaneseq
    %v1318 = vshrl.u32 %v1317, 7
    %v1319 = vsub.s32 0, %v1318
    %v1320 = vrot.slane %v1316, %v1319
    %v1337 = vunpack.c.l.b16 %v1298
    %v1338 = vunpack.c.l.b16 %v1299
    %v1339 = vunpack.c.l.b16 %v1300
    %v1340 = vunpack.c.l.b16 %v1301
    %v1341 = vunpack.c.l.b16 %v1302
    %v1342 = vunpack.c.l.b16 %v1303
    %v1343 = vunpack.c.l.b16 %v1304
    %v1344 = vunpack.c.l.b16 %v1305
    %v1345 = vunpack.c.l.b16 %v1306
    %v1346 = vunpack.c.l.b16 %v1307
    %v1347 = vunpack.c.l.b16 %v1308
    %v1348 = vunpack.c.l.b16 %v1309
    %v1349 = vunpack.c.l.b16 %v1310
    %v1350 = vunpack.c.l.b16 %v1311
    %v1351 = vunpack.c.l.b16 %v1312
    %v1352 = vunpack.c.l.b16 %v1313
    %v1353 = vpack.c.b16 %v1338, %v1337
    %v1354 = vpack.c.b16 %v1340, %v1339
    %v1355 = vpack.c.b16 %v1342, %v1341
    %v1356 = vpack.c.b16 %v1344, %v1343
    %v1357 = vpack.c.b16 %v1346, %v1345
    %v1358 = vpack.c.b16 %v1348, %v1347
    %v1359 = vpack.c.b16 %v1350, %v1349
    %v1360 = vpack.c.b16 %v1352, %v1351
    %1369 = vmatprep.subr.bf16.mxu0 0
    %1370 = vmatpush1.bf16.msra.mxu0 %v1353
    %1371 = vmatprep.subr.bf16.mxu0 0
    %1372 = vmatpush1.bf16.msra.mxu0 %v1354
    %1373 = vmatprep.subr.bf16.mxu0 0
    %1374 = vmatpush1.bf16.msra.mxu0 %v1355
    %1375 = vmatprep.subr.bf16.mxu0 0
    %1376 = vmatpush1.bf16.msra.mxu0 %v1356
    %1377 = vmatprep.subr.bf16.mxu0 0
    %1378 = vmatpush1.bf16.msra.mxu0 %v1357
    %1379 = vmatprep.subr.bf16.mxu0 0
    %1380 = vmatpush1.bf16.msra.mxu0 %v1358
    %1381 = vmatprep.subr.bf16.mxu0 0
    %1382 = vmatpush1.bf16.msra.mxu0 %v1359
    %1383 = vmatprep.subr.bf16.mxu0 0
    %1384 = vmatpush1.bf16.msra.mxu0 %v1360
    %1385 = vmatprep.subr.bf16.mxu0 0
    %1386 = vmatpush1.bf16.msra.mxu0 0
    %1387 = vmatprep.subr.bf16.mxu0 0
    %1388 = vmatpush1.bf16.msra.mxu0 0
    %1389 = vmatprep.subr.bf16.mxu0 0
    %1390 = vmatpush1.bf16.msra.mxu0 0
    %1391 = vmatprep.subr.bf16.mxu0 0
    %1392 = vmatpush1.bf16.msra.mxu0 0
    %1393 = vmatprep.subr.bf16.mxu0 0
    %1394 = vmatpush1.bf16.msra.mxu0 0
    %1395 = vmatprep.subr.bf16.mxu0 0
    %1396 = vmatpush1.bf16.msra.mxu0 0
    %1397 = vmatprep.subr.bf16.mxu0 0
    %1398 = vmatpush1.bf16.msra.mxu0 0
    %1399 = vmatprep.subr.bf16.mxu0 0
    %1400 = vmatpush1.bf16.msra.mxu0 0
    %1401 = vmatprep.mubr.bf16.mxu0 0
    %1402 = vmatmul.mubr.bf16.gmra.mrb[0].mxu0 %v1314
    %v1403 = vpop.f32.mrb[0].mxu0
    %v1404 = vadd.f32 %v1320, %v1403
    %v1405 = vpop.f32.mrb[0].mxu0
    %v1406 = vpop.f32.mrb[0].mxu0
    %v1407 = vadd.f32 %v1320, %v1406
    %v1408 = vpop.f32.mrb[0].mxu0
    %1409 = vmatprep.mubr.bf16.mxu0 0
    %1410 = vmatmul.mubr.bf16.gmra.mrb[0].mxu0 %v1315
    %v1411 = vpop.f32.mrb[0].mxu0
    %v1412 = vadd.f32 %v1320, %v1411
    %v1413 = vpop.f32.mrb[0].mxu0
    %v1414 = vpop.f32.mrb[0].mxu0
    %v1415 = vadd.f32 %v1320, %v1414
    %v1416 = vpop.f32.mrb[0].mxu0
    %1417 = vdwg.mxu0
    %v1418 = vpack.c.bf16 %v1407, %v1404
    %v1419 = vpack.c.bf16 %v1415, %v1412
    %1422 = vrot.lane.b32.xlu0 %v1418, 96
    %v1423 = vpop.permute.xlu0 %1422
    %1424 = vrot.lane.b32.xlu0 %v1419, 96
    %v1425 = vpop.permute.xlu0 %1424
    %v1427 = vsel %vm431, %v1418, 0
    %v1430 = vsel %vm431, %v1419, 0
    %v1433 = vsel %vm431, %v1423, 0
    %v1436 = vsel %vm431, %v1425, 0
    %1438 = vmatprep.subr.bf16.mxu0 0
    %1439 = vmatpush1.bf16.xpose.msra.mxu0 %v1433
    %1440 = vmatprep.subr.bf16.mxu0 0
    %1441 = vmatpush1.bf16.xpose.msra.mxu0 %v1436
    %1442 = vmatprep.subr.bf16.mxu0 0
    %1443 = vmatpush1.bf16.xpose.msra.mxu0 0
    %1444 = vmatprep.subr.bf16.mxu0 0
    %1445 = vmatpush1.bf16.xpose.msra.mxu0 0
    %1446 = vmatprep.subr.bf16.mxu0 0
    %1447 = vmatpush1.bf16.xpose.msra.mxu0 0
    %1448 = vmatprep.subr.bf16.mxu0 0
    %1449 = vmatpush1.bf16.xpose.msra.mxu0 0
    %1450 = vmatprep.subr.bf16.mxu0 0
    %1451 = vmatpush1.bf16.xpose.msra.mxu0 0
    %1452 = vmatprep.subr.bf16.mxu0 0
    %1453 = vmatpush1.bf16.xpose.msra.mxu0 0
    %1454 = vmatprep.subr.bf16.mxu0 0
    %1455 = vmatpush1.bf16.xpose.msra.mxu0 0
    %1456 = vmatprep.subr.bf16.mxu0 0
    %1457 = vmatpush1.bf16.xpose.msra.mxu0 0
    %1458 = vmatprep.subr.bf16.mxu0 0
    %1459 = vmatpush1.bf16.xpose.msra.mxu0 0
    %1460 = vmatprep.subr.bf16.mxu0 0
    %1461 = vmatpush1.bf16.xpose.msra.mxu0 0
    %1462 = vmatprep.subr.bf16.mxu0 0
    %1463 = vmatpush1.bf16.xpose.msra.mxu0 0
    %1464 = vmatprep.subr.bf16.mxu0 0
    %1465 = vmatpush1.bf16.xpose.msra.mxu0 0
    %1466 = vmatprep.subr.bf16.mxu0 0
    %1467 = vmatpush1.bf16.xpose.msra.mxu0 0
    %1468 = vmatprep.subr.bf16.mxu0 0
    %1469 = vmatpush1.bf16.xpose.msra.mxu0 0
    %1470 = vmatprep.mubr.bf16.mxu0 0
    %1471 = vmatmul.mubr.bf16.gmra.mrb[0].mxu0 %v1427
    %v1472 = vpop.f32.mrb[0].mxu0
    %v1473 = vadd.f32 0.0, %v1472
    %v1474 = vpop.f32.mrb[0].mxu0
    %v1475 = vpop.f32.mrb[0].mxu0
    %v1476 = vadd.f32 0.0, %v1475
    %v1477 = vpop.f32.mrb[0].mxu0
    %1478 = vmatprep.mubr.bf16.mxu0 0
    %1479 = vmatmul.mubr.bf16.gmra.mrb[0].mxu0 %v1430
    %v1480 = vpop.f32.mrb[0].mxu0
    %v1481 = vadd.f32 0.0, %v1480
    %v1482 = vpop.f32.mrb[0].mxu0
    %v1483 = vpop.f32.mrb[0].mxu0
    %v1484 = vadd.f32 0.0, %v1483
    %v1485 = vpop.f32.mrb[0].mxu0
    %1486 = vdwg.mxu0
    %v1487 = vmul.f32 %v1473, 0.25
    %v1488 = vmul.f32 %v1476, 0.25
    %v1489 = vmul.f32 %v1481, 0.25
    %v1490 = vmul.f32 %v1484, 0.25
    %v1491 = vadd.f32 %v1487, %v1224
    %v1492 = vadd.f32 %v1488, %v1225
    %v1493 = vadd.f32 %v1489, %v1226
    %v1494 = vadd.f32 %v1490, %v1227
    %vm1495 = vcmask 261120
    %v1496 = vsel %vm1495, %v1491, -inf
    %1497 = vmax.xlane.f32.xlu0 %v1496
    %v1498 = vpop.xlane.xlu0 %1497
    %v1499 = vsel %vm1495, %v1492, -inf
    %1500 = vmax.xlane.f32.xlu0 %v1499
    %v1501 = vpop.xlane.xlu0 %1500
    %v1502 = vsel %vm1495, %v1493, -inf
    %1503 = vmax.xlane.f32.xlu0 %v1502
    %v1504 = vpop.xlane.xlu0 %1503
    %v1505 = vsel %vm1495, %v1494, -inf
    %1506 = vmax.xlane.f32.xlu0 %v1505
    %v1507 = vpop.xlane.xlu0 %1506
    %v1508 = vsub.f32 %v1491, %v1498
    %v1509 = vsub.f32 %v1492, %v1501
    %v1510 = vsub.f32 %v1493, %v1504
    %v1511 = vsub.f32 %v1494, %v1507
    %v1512 = vmul.f32 %v1508, 1.442695
    %v1513 = vpow.pop %v1512
    %v1514 = vmul.f32 %v1509, 1.442695
    %v1515 = vpow.pop %v1514
    %v1516 = vmul.f32 %v1510, 1.442695
    %v1517 = vpow.pop %v1516
    %v1518 = vmul.f32 %v1511, 1.442695
    %v1519 = vpow.pop %v1518
    %v1520 = vsel %vm1495, %v1513, 0.0
    %1521 = vadd.xlane.f32.xlu0 %v1520
    %v1522 = vpop.xlane.xlu0 %1521
    %v1523 = vsel %vm1495, %v1515, 0.0
    %1524 = vadd.xlane.f32.xlu0 %v1523
    %v1525 = vpop.xlane.xlu0 %1524
    %v1526 = vsel %vm1495, %v1517, 0.0
    %1527 = vadd.xlane.f32.xlu0 %v1526
    %v1528 = vpop.xlane.xlu0 %1527
    %v1529 = vsel %vm1495, %v1519, 0.0
    %1530 = vadd.xlane.f32.xlu0 %v1529
    %v1531 = vpop.xlane.xlu0 %1530
    %v1532 = vrcp.pop %v1522
    %v1533 = vrcp.pop %v1525
    %v1534 = vrcp.pop %v1528
    %v1535 = vrcp.pop %v1531
    %v1536 = vmul.f32 %v1513, %v1532
    %v1537 = vmul.f32 %v1515, %v1533
    %v1538 = vmul.f32 %v1517, %v1534
    %v1539 = vmul.f32 %v1519, %v1535
    %v1540 = vmul.f32 %v1404, %v41
    %v1541 = vmul.f32 %v1407, %v41
    %v1542 = vmul.f32 %v1412, %v41
    %v1543 = vmul.f32 %v1415, %v41
    %v1544 = vpack.c.bf16 %v1537, %v1536
    %v1545 = vpack.c.bf16 %v1539, %v1538
    %v1546 = vpack.c.bf16 %v1541, %v1540
    %v1547 = vpack.c.bf16 %v1543, %v1542
    %1548 = vrot.lane.b32.xlu0 %v1418, 112
    %v1549 = vpop.permute.xlu0 %1548
    %1550 = vrot.lane.b32.xlu0 %v1419, 112
    %v1551 = vpop.permute.xlu0 %1550
    %1552 = vrot.lane.b32.xlu0 %v1418, 80
    %v1553 = vpop.permute.xlu0 %1552
    %1554 = vrot.lane.b32.xlu0 %v1419, 80
    %v1555 = vpop.permute.xlu0 %1554
    %v1557 = vsel %vm431, %v1549, 0
    %v1560 = vsel %vm431, %v1551, 0
    %v1563 = vsel %vm431, %v1553, 0
    %v1566 = vsel %vm431, %v1555, 0
    %1568 = vmatprep.subr.bf16.mxu0 0
    %1569 = vmatpush1.bf16.xpose.msra.mxu0 %v1563
    %1570 = vmatprep.subr.bf16.mxu0 0
    %1571 = vmatpush1.bf16.xpose.msra.mxu0 %v1566
    %1572 = vmatprep.subr.bf16.mxu0 0
    %1573 = vmatpush1.bf16.xpose.msra.mxu0 0
    %1574 = vmatprep.subr.bf16.mxu0 0
    %1575 = vmatpush1.bf16.xpose.msra.mxu0 0
    %1576 = vmatprep.subr.bf16.mxu0 0
    %1577 = vmatpush1.bf16.xpose.msra.mxu0 0
    %1578 = vmatprep.subr.bf16.mxu0 0
    %1579 = vmatpush1.bf16.xpose.msra.mxu0 0
    %1580 = vmatprep.subr.bf16.mxu0 0
    %1581 = vmatpush1.bf16.xpose.msra.mxu0 0
    %1582 = vmatprep.subr.bf16.mxu0 0
    %1583 = vmatpush1.bf16.xpose.msra.mxu0 0
    %1584 = vmatprep.subr.bf16.mxu0 0
    %1585 = vmatpush1.bf16.xpose.msra.mxu0 0
    %1586 = vmatprep.subr.bf16.mxu0 0
    %1587 = vmatpush1.bf16.xpose.msra.mxu0 0
    %1588 = vmatprep.subr.bf16.mxu0 0
    %1589 = vmatpush1.bf16.xpose.msra.mxu0 0
    %1590 = vmatprep.subr.bf16.mxu0 0
    %1591 = vmatpush1.bf16.xpose.msra.mxu0 0
    %1592 = vmatprep.subr.bf16.mxu0 0
    %1593 = vmatpush1.bf16.xpose.msra.mxu0 0
    %1594 = vmatprep.subr.bf16.mxu0 0
    %1595 = vmatpush1.bf16.xpose.msra.mxu0 0
    %1596 = vmatprep.subr.bf16.mxu0 0
    %1597 = vmatpush1.bf16.xpose.msra.mxu0 0
    %1598 = vmatprep.subr.bf16.mxu0 0
    %1599 = vmatpush1.bf16.xpose.msra.mxu0 0
    %1600 = vmatprep.mubr.bf16.mxu0 0
    %1601 = vmatmul.mubr.bf16.gmra.mrb[0].mxu0 %v1557
    %v1602 = vpop.f32.mrb[0].mxu0
    %v1603 = vadd.f32 0.0, %v1602
    %v1604 = vpop.f32.mrb[0].mxu0
    %v1605 = vpop.f32.mrb[0].mxu0
    %v1606 = vadd.f32 0.0, %v1605
    %v1607 = vpop.f32.mrb[0].mxu0
    %1608 = vmatprep.mubr.bf16.mxu0 0
    %1609 = vmatmul.mubr.bf16.gmra.mrb[0].mxu0 %v1560
    %v1610 = vpop.f32.mrb[0].mxu0
    %v1611 = vadd.f32 0.0, %v1610
    %v1612 = vpop.f32.mrb[0].mxu0
    %v1613 = vpop.f32.mrb[0].mxu0
    %v1614 = vadd.f32 0.0, %v1613
    %v1615 = vpop.f32.mrb[0].mxu0
    %1616 = vdwg.mxu0
    %v1617 = vmul.f32 %v1603, 0.25
    %v1618 = vmul.f32 %v1606, 0.25
    %v1619 = vmul.f32 %v1611, 0.25
    %v1620 = vmul.f32 %v1614, 0.25
    %v1621 = vadd.f32 %v1617, %v1224
    %v1622 = vadd.f32 %v1618, %v1225
    %v1623 = vadd.f32 %v1619, %v1226
    %v1624 = vadd.f32 %v1620, %v1227
    %v1625 = vsel %vm1495, %v1621, -inf
    %1626 = vmax.xlane.f32.xlu0 %v1625
    %v1627 = vpop.xlane.xlu0 %1626
    %v1628 = vsel %vm1495, %v1622, -inf
    %1629 = vmax.xlane.f32.xlu0 %v1628
    %v1630 = vpop.xlane.xlu0 %1629
    %v1631 = vsel %vm1495, %v1623, -inf
    %1632 = vmax.xlane.f32.xlu0 %v1631
    %v1633 = vpop.xlane.xlu0 %1632
    %v1634 = vsel %vm1495, %v1624, -inf
    %1635 = vmax.xlane.f32.xlu0 %v1634
    %v1636 = vpop.xlane.xlu0 %1635
    %v1637 = vsub.f32 %v1621, %v1627
    %v1638 = vsub.f32 %v1622, %v1630
    %v1639 = vsub.f32 %v1623, %v1633
    %v1640 = vsub.f32 %v1624, %v1636
    %v1641 = vmul.f32 %v1637, 1.442695
    %v1642 = vpow.pop %v1641
    %v1643 = vmul.f32 %v1638, 1.442695
    %v1644 = vpow.pop %v1643
    %v1645 = vmul.f32 %v1639, 1.442695
    %v1646 = vpow.pop %v1645
    %v1647 = vmul.f32 %v1640, 1.442695
    %v1648 = vpow.pop %v1647
    %v1649 = vsel %vm1495, %v1642, 0.0
    %1650 = vadd.xlane.f32.xlu0 %v1649
    %v1651 = vpop.xlane.xlu0 %1650
    %v1652 = vsel %vm1495, %v1644, 0.0
    %1653 = vadd.xlane.f32.xlu0 %v1652
    %v1654 = vpop.xlane.xlu0 %1653
    %v1655 = vsel %vm1495, %v1646, 0.0
    %1656 = vadd.xlane.f32.xlu0 %v1655
    %v1657 = vpop.xlane.xlu0 %1656
    %v1658 = vsel %vm1495, %v1648, 0.0
    %1659 = vadd.xlane.f32.xlu0 %v1658
    %v1660 = vpop.xlane.xlu0 %1659
    %v1661 = vrcp.pop %v1651
    %v1662 = vrcp.pop %v1654
    %v1663 = vrcp.pop %v1657
    %v1664 = vrcp.pop %v1660
    %v1665 = vmul.f32 %v1642, %v1661
    %v1666 = vmul.f32 %v1644, %v1662
    %v1667 = vmul.f32 %v1646, %v1663
    %v1668 = vmul.f32 %v1648, %v1664
    %v1669 = vmul.f32 %v1404, %v45
    %v1670 = vmul.f32 %v1407, %v45
    %v1671 = vmul.f32 %v1412, %v45
    %v1672 = vmul.f32 %v1415, %v45
    %v1673 = vpack.c.bf16 %v1666, %v1665
    %v1674 = vpack.c.bf16 %v1668, %v1667
    %v1675 = vpack.c.bf16 %v1670, %v1669
    %v1676 = vpack.c.bf16 %v1672, %v1671
    %v1678 = vsel %vm1495, %v1673, 0
    %v1681 = vsel %vm1495, %v1674, 0
    %1683 = vmatprep.subr.bf16.mxu0 0
    %1684 = vmatpush1.bf16.msra.mxu0 %v1675
    %1685 = vmatprep.subr.bf16.mxu0 0
    %1686 = vmatpush1.bf16.msra.mxu0 %v1676
    %1687 = vmatprep.subr.bf16.mxu0 0
    %1688 = vmatpush1.bf16.msra.mxu0 0
    %1689 = vmatprep.subr.bf16.mxu0 0
    %1690 = vmatpush1.bf16.msra.mxu0 0
    %1691 = vmatprep.subr.bf16.mxu0 0
    %1692 = vmatpush1.bf16.msra.mxu0 0
    %1693 = vmatprep.subr.bf16.mxu0 0
    %1694 = vmatpush1.bf16.msra.mxu0 0
    %1695 = vmatprep.subr.bf16.mxu0 0
    %1696 = vmatpush1.bf16.msra.mxu0 0
    %1697 = vmatprep.subr.bf16.mxu0 0
    %1698 = vmatpush1.bf16.msra.mxu0 0
    %1699 = vmatprep.subr.bf16.mxu0 0
    %1700 = vmatpush1.bf16.msra.mxu0 0
    %1701 = vmatprep.subr.bf16.mxu0 0
    %1702 = vmatpush1.bf16.msra.mxu0 0
    %1703 = vmatprep.subr.bf16.mxu0 0
    %1704 = vmatpush1.bf16.msra.mxu0 0
    %1705 = vmatprep.subr.bf16.mxu0 0
    %1706 = vmatpush1.bf16.msra.mxu0 0
    %1707 = vmatprep.subr.bf16.mxu0 0
    %1708 = vmatpush1.bf16.msra.mxu0 0
    %1709 = vmatprep.subr.bf16.mxu0 0
    %1710 = vmatpush1.bf16.msra.mxu0 0
    %1711 = vmatprep.subr.bf16.mxu0 0
    %1712 = vmatpush1.bf16.msra.mxu0 0
    %1713 = vmatprep.subr.bf16.mxu0 0
    %1714 = vmatpush1.bf16.msra.mxu0 0
    %1715 = vmatprep.mubr.bf16.mxu0 0
    %1716 = vmatmul.mubr.bf16.gmra.mrb[0].mxu0 %v1678
    %v1717 = vpop.f32.mrb[0].mxu0
    %v1718 = vadd.f32 0.0, %v1717
    %v1719 = vpop.f32.mrb[0].mxu0
    %v1720 = vpop.f32.mrb[0].mxu0
    %v1721 = vadd.f32 0.0, %v1720
    %v1722 = vpop.f32.mrb[0].mxu0
    %1723 = vmatprep.mubr.bf16.mxu0 0
    %1724 = vmatmul.mubr.bf16.gmra.mrb[0].mxu0 %v1681
    %v1725 = vpop.f32.mrb[0].mxu0
    %v1726 = vadd.f32 0.0, %v1725
    %v1727 = vpop.f32.mrb[0].mxu0
    %v1728 = vpop.f32.mrb[0].mxu0
    %v1729 = vadd.f32 0.0, %v1728
    %v1730 = vpop.f32.mrb[0].mxu0
    %1731 = vdwg.mxu0
    %v1733 = vsel %vm1495, %v1544, 0
    %v1736 = vsel %vm1495, %v1545, 0
    %1738 = vmatprep.subr.bf16.mxu0 0
    %1739 = vmatpush1.bf16.msra.mxu0 %v1546
    %1740 = vmatprep.subr.bf16.mxu0 0
    %1741 = vmatpush1.bf16.msra.mxu0 %v1547
    %1742 = vmatprep.subr.bf16.mxu0 0
    %1743 = vmatpush1.bf16.msra.mxu0 0
    %1744 = vmatprep.subr.bf16.mxu0 0
    %1745 = vmatpush1.bf16.msra.mxu0 0
    %1746 = vmatprep.subr.bf16.mxu0 0
    %1747 = vmatpush1.bf16.msra.mxu0 0
    %1748 = vmatprep.subr.bf16.mxu0 0
    %1749 = vmatpush1.bf16.msra.mxu0 0
    %1750 = vmatprep.subr.bf16.mxu0 0
    %1751 = vmatpush1.bf16.msra.mxu0 0
    %1752 = vmatprep.subr.bf16.mxu0 0
    %1753 = vmatpush1.bf16.msra.mxu0 0
    %1754 = vmatprep.subr.bf16.mxu0 0
    %1755 = vmatpush1.bf16.msra.mxu0 0
    %1756 = vmatprep.subr.bf16.mxu0 0
    %1757 = vmatpush1.bf16.msra.mxu0 0
    %1758 = vmatprep.subr.bf16.mxu0 0
    %1759 = vmatpush1.bf16.msra.mxu0 0
    %1760 = vmatprep.subr.bf16.mxu0 0
    %1761 = vmatpush1.bf16.msra.mxu0 0
    %1762 = vmatprep.subr.bf16.mxu0 0
    %1763 = vmatpush1.bf16.msra.mxu0 0
    %1764 = vmatprep.subr.bf16.mxu0 0
    %1765 = vmatpush1.bf16.msra.mxu0 0
    %1766 = vmatprep.subr.bf16.mxu0 0
    %1767 = vmatpush1.bf16.msra.mxu0 0
    %1768 = vmatprep.subr.bf16.mxu0 0
    %1769 = vmatpush1.bf16.msra.mxu0 0
    %1770 = vmatprep.mubr.bf16.mxu0 0
    %1771 = vmatmul.mubr.bf16.gmra.mrb[0].mxu0 %v1733
    %v1772 = vpop.f32.mrb[0].mxu0
    %v1773 = vadd.f32 %v1718, %v1772
    %v1774 = vpop.f32.mrb[0].mxu0
    %v1775 = vpop.f32.mrb[0].mxu0
    %v1776 = vadd.f32 %v1721, %v1775
    %v1777 = vpop.f32.mrb[0].mxu0
    %1778 = vmatprep.mubr.bf16.mxu0 0
    %1779 = vmatmul.mubr.bf16.gmra.mrb[0].mxu0 %v1736
    %v1780 = vpop.f32.mrb[0].mxu0
    %v1781 = vadd.f32 %v1726, %v1780
    %v1782 = vpop.f32.mrb[0].mxu0
    %v1783 = vpop.f32.mrb[0].mxu0
    %v1784 = vadd.f32 %v1729, %v1783
    %v1785 = vpop.f32.mrb[0].mxu0
    %1786 = vdwg.mxu0
    %v1787 = vld [vmem:[%s0 + $0x200] sm:$0xf]
    %v1788 = vld [vmem:[%s0 + $0x204] sm:$0xf]
    %v1789 = vld [vmem:[%s0 + $0x208] sm:$0xf]
    %v1790 = vld [vmem:[%s0 + $0x20c] sm:$0xf]
    %v1791 = vld [vmem:[%s0 + $0x210] sm:$0xf]
    %v1792 = vld [vmem:[%s0 + $0x214] sm:$0xf]
    %v1793 = vld [vmem:[%s0 + $0x218] sm:$0xf]
    %v1794 = vld [vmem:[%s0 + $0x21c] sm:$0xf]
    %v1795 = vld [vmem:[%s0 + $0x220] sm:$0xf]
    %v1796 = vld [vmem:[%s0 + $0x224] sm:$0xf]
    %v1797 = vld [vmem:[%s0 + $0x228] sm:$0xf]
    %v1798 = vld [vmem:[%s0 + $0x22c] sm:$0xf]
    %v1799 = vld [vmem:[%s0 + $0x230] sm:$0xf]
    %v1800 = vld [vmem:[%s0 + $0x234] sm:$0xf]
    %v1801 = vld [vmem:[%s0 + $0x238] sm:$0xf]
    %v1802 = vld [vmem:[%s0 + $0x23c] sm:$0xf]
    %v1803 = vpack.c.bf16 %v1776, %v1773
    %v1804 = vpack.c.bf16 %v1784, %v1781
    %v1821 = vunpack.c.l.b16 %v1787
    %v1822 = vunpack.c.l.b16 %v1788
    %v1823 = vunpack.c.l.b16 %v1789
    %v1824 = vunpack.c.l.b16 %v1790
    %v1825 = vunpack.c.l.b16 %v1791
    %v1826 = vunpack.c.l.b16 %v1792
    %v1827 = vunpack.c.l.b16 %v1793
    %v1828 = vunpack.c.l.b16 %v1794
    %v1829 = vunpack.c.l.b16 %v1795
    %v1830 = vunpack.c.l.b16 %v1796
    %v1831 = vunpack.c.l.b16 %v1797
    %v1832 = vunpack.c.l.b16 %v1798
    %v1833 = vunpack.c.l.b16 %v1799
    %v1834 = vunpack.c.l.b16 %v1800
    %v1835 = vunpack.c.l.b16 %v1801
    %v1836 = vunpack.c.l.b16 %v1802
    %v1837 = vpack.c.b16 %v1822, %v1821
    %v1838 = vpack.c.b16 %v1824, %v1823
    %v1839 = vpack.c.b16 %v1826, %v1825
    %v1840 = vpack.c.b16 %v1828, %v1827
    %v1841 = vpack.c.b16 %v1830, %v1829
    %v1842 = vpack.c.b16 %v1832, %v1831
    %v1843 = vpack.c.b16 %v1834, %v1833
    %v1844 = vpack.c.b16 %v1836, %v1835
    %1853 = vmatprep.subr.bf16.mxu0 0
    %1854 = vmatpush1.bf16.msra.mxu0 %v1837
    %1855 = vmatprep.subr.bf16.mxu0 0
    %1856 = vmatpush1.bf16.msra.mxu0 %v1838
    %1857 = vmatprep.subr.bf16.mxu0 0
    %1858 = vmatpush1.bf16.msra.mxu0 %v1839
    %1859 = vmatprep.subr.bf16.mxu0 0
    %1860 = vmatpush1.bf16.msra.mxu0 %v1840
    %1861 = vmatprep.subr.bf16.mxu0 0
    %1862 = vmatpush1.bf16.msra.mxu0 %v1841
    %1863 = vmatprep.subr.bf16.mxu0 0
    %1864 = vmatpush1.bf16.msra.mxu0 %v1842
    %1865 = vmatprep.subr.bf16.mxu0 0
    %1866 = vmatpush1.bf16.msra.mxu0 %v1843
    %1867 = vmatprep.subr.bf16.mxu0 0
    %1868 = vmatpush1.bf16.msra.mxu0 %v1844
    %1869 = vmatprep.subr.bf16.mxu0 0
    %1870 = vmatpush1.bf16.msra.mxu0 0
    %1871 = vmatprep.subr.bf16.mxu0 0
    %1872 = vmatpush1.bf16.msra.mxu0 0
    %1873 = vmatprep.subr.bf16.mxu0 0
    %1874 = vmatpush1.bf16.msra.mxu0 0
    %1875 = vmatprep.subr.bf16.mxu0 0
    %1876 = vmatpush1.bf16.msra.mxu0 0
    %1877 = vmatprep.subr.bf16.mxu0 0
    %1878 = vmatpush1.bf16.msra.mxu0 0
    %1879 = vmatprep.subr.bf16.mxu0 0
    %1880 = vmatpush1.bf16.msra.mxu0 0
    %1881 = vmatprep.subr.bf16.mxu0 0
    %1882 = vmatpush1.bf16.msra.mxu0 0
    %1883 = vmatprep.subr.bf16.mxu0 0
    %1884 = vmatpush1.bf16.msra.mxu0 0
    %1885 = vmatprep.mubr.bf16.mxu0 0
    %1886 = vmatmul.mubr.bf16.gmra.mrb[0].mxu0 %v1803
    %v1887 = vpop.f32.mrb[0].mxu0
    %v1888 = vadd.f32 0.0, %v1887
    %v1889 = vpop.f32.mrb[0].mxu0
    %v1890 = vpop.f32.mrb[0].mxu0
    %v1891 = vadd.f32 0.0, %v1890
    %v1892 = vpop.f32.mrb[0].mxu0
    %1893 = vmatprep.mubr.bf16.mxu0 0
    %1894 = vmatmul.mubr.bf16.gmra.mrb[0].mxu0 %v1804
    %v1895 = vpop.f32.mrb[0].mxu0
    %v1896 = vadd.f32 0.0, %v1895
    %v1897 = vpop.f32.mrb[0].mxu0
    %v1898 = vpop.f32.mrb[0].mxu0
    %v1899 = vadd.f32 0.0, %v1898
    %v1900 = vpop.f32.mrb[0].mxu0
    %1901 = vdwg.mxu0
    %v1902 = vadd.f32 %v1220, %v1888
    %v1903 = vadd.f32 %v1221, %v1891
    %v1904 = vadd.f32 %v1222, %v1896
    %v1905 = vadd.f32 %v1223, %v1899
    %v1906 = vld [vmem:[#allocation2 + $0xf] sm:$0x1]
    %v1907 = vlaneseq
    %v1908 = vshrl.u32 %v1907, 7
    %v1909 = vsub.s32 0, %v1908
    %v1910 = vrot.slane %v1906, %v1909
    %v1911 = vadd.f32 %v1902, %v1910
    %v1912 = vadd.f32 %v1903, %v1910
    %v1913 = vadd.f32 %v1904, %v1910
    %v1914 = vadd.f32 %v1905, %v1910
    %v1915 = vld [vmem:[#allocation2 + $0x10] sm:$0x1]
    %v1916 = vld [vmem:[#allocation2 + $0x11] sm:$0x1]
    %1917 = vadd.xlane.f32.xlu0 %v1911
    %v1918 = vpop.xlane.xlu0 %1917
    %1919 = vadd.xlane.f32.xlu0 %v1912
    %v1920 = vpop.xlane.xlu0 %1919
    %1921 = vadd.xlane.f32.xlu0 %v1913
    %v1922 = vpop.xlane.xlu0 %1921
    %1923 = vadd.xlane.f32.xlu0 %v1914
    %v1924 = vpop.xlane.xlu0 %1923
    %v1925 = vmul.f32 %v1918, 0.03125
    %v1926 = vmul.f32 %v1920, 0.03125
    %v1927 = vmul.f32 %v1922, 0.03125
    %v1928 = vmul.f32 %v1924, 0.03125
    %v1929 = vmul.f32 %v1911, %v1911
    %v1930 = vmul.f32 %v1912, %v1912
    %v1931 = vmul.f32 %v1913, %v1913
    %v1932 = vmul.f32 %v1914, %v1914
    %1933 = vadd.xlane.f32.xlu0 %v1929
    %v1934 = vpop.xlane.xlu0 %1933
    %1935 = vadd.xlane.f32.xlu0 %v1930
    %v1936 = vpop.xlane.xlu0 %1935
    %1937 = vadd.xlane.f32.xlu0 %v1931
    %v1938 = vpop.xlane.xlu0 %1937
    %1939 = vadd.xlane.f32.xlu0 %v1932
    %v1940 = vpop.xlane.xlu0 %1939
    %v1941 = vmul.f32 %v1934, 0.03125
    %v1942 = vmul.f32 %v1936, 0.03125
    %v1943 = vmul.f32 %v1938, 0.03125
    %v1944 = vmul.f32 %v1940, 0.03125
    %v1945 = vmul.f32 %v1925, %v1925
    %v1946 = vmul.f32 %v1926, %v1926
    %v1947 = vmul.f32 %v1927, %v1927
    %v1948 = vmul.f32 %v1928, %v1928
    %v1949 = vsub.f32 %v1941, %v1945
    %v1950 = vsub.f32 %v1942, %v1946
    %v1951 = vsub.f32 %v1943, %v1947
    %v1952 = vsub.f32 %v1944, %v1948
    %v1953 = vsub.f32 %v1911, %v1925
    %v1954 = vsub.f32 %v1912, %v1926
    %v1955 = vsub.f32 %v1913, %v1927
    %v1956 = vsub.f32 %v1914, %v1928
    %v1957 = vadd.f32 %v1949, 1e-05
    %v1958 = vadd.f32 %v1950, 1e-05
    %v1959 = vadd.f32 %v1951, 1e-05
    %v1960 = vadd.f32 %v1952, 1e-05
    %v1961 = vrsqrt.pop %v1957
    %v1962 = vrsqrt.pop %v1958
    %v1963 = vrsqrt.pop %v1959
    %v1964 = vrsqrt.pop %v1960
    %v1965 = vmul.f32 %v1953, %v1961
    %v1966 = vmul.f32 %v1954, %v1962
    %v1967 = vmul.f32 %v1955, %v1963
    %v1968 = vmul.f32 %v1956, %v1964
    %v1969 = vlaneseq
    %v1970 = vshrl.u32 %v1969, 7
    %v1971 = vsub.s32 0, %v1970
    %v1972 = vrot.slane %v1915, %v1971
    %v1973 = vmul.f32 %v1965, %v1972
    %v1974 = vmul.f32 %v1966, %v1972
    %v1975 = vmul.f32 %v1967, %v1972
    %v1976 = vmul.f32 %v1968, %v1972
    %v1977 = vlaneseq
    %v1978 = vshrl.u32 %v1977, 7
    %v1979 = vsub.s32 0, %v1978
    %v1980 = vrot.slane %v1916, %v1979
    %v1981 = vadd.f32 %v1973, %v1980
    %v1982 = vadd.f32 %v1974, %v1980
    %v1983 = vadd.f32 %v1975, %v1980
    %v1984 = vadd.f32 %v1976, %v1980
    %v1985 = vld [vmem:[%s0 + $0x240] sm:$0xf]
    %v1986 = vld [vmem:[%s0 + $0x244] sm:$0xf]
    %v1987 = vld [vmem:[%s0 + $0x248] sm:$0xf]
    %v1988 = vld [vmem:[%s0 + $0x24c] sm:$0xf]
    %v1989 = vld [vmem:[%s0 + $0x250] sm:$0xf]
    %v1990 = vld [vmem:[%s0 + $0x254] sm:$0xf]
    %v1991 = vld [vmem:[%s0 + $0x258] sm:$0xf]
    %v1992 = vld [vmem:[%s0 + $0x25c] sm:$0xf]
    %v1993 = vld [vmem:[%s0 + $0x260] sm:$0xf]
    %v1994 = vld [vmem:[%s0 + $0x264] sm:$0xf]
    %v1995 = vld [vmem:[%s0 + $0x268] sm:$0xf]
    %v1996 = vld [vmem:[%s0 + $0x26c] sm:$0xf]
    %v1997 = vld [vmem:[%s0 + $0x270] sm:$0xf]
    %v1998 = vld [vmem:[%s0 + $0x274] sm:$0xf]
    %v1999 = vld [vmem:[%s0 + $0x278] sm:$0xf]
    %v2000 = vld [vmem:[%s0 + $0x27c] sm:$0xf]
    %v2001 = vpack.c.bf16 %v1982, %v1981
    %v2002 = vpack.c.bf16 %v1984, %v1983
    %v2003 = vld [vmem:[#allocation2 + $0x12] sm:$0x1]
    %v2004 = vlaneseq
    %v2005 = vshrl.u32 %v2004, 7
    %v2006 = vsub.s32 0, %v2005
    %v2007 = vrot.slane %v2003, %v2006
    %v2024 = vunpack.c.l.b16 %v1985
    %v2025 = vunpack.c.l.b16 %v1986
    %v2026 = vunpack.c.l.b16 %v1987
    %v2027 = vunpack.c.l.b16 %v1988
    %v2028 = vunpack.c.l.b16 %v1989
    %v2029 = vunpack.c.l.b16 %v1990
    %v2030 = vunpack.c.l.b16 %v1991
    %v2031 = vunpack.c.l.b16 %v1992
    %v2032 = vunpack.c.l.b16 %v1993
    %v2033 = vunpack.c.l.b16 %v1994
    %v2034 = vunpack.c.l.b16 %v1995
    %v2035 = vunpack.c.l.b16 %v1996
    %v2036 = vunpack.c.l.b16 %v1997
    %v2037 = vunpack.c.l.b16 %v1998
    %v2038 = vunpack.c.l.b16 %v1999
    %v2039 = vunpack.c.l.b16 %v2000
    %v2040 = vpack.c.b16 %v2025, %v2024
    %v2041 = vpack.c.b16 %v2027, %v2026
    %v2042 = vpack.c.b16 %v2029, %v2028
    %v2043 = vpack.c.b16 %v2031, %v2030
    %v2044 = vpack.c.b16 %v2033, %v2032
    %v2045 = vpack.c.b16 %v2035, %v2034
    %v2046 = vpack.c.b16 %v2037, %v2036
    %v2047 = vpack.c.b16 %v2039, %v2038
    %2056 = vmatprep.subr.bf16.mxu0 0
    %2057 = vmatpush1.bf16.msra.mxu0 %v2040
    %2058 = vmatprep.subr.bf16.mxu0 0
    %2059 = vmatpush1.bf16.msra.mxu0 %v2041
    %2060 = vmatprep.subr.bf16.mxu0 0
    %2061 = vmatpush1.bf16.msra.mxu0 %v2042
    %2062 = vmatprep.subr.bf16.mxu0 0
    %2063 = vmatpush1.bf16.msra.mxu0 %v2043
    %2064 = vmatprep.subr.bf16.mxu0 0
    %2065 = vmatpush1.bf16.msra.mxu0 %v2044
    %2066 = vmatprep.subr.bf16.mxu0 0
    %2067 = vmatpush1.bf16.msra.mxu0 %v2045
    %2068 = vmatprep.subr.bf16.mxu0 0
    %2069 = vmatpush1.bf16.msra.mxu0 %v2046
    %2070 = vmatprep.subr.bf16.mxu0 0
    %2071 = vmatpush1.bf16.msra.mxu0 %v2047
    %2072 = vmatprep.subr.bf16.mxu0 0
    %2073 = vmatpush1.bf16.msra.mxu0 0
    %2074 = vmatprep.subr.bf16.mxu0 0
    %2075 = vmatpush1.bf16.msra.mxu0 0
    %2076 = vmatprep.subr.bf16.mxu0 0
    %2077 = vmatpush1.bf16.msra.mxu0 0
    %2078 = vmatprep.subr.bf16.mxu0 0
    %2079 = vmatpush1.bf16.msra.mxu0 0
    %2080 = vmatprep.subr.bf16.mxu0 0
    %2081 = vmatpush1.bf16.msra.mxu0 0
    %2082 = vmatprep.subr.bf16.mxu0 0
    %2083 = vmatpush1.bf16.msra.mxu0 0
    %2084 = vmatprep.subr.bf16.mxu0 0
    %2085 = vmatpush1.bf16.msra.mxu0 0
    %2086 = vmatprep.subr.bf16.mxu0 0
    %2087 = vmatpush1.bf16.msra.mxu0 0
    %2088 = vmatprep.mubr.bf16.mxu0 0
    %2089 = vmatmul.mubr.bf16.gmra.mrb[0].mxu0 %v2001
    %v2090 = vpop.f32.mrb[0].mxu0
    %v2091 = vadd.f32 %v2007, %v2090
    %v2092 = vpop.f32.mrb[0].mxu0
    %v2093 = vpop.f32.mrb[0].mxu0
    %v2094 = vadd.f32 %v2007, %v2093
    %v2095 = vpop.f32.mrb[0].mxu0
    %2096 = vmatprep.mubr.bf16.mxu0 0
    %2097 = vmatmul.mubr.bf16.gmra.mrb[0].mxu0 %v2002
    %v2098 = vpop.f32.mrb[0].mxu0
    %v2099 = vadd.f32 %v2007, %v2098
    %v2100 = vpop.f32.mrb[0].mxu0
    %v2101 = vpop.f32.mrb[0].mxu0
    %v2102 = vadd.f32 %v2007, %v2101
    %v2103 = vpop.f32.mrb[0].mxu0
    %2104 = vdwg.mxu0
    %v2105 = vmul.f32 %v2091, 1.702
    %v2106 = vmul.f32 %v2094, 1.702
    %v2107 = vmul.f32 %v2099, 1.702
    %v2108 = vmul.f32 %v2102, 1.702
    %v2109 = vxor.u32 %v2105, 2147483648
    %v2110 = vxor.u32 %v2106, 2147483648
    %v2111 = vxor.u32 %v2107, 2147483648
    %v2112 = vxor.u32 %v2108, 2147483648
    %v2113 = vmul.f32 %v2109, 1.442695
    %v2114 = vpow.pop %v2113
    %v2115 = vmul.f32 %v2110, 1.442695
    %v2116 = vpow.pop %v2115
    %v2117 = vmul.f32 %v2111, 1.442695
    %v2118 = vpow.pop %v2117
    %v2119 = vmul.f32 %v2112, 1.442695
    %v2120 = vpow.pop %v2119
    %v2121 = vadd.f32 %v2114, 1.0
    %v2122 = vadd.f32 %v2116, 1.0
    %v2123 = vadd.f32 %v2118, 1.0
    %v2124 = vadd.f32 %v2120, 1.0
    %v2125 = vrcp.pop %v2121
    %v2126 = vmul.f32 1.0, %v2125
    %v2127 = vrcp.pop %v2122
    %v2128 = vmul.f32 1.0, %v2127
    %v2129 = vrcp.pop %v2123
    %v2130 = vmul.f32 1.0, %v2129
    %v2131 = vrcp.pop %v2124
    %v2132 = vmul.f32 1.0, %v2131
    %v2133 = vmul.f32 %v2091, %v2126
    %v2134 = vmul.f32 %v2094, %v2128
    %v2135 = vmul.f32 %v2099, %v2130
    %v2136 = vmul.f32 %v2102, %v2132
    %v2137 = vld [vmem:[%s0 + $0x280] sm:$0xf]
    %v2138 = vld [vmem:[%s0 + $0x284] sm:$0xf]
    %v2139 = vld [vmem:[%s0 + $0x288] sm:$0xf]
    %v2140 = vld [vmem:[%s0 + $0x28c] sm:$0xf]
    %v2141 = vld [vmem:[%s0 + $0x290] sm:$0xf]
    %v2142 = vld [vmem:[%s0 + $0x294] sm:$0xf]
    %v2143 = vld [vmem:[%s0 + $0x298] sm:$0xf]
    %v2144 = vld [vmem:[%s0 + $0x29c] sm:$0xf]
    %v2145 = vld [vmem:[%s0 + $0x2a0] sm:$0xf]
    %v2146 = vld [vmem:[%s0 + $0x2a4] sm:$0xf]
    %v2147 = vld [vmem:[%s0 + $0x2a8] sm:$0xf]
    %v2148 = vld [vmem:[%s0 + $0x2ac] sm:$0xf]
    %v2149 = vld [vmem:[%s0 + $0x2b0] sm:$0xf]
    %v2150 = vld [vmem:[%s0 + $0x2b4] sm:$0xf]
    %v2151 = vld [vmem:[%s0 + $0x2b8] sm:$0xf]
    %v2152 = vld [vmem:[%s0 + $0x2bc] sm:$0xf]
    %v2153 = vpack.c.bf16 %v2134, %v2133
    %v2154 = vpack.c.bf16 %v2136, %v2135
    %v2171 = vunpack.c.l.b16 %v2137
    %v2172 = vunpack.c.l.b16 %v2138
    %v2173 = vunpack.c.l.b16 %v2139
    %v2174 = vunpack.c.l.b16 %v2140
    %v2175 = vunpack.c.l.b16 %v2141
    %v2176 = vunpack.c.l.b16 %v2142
    %v2177 = vunpack.c.l.b16 %v2143
    %v2178 = vunpack.c.l.b16 %v2144
    %v2179 = vunpack.c.l.b16 %v2145
    %v2180 = vunpack.c.l.b16 %v2146
    %v2181 = vunpack.c.l.b16 %v2147
    %v2182 = vunpack.c.l.b16 %v2148
    %v2183 = vunpack.c.l.b16 %v2149
    %v2184 = vunpack.c.l.b16 %v2150
    %v2185 = vunpack.c.l.b16 %v2151
    %v2186 = vunpack.c.l.b16 %v2152
    %v2187 = vpack.c.b16 %v2172, %v2171
    %v2188 = vpack.c.b16 %v2174, %v2173
    %v2189 = vpack.c.b16 %v2176, %v2175
    %v2190 = vpack.c.b16 %v2178, %v2177
    %v2191 = vpack.c.b16 %v2180, %v2179
    %v2192 = vpack.c.b16 %v2182, %v2181
    %v2193 = vpack.c.b16 %v2184, %v2183
    %v2194 = vpack.c.b16 %v2186, %v2185
    %2203 = vmatprep.subr.bf16.mxu0 0
    %2204 = vmatpush1.bf16.msra.mxu0 %v2187
    %2205 = vmatprep.subr.bf16.mxu0 0
    %2206 = vmatpush1.bf16.msra.mxu0 %v2188
    %2207 = vmatprep.subr.bf16.mxu0 0
    %2208 = vmatpush1.bf16.msra.mxu0 %v2189
    %2209 = vmatprep.subr.bf16.mxu0 0
    %2210 = vmatpush1.bf16.msra.mxu0 %v2190
    %2211 = vmatprep.subr.bf16.mxu0 0
    %2212 = vmatpush1.bf16.msra.mxu0 %v2191
    %2213 = vmatprep.subr.bf16.mxu0 0
    %2214 = vmatpush1.bf16.msra.mxu0 %v2192
    %2215 = vmatprep.subr.bf16.mxu0 0
    %2216 = vmatpush1.bf16.msra.mxu0 %v2193
    %2217 = vmatprep.subr.bf16.mxu0 0
    %2218 = vmatpush1.bf16.msra.mxu0 %v2194
    %2219 = vmatprep.subr.bf16.mxu0 0
    %2220 = vmatpush1.bf16.msra.mxu0 0
    %2221 = vmatprep.subr.bf16.mxu0 0
    %2222 = vmatpush1.bf16.msra.mxu0 0
    %2223 = vmatprep.subr.bf16.mxu0 0
    %2224 = vmatpush1.bf16.msra.mxu0 0
    %2225 = vmatprep.subr.bf16.mxu0 0
    %2226 = vmatpush1.bf16.msra.mxu0 0
    %2227 = vmatprep.subr.bf16.mxu0 0
    %2228 = vmatpush1.bf16.msra.mxu0 0
    %2229 = vmatprep.subr.bf16.mxu0 0
    %2230 = vmatpush1.bf16.msra.mxu0 0
    %2231 = vmatprep.subr.bf16.mxu0 0
    %2232 = vmatpush1.bf16.msra.mxu0 0
    %2233 = vmatprep.subr.bf16.mxu0 0
    %2234 = vmatpush1.bf16.msra.mxu0 0
    %2235 = vmatprep.mubr.bf16.mxu0 0
    %2236 = vmatmul.mubr.bf16.gmra.mrb[0].mxu0 %v2153
    %v2237 = vpop.f32.mrb[0].mxu0
    %v2238 = vadd.f32 0.0, %v2237
    %v2239 = vpop.f32.mrb[0].mxu0
    %v2240 = vpop.f32.mrb[0].mxu0
    %v2241 = vadd.f32 0.0, %v2240
    %v2242 = vpop.f32.mrb[0].mxu0
    %2243 = vmatprep.mubr.bf16.mxu0 0
    %2244 = vmatmul.mubr.bf16.gmra.mrb[0].mxu0 %v2154
    %v2245 = vpop.f32.mrb[0].mxu0
    %v2246 = vadd.f32 0.0, %v2245
    %v2247 = vpop.f32.mrb[0].mxu0
    %v2248 = vpop.f32.mrb[0].mxu0
    %v2249 = vadd.f32 0.0, %v2248
    %v2250 = vpop.f32.mrb[0].mxu0
    %2251 = vdwg.mxu0
    %v2252 = vadd.f32 %v1911, %v2238
    %v2253 = vadd.f32 %v1912, %v2241
    %v2254 = vadd.f32 %v1913, %v2246
    %v2255 = vadd.f32 %v1914, %v2249
    %v2256 = vld [vmem:[#allocation2 + $0x13] sm:$0x1]
    %v2257 = vlaneseq
    %v2258 = vshrl.u32 %v2257, 7
    %v2259 = vsub.s32 0, %v2258
    %v2260 = vrot.slane %v2256, %v2259
    %v2261 = vadd.f32 %v2252, %v2260
    %v2262 = vadd.f32 %v2253, %v2260
    %v2263 = vadd.f32 %v2254, %v2260
    %v2264 = vadd.f32 %v2255, %v2260
    %v2265 = vld [vmem:[#allocation2 + $0x14] sm:$0x1]
    %v2266 = vld [vmem:[#allocation2 + $0x15] sm:$0x1]
    %2267 = vadd.xlane.f32.xlu0 %v2261
    %v2268 = vpop.xlane.xlu0 %2267
    %2269 = vadd.xlane.f32.xlu0 %v2262
    %v2270 = vpop.xlane.xlu0 %2269
    %2271 = vadd.xlane.f32.xlu0 %v2263
    %v2272 = vpop.xlane.xlu0 %2271
    %2273 = vadd.xlane.f32.xlu0 %v2264
    %v2274 = vpop.xlane.xlu0 %2273
    %v2275 = vmul.f32 %v2268, 0.03125
    %v2276 = vmul.f32 %v2270, 0.03125
    %v2277 = vmul.f32 %v2272, 0.03125
    %v2278 = vmul.f32 %v2274, 0.03125
    %v2279 = vmul.f32 %v2261, %v2261
    %v2280 = vmul.f32 %v2262, %v2262
    %v2281 = vmul.f32 %v2263, %v2263
    %v2282 = vmul.f32 %v2264, %v2264
    %2283 = vadd.xlane.f32.xlu0 %v2279
    %v2284 = vpop.xlane.xlu0 %2283
    %2285 = vadd.xlane.f32.xlu0 %v2280
    %v2286 = vpop.xlane.xlu0 %2285
    %2287 = vadd.xlane.f32.xlu0 %v2281
    %v2288 = vpop.xlane.xlu0 %2287
    %2289 = vadd.xlane.f32.xlu0 %v2282
    %v2290 = vpop.xlane.xlu0 %2289
    %v2291 = vmul.f32 %v2284, 0.03125
    %v2292 = vmul.f32 %v2286, 0.03125
    %v2293 = vmul.f32 %v2288, 0.03125
    %v2294 = vmul.f32 %v2290, 0.03125
    %v2295 = vmul.f32 %v2275, %v2275
    %v2296 = vmul.f32 %v2276, %v2276
    %v2297 = vmul.f32 %v2277, %v2277
    %v2298 = vmul.f32 %v2278, %v2278
    %v2299 = vsub.f32 %v2291, %v2295
    %v2300 = vsub.f32 %v2292, %v2296
    %v2301 = vsub.f32 %v2293, %v2297
    %v2302 = vsub.f32 %v2294, %v2298
    %v2303 = vsub.f32 %v2261, %v2275
    %v2304 = vsub.f32 %v2262, %v2276
    %v2305 = vsub.f32 %v2263, %v2277
    %v2306 = vsub.f32 %v2264, %v2278
    %v2307 = vadd.f32 %v2299, 1e-05
    %v2308 = vadd.f32 %v2300, 1e-05
    %v2309 = vadd.f32 %v2301, 1e-05
    %v2310 = vadd.f32 %v2302, 1e-05
    %v2311 = vrsqrt.pop %v2307
    %v2312 = vrsqrt.pop %v2308
    %v2313 = vrsqrt.pop %v2309
    %v2314 = vrsqrt.pop %v2310
    %v2315 = vmul.f32 %v2303, %v2311
    %v2316 = vmul.f32 %v2304, %v2312
    %v2317 = vmul.f32 %v2305, %v2313
    %v2318 = vmul.f32 %v2306, %v2314
    %v2319 = vlaneseq
    %v2320 = vshrl.u32 %v2319, 7
    %v2321 = vsub.s32 0, %v2320
    %v2322 = vrot.slane %v2265, %v2321
    %v2323 = vmul.f32 %v2315, %v2322
    %v2324 = vmul.f32 %v2316, %v2322
    %v2325 = vmul.f32 %v2317, %v2322
    %v2326 = vmul.f32 %v2318, %v2322
    %v2327 = vlaneseq
    %v2328 = vshrl.u32 %v2327, 7
    %v2329 = vsub.s32 0, %v2328
    %v2330 = vrot.slane %v2266, %v2329
    %v2331 = vadd.f32 %v2323, %v2330
    %v2332 = vadd.f32 %v2324, %v2330
    %v2333 = vadd.f32 %v2325, %v2330
    %v2334 = vadd.f32 %v2326, %v2330
    %v2335 = vld [vmem:[#allocation2 + $0x58] sm:$0xf]
    %v2336 = vpack.c.bf16 %v2335, %v2335
    %v2337 = vpack.c.bf16 %v2332, %v2331
    %v2338 = vpack.c.bf16 %v2334, %v2333
    %v2340 = vsel %vm1495, %v2336, 0
    %2342 = vmatprep.subr.bf16.mxu0 0
    %2343 = vmatpush1.bf16.msra.mxu0 %v2337
    %2344 = vmatprep.subr.bf16.mxu0 0
    %2345 = vmatpush1.bf16.msra.mxu0 %v2338
    %2346 = vmatprep.subr.bf16.mxu0 0
    %2347 = vmatpush1.bf16.msra.mxu0 0
    %2348 = vmatprep.subr.bf16.mxu0 0
    %2349 = vmatpush1.bf16.msra.mxu0 0
    %2350 = vmatprep.subr.bf16.mxu0 0
    %2351 = vmatpush1.bf16.msra.mxu0 0
    %2352 = vmatprep.subr.bf16.mxu0 0
    %2353 = vmatpush1.bf16.msra.mxu0 0
    %2354 = vmatprep.subr.bf16.mxu0 0
    %2355 = vmatpush1.bf16.msra.mxu0 0
    %2356 = vmatprep.subr.bf16.mxu0 0
    %2357 = vmatpush1.bf16.msra.mxu0 0
    %2358 = vmatprep.subr.bf16.mxu0 0
    %2359 = vmatpush1.bf16.msra.mxu0 0
    %2360 = vmatprep.subr.bf16.mxu0 0
    %2361 = vmatpush1.bf16.msra.mxu0 0
    %2362 = vmatprep.subr.bf16.mxu0 0
    %2363 = vmatpush1.bf16.msra.mxu0 0
    %2364 = vmatprep.subr.bf16.mxu0 0
    %2365 = vmatpush1.bf16.msra.mxu0 0
    %2366 = vmatprep.subr.bf16.mxu0 0
    %2367 = vmatpush1.bf16.msra.mxu0 0
    %2368 = vmatprep.subr.bf16.mxu0 0
    %2369 = vmatpush1.bf16.msra.mxu0 0
    %2370 = vmatprep.subr.bf16.mxu0 0
    %2371 = vmatpush1.bf16.msra.mxu0 0
    %2372 = vmatprep.subr.bf16.mxu0 0
    %2373 = vmatpush1.bf16.msra.mxu0 0
    %2374 = vmatprep.mubr.bf16.mxu0 0
    %2375 = vmatmul.mubr.bf16.gmra.mrb[0].mxu0 %v2340
    %v2376 = vpop.f32.mrb[0].mxu0
    %v2377 = vadd.f32 0.0, %v2376
    %v2378 = vpop.f32.mrb[0].mxu0
    %v2379 = vpop.f32.mrb[0].mxu0
    %v2380 = vpop.f32.mrb[0].mxu0
    %2381 = vdwg.mxu0
    %v2382 = vld [vmem:[%s0 + $0x2c0] sm:$0xf]
    %v2383 = vld [vmem:[%s0 + $0x2c4] sm:$0xf]
    %v2384 = vld [vmem:[%s0 + $0x2c8] sm:$0xf]
    %v2385 = vld [vmem:[%s0 + $0x2cc] sm:$0xf]
    %v2386 = vld [vmem:[%s0 + $0x2d0] sm:$0xf]
    %v2387 = vld [vmem:[%s0 + $0x2d4] sm:$0xf]
    %v2388 = vld [vmem:[%s0 + $0x2d8] sm:$0xf]
    %v2389 = vld [vmem:[%s0 + $0x2dc] sm:$0xf]
    %v2390 = vld [vmem:[%s0 + $0x2e0] sm:$0xf]
    %v2391 = vld [vmem:[%s0 + $0x2e4] sm:$0xf]
    %v2392 = vld [vmem:[%s0 + $0x2e8] sm:$0xf]
    %v2393 = vld [vmem:[%s0 + $0x2ec] sm:$0xf]
    %v2394 = vld [vmem:[%s0 + $0x2f0] sm:$0xf]
    %v2395 = vld [vmem:[%s0 + $0x2f4] sm:$0xf]
    %v2396 = vld [vmem:[%s0 + $0x2f8] sm:$0xf]
    %v2397 = vld [vmem:[%s0 + $0x2fc] sm:$0xf]
    %v2398 = vpack.c.bf16 %v2377, %v2377
    %v2415 = vunpack.c.l.b16 %v2382
    %v2416 = vunpack.c.l.b16 %v2383
    %v2417 = vunpack.c.l.b16 %v2384
    %v2418 = vunpack.c.l.b16 %v2385
    %v2419 = vunpack.c.l.b16 %v2386
    %v2420 = vunpack.c.l.b16 %v2387
    %v2421 = vunpack.c.l.b16 %v2388
    %v2422 = vunpack.c.l.b16 %v2389
    %v2423 = vunpack.c.l.b16 %v2390
    %v2424 = vunpack.c.l.b16 %v2391
    %v2425 = vunpack.c.l.b16 %v2392
    %v2426 = vunpack.c.l.b16 %v2393
    %v2427 = vunpack.c.l.b16 %v2394
    %v2428 = vunpack.c.l.b16 %v2395
    %v2429 = vunpack.c.l.b16 %v2396
    %v2430 = vunpack.c.l.b16 %v2397
    %v2431 = vpack.c.b16 %v2416, %v2415
    %v2432 = vpack.c.b16 %v2418, %v2417
    %v2433 = vpack.c.b16 %v2420, %v2419
    %v2434 = vpack.c.b16 %v2422, %v2421
    %v2435 = vpack.c.b16 %v2424, %v2423
    %v2436 = vpack.c.b16 %v2426, %v2425
    %v2437 = vpack.c.b16 %v2428, %v2427
    %v2438 = vpack.c.b16 %v2430, %v2429
    %2447 = vmatprep.subr.bf16.mxu0 0
    %2448 = vmatpush1.bf16.msra.mxu0 %v2431
    %2449 = vmatprep.subr.bf16.mxu0 0
    %2450 = vmatpush1.bf16.msra.mxu0 %v2432
    %2451 = vmatprep.subr.bf16.mxu0 0
    %2452 = vmatpush1.bf16.msra.mxu0 %v2433
    %2453 = vmatprep.subr.bf16.mxu0 0
    %2454 = vmatpush1.bf16.msra.mxu0 %v2434
    %2455 = vmatprep.subr.bf16.mxu0 0
    %2456 = vmatpush1.bf16.msra.mxu0 %v2435
    %2457 = vmatprep.subr.bf16.mxu0 0
    %2458 = vmatpush1.bf16.msra.mxu0 %v2436
    %2459 = vmatprep.subr.bf16.mxu0 0
    %2460 = vmatpush1.bf16.msra.mxu0 %v2437
    %2461 = vmatprep.subr.bf16.mxu0 0
    %2462 = vmatpush1.bf16.msra.mxu0 %v2438
    %2463 = vmatprep.subr.bf16.mxu0 0
    %2464 = vmatpush1.bf16.msra.mxu0 0
    %2465 = vmatprep.subr.bf16.mxu0 0
    %2466 = vmatpush1.bf16.msra.mxu0 0
    %2467 = vmatprep.subr.bf16.mxu0 0
    %2468 = vmatpush1.bf16.msra.mxu0 0
    %2469 = vmatprep.subr.bf16.mxu0 0
    %2470 = vmatpush1.bf16.msra.mxu0 0
    %2471 = vmatprep.subr.bf16.mxu0 0
    %2472 = vmatpush1.bf16.msra.mxu0 0
    %2473 = vmatprep.subr.bf16.mxu0 0
    %2474 = vmatpush1.bf16.msra.mxu0 0
    %2475 = vmatprep.subr.bf16.mxu0 0
    %2476 = vmatpush1.bf16.msra.mxu0 0
    %2477 = vmatprep.subr.bf16.mxu0 0
    %2478 = vmatpush1.bf16.msra.mxu0 0
    %2479 = vmatprep.mubr.bf16.mxu0 0
    %2480 = vmatmul.mubr.bf16.gmra.mrb[0].mxu0 %v2398
    %v2481 = vpop.f32.mrb[0].mxu0
    %v2482 = vadd.f32 0.0, %v2481
    %v2483 = vpop.f32.mrb[0].mxu0
    %v2484 = vpop.f32.mrb[0].mxu0
    %v2485 = vpop.f32.mrb[0].mxu0
    %2486 = vdwg.mxu0
    %v2487 = vmul.f32 %v1215, %v1215
    %v2488 = vsel %vm233, %v2487, 0.0
    %2489 = vadd.xlane.f32.xlu0 %v2488
    %v2490 = vpop.xlane.xlu0 %2489
    %v2491 = vadd.f32 %v2490, 1e-24
    %v2492 = vrsqrt.pop %v2491
    %v2493 = vmul.f32 %v1215, %v2492
    %v2494 = vmul.f32 %v2482, %v2482
    %vm2495 = vcmask 1043456
    %v2496 = vsel %vm2495, %v2494, 0.0
    %2497 = vadd.xlane.f32.xlu0 %v2496
    %v2498 = vpop.xlane.xlu0 %2497
    %v2499 = vadd.f32 %v2498, 1e-24
    %v2500 = vrsqrt.pop %v2499
    %v2501 = vmul.f32 %v2482, %v2500
    %v2502 = vld [vmem:[#allocation2 + $0x16] sm:$0x1]
    %v2503 = vmul.f32 %v2502, 1.442695
    %v2504 = vpow.pop %v2503
    %2505 = vmatprep.subr.mxu0 0.0
    %2506 = vmatpush1.xpose.msra.mxu0 %v2501
    %2507 = vmatprep.subr.mxu0 0.0
    %2508 = vmatpush1.xpose.msra.mxu0 0.0
    %2509 = vmatprep.subr.mxu0 0.0
    %2510 = vmatpush1.xpose.msra.mxu0 0.0
    %2511 = vmatprep.subr.mxu0 0.0
    %2512 = vmatpush1.xpose.msra.mxu0 0.0
    %2513 = vmatprep.subr.mxu0 0.0
    %2514 = vmatpush1.xpose.msra.mxu0 0.0
    %2515 = vmatprep.subr.mxu0 0.0
    %2516 = vmatpush1.xpose.msra.mxu0 0.0
    %2517 = vmatprep.subr.mxu0 0.0
    %2518 = vmatpush1.xpose.msra.mxu0 0.0
    %2519 = vmatprep.subr.mxu0 0.0
    %2520 = vmatpush1.xpose.msra.mxu0 0.0
    %2521 = vmatprep.subr.mxu0 0.0
    %2522 = vmatpush1.xpose.msra.mxu0 0.0
    %2523 = vmatprep.subr.mxu0 0.0
    %2524 = vmatpush1.xpose.msra.mxu0 0.0
    %2525 = vmatprep.subr.mxu0 0.0
    %2526 = vmatpush1.xpose.msra.mxu0 0.0
    %2527 = vmatprep.subr.mxu0 0.0
    %2528 = vmatpush1.xpose.msra.mxu0 0.0
    %2529 = vmatprep.subr.mxu0 0.0
    %2530 = vmatpush1.xpose.msra.mxu0 0.0
    %2531 = vmatprep.subr.mxu0 0.0
    %2532 = vmatpush1.xpose.msra.mxu0 0.0
    %2533 = vmatprep.subr.mxu0 0.0
    %2534 = vmatpush1.xpose.msra.mxu0 0.0
    %2535 = vmatprep.subr.mxu0 0.0
    %2536 = vmatpush1.xpose.msra.mxu0 0.0
    %2537 = vmatprep.subr.mxu0 0.0
    %2538 = vmatpush1.xpose.msra.mxu0 0.0
    %2539 = vmatprep.subr.mxu0 0.0
    %2540 = vmatpush1.xpose.msra.mxu0 0.0
    %2541 = vmatprep.subr.mxu0 0.0
    %2542 = vmatpush1.xpose.msra.mxu0 0.0
    %2543 = vmatprep.subr.mxu0 0.0
    %2544 = vmatpush1.xpose.msra.mxu0 0.0
    %2545 = vmatprep.subr.mxu0 0.0
    %2546 = vmatpush1.xpose.msra.mxu0 0.0
    %2547 = vmatprep.subr.mxu0 0.0
    %2548 = vmatpush1.xpose.msra.mxu0 0.0
    %2549 = vmatprep.subr.mxu0 0.0
    %2550 = vmatpush1.xpose.msra.mxu0 0.0
    %2551 = vmatprep.subr.mxu0 0.0
    %2552 = vmatpush1.xpose.msra.mxu0 0.0
    %2553 = vmatprep.subr.mxu0 0.0
    %2554 = vmatpush1.xpose.msra.mxu0 0.0
    %2555 = vmatprep.subr.mxu0 0.0
    %2556 = vmatpush1.xpose.msra.mxu0 0.0
    %2557 = vmatprep.subr.mxu0 0.0
    %2558 = vmatpush1.xpose.msra.mxu0 0.0
    %2559 = vmatprep.subr.mxu0 0.0
    %2560 = vmatpush1.xpose.msra.mxu0 0.0
    %2561 = vmatprep.subr.mxu0 0.0
    %2562 = vmatpush1.xpose.msra.mxu0 0.0
    %2563 = vmatprep.subr.mxu0 0.0
    %2564 = vmatpush1.xpose.msra.mxu0 0.0
    %2565 = vmatprep.subr.mxu0 0.0
    %2566 = vmatpush1.xpose.msra.mxu0 0.0
    %2567 = vmatprep.subr.mxu0 0.0
    %2568 = vmatpush1.xpose.msra.mxu0 0.0
    %2569 = vmatprep.mubr.f32.mxu0 0.0
    %2570 = vmatmul.mubr.f32.gmra.mrb[0].mxu0 %v2493
    %v2571 = vpop.f32.mrb[0].mxu0
    %v2572 = vadd.f32 0.0, %v2571
    %v2573 = vpop.f32.mrb[0].mxu0
    %2574 = vdwg.mxu0
    %s2576 = vtos %v2504
    %v2577 = vstv %s2576
    %v2579 = vmul.f32 %v2577, %v2572
    %vm2580 = vcmask 25600
    %2581 = vst.msk [vmem:[#allocation5] sm:$0x3] %vm2580, %v2579
    %vm2582 = vcmask 257024
    %2583 = vst.msk [vmem:[#allocation6] sm:$0xf] %vm2582, %v2501
    // Predicated region
    $region22: #{clip_ttt_forward.1} parent=1 // pred_check
      _
    $region23: #{clip_ttt_forward.1} parent=1 // pred_check_branch
      %2585 = sbr.rel (0) target = $region25
    $region24: #{clip_ttt_forward.1} parent=1 // pred_region
      %s2587 = ssub.s32 32, 32
      %2588 = vsyncadd [#allocation4], %s2587
      %s2590 = sshll.u32 [#allocation5], 4
      %s2591 = int_to_ptr.vmem [resolvable:$true] %s2590
      %2593 = dma.vmem_to_hbm [thread:$0]  %s2591, 32, %s4, [#allocation4]
    $region25: #{clip_ttt_forward.1} parent=1 // pred_fallthru
      _
    // Predicated region
    $region26: #{clip_ttt_forward.1} parent=1 // pred_check
      _
    $region27: #{clip_ttt_forward.1} parent=1 // pred_check_branch
      %2595 = sbr.rel (0) target = $region29
    $region28: #{clip_ttt_forward.1} parent=1 // pred_region
      %s2597 = ssub.s32 64, 64
      %2598 = vsyncadd [#allocation7], %s2597
      %s2600 = sshll.u32 [#allocation6], 4
      %s2601 = int_to_ptr.vmem [resolvable:$true] %s2600
      %2603 = dma.vmem_to_hbm [thread:$0]  %s2601, 64, %s5, [#allocation7]
    $region29: #{clip_ttt_forward.1} parent=1 // pred_fallthru
      _
    // Predicated region
    $region30: #{clip_ttt_forward.1} parent=1 // pred_check
      _
    $region31: #{clip_ttt_forward.1} parent=1 // pred_check_branch
      %2605 = sbr.rel (0) target = $region33
    $region32: #{clip_ttt_forward.1} parent=1 // pred_region
      %2606 = dma.done [#allocation4], 32
    $region33: #{clip_ttt_forward.1} parent=1 // pred_fallthru
      _
    // Predicated region
    $region34: #{clip_ttt_forward.1} parent=1 // pred_check
      _
    $region35: #{clip_ttt_forward.1} parent=1 // pred_check_branch
      %2608 = sbr.rel (0) target = $region37
    $region36: #{clip_ttt_forward.1} parent=1 // pred_region
      %2609 = dma.done [#allocation7], 64
    $region37: #{clip_ttt_forward.1} parent=1 // pred_fallthru
      _
    %2610 = vsyncpa [#allocation3], 1
    %2611 = vsyncpa [#allocation4], 1
    %2612 = vsyncpa [#allocation7], 1

</llo_original>
